<compile_context>
chip_gen: v5e
topology: v5e:2x2
jax: 0.10.0
libtpu: 0.0.40
codegen_flags: <defaults>
</compile_context>

<pallas_src>
import functools

import jax
import jax.numpy as jnp
import numpy as np
from jax.experimental import pallas as pl
from jax.experimental.pallas import tpu as pltpu


def _res_block_2d_kernel(W, mask_ref, w_ref, b_ref, alpha_ref, x_ref, out_ref):
    """Fused y = x + PReLU(conv3x3_pad1(x) + bias) for one (channel-padded) batch element.

    W        : python int, image width (static).
    mask_ref : (9, 1, HW) f32 VMEM  per-tap validity mask (1.0 inside the image, 0.0 where
                                    the rolled source pixel fell outside / wrapped around).
    w_ref    : (9, Cp, Cp) f32 VMEM per-tap (C_out, C_in) weight matrices (t = kh*3 + kw).
    b_ref    : (Cp, 1)     f32 VMEM bias (broadcast along lanes).
    alpha_ref: (1,)        f32 SMEM single shared PReLU slope.
    x_ref    : (1, Cp, HW)     VMEM input block  (one batch element, channels on sublanes,
                                    flat H*W on lanes).
    out_ref  : (1, Cp, HW)     VMEM output block.
    """
    _, Cp, HW = x_ref.shape
    x2 = x_ref[0].astype(jnp.float32)                       # (Cp, HW), lane-dense

    acc = jnp.zeros((Cp, HW), jnp.float32)
    for kh in range(3):
        for kw in range(3):
            dh, dw = kh - 1, kw - 1
            t = kh * 3 + kw
            if dh == 0 and dw == 0:
                src = x2                                     # center tap: no shift, no mask
            else:
                shift = (-(dh * W + dw)) % HW                # src[p] = x[p + dh*W + dw]
                src = pltpu.roll(x2, shift=shift, axis=1) * mask_ref[t]
            # Channel mix on the MXU: (Cp, Cp) @ (Cp, HW) accumulated over the 9 taps.
            acc = acc + jnp.dot(w_ref[t], src,
                                preferred_element_type=jnp.float32,
                                precision=jax.lax.Precision.HIGHEST)

    y = acc + b_ref[...]                                     # bias, lane-broadcast
    alpha = alpha_ref[0]
    y = jnp.where(y > 0, y, alpha * y)                       # PReLU (single shared slope)
    out_ref[0] = (x2 + y).astype(out_ref.dtype)              # residual, lane-dense store


def res_block_2d(x, weight, bias, alpha):
    """x: (B, C, H, W). weight: (C, C, 3, 3) PyTorch OIHW. bias: (C,). alpha: scalar."""
    B, C, H, W = x.shape
    HW = H * W
    Cp = ((C + 7) // 8) * 8          # pad channels to a sublane multiple (MXU/layout friendly)

    # Per-tap (C_out, C_in) weight matrices, zero-padded to (Cp, Cp).
    w = jnp.asarray(weight, jnp.float32)
    w9 = jnp.transpose(w, (2, 3, 0, 1)).reshape(9, C, C)
    if Cp != C:
        w9 = jnp.pad(w9, ((0, 0), (0, Cp - C), (0, Cp - C)))
    b = jnp.asarray(bias, jnp.float32).reshape(C, 1)
    if Cp != C:
        b = jnp.pad(b, ((0, Cp - C), (0, 0)))
    alpha_arr = jnp.asarray(alpha, jnp.float32).reshape(1)

    # Static per-tap edge masks over the flattened image (shape (9, 1, HW)).
    hh, ww = np.meshgrid(np.arange(H), np.arange(W), indexing="ij")
    masks_np = np.zeros((9, 1, HW), np.float32)
    for kh in range(3):
        for kw in range(3):
            dh, dw = kh - 1, kw - 1
            valid = ((hh + dh >= 0) & (hh + dh < H) &
                     (ww + dw >= 0) & (ww + dw < W))
            masks_np[kh * 3 + kw, 0] = valid.reshape(HW).astype(np.float32)
    masks = jnp.asarray(masks_np)

    # x: (B, C, H, W) -> (B, Cp, HW).  The reshape is contiguous (layout plumbing only);
    # the channel pad is applied only when C is not already a multiple of 8.
    xf = x.reshape(B, C, HW)
    if Cp != C:
        xf = jnp.pad(xf, ((0, 0), (0, Cp - C), (0, 0)))

    # Block-size-derived VMEM limit with headroom (double-buffered x/out + resident consts
    # + temporaries), clamped to a range that is safe on v5e/v6e (128 MiB) and v7x (64 MiB).
    itemsize = jnp.dtype(x.dtype).itemsize
    xblk_bytes = Cp * HW * itemsize
    const_bytes = (9 * HW + 9 * Cp * Cp + Cp) * 4
    need = 4 * xblk_bytes + 2 * const_bytes + 32 * Cp * HW * 4
    vmem_limit = int(min(max(need, 16 * 1024 * 1024), 48 * 1024 * 1024))

    out = pl.pallas_call(
        functools.partial(_res_block_2d_kernel, W),
        out_shape=jax.ShapeDtypeStruct((B, Cp, HW), x.dtype),
        grid=(B,),
        in_specs=[
            pl.BlockSpec((9, 1, HW), lambda bi: (0, 0, 0)),        # edge masks (resident)
            pl.BlockSpec((9, Cp, Cp), lambda bi: (0, 0, 0)),       # per-tap weights
            pl.BlockSpec((Cp, 1), lambda bi: (0, 0)),              # bias
            pl.BlockSpec(memory_space=pltpu.MemorySpace.SMEM),     # PReLU alpha (scalar)
            pl.BlockSpec((1, Cp, HW), lambda bi: (bi, 0, 0)),      # x: one batch / step
        ],
        out_specs=pl.BlockSpec((1, Cp, HW), lambda bi: (bi, 0, 0)),
        compiler_params=pltpu.CompilerParams(
            dimension_semantics=("parallel",),                     # pipeline / both v7x TCs
            vmem_limit_bytes=vmem_limit,
        ),
    )(masks, w9, b, alpha_arr, xf)

    return out[:, :C, :].reshape(B, C, H, W)


# --------------------- pure-JAX reference (for verification) ---------------------

def res_block_2d_ref(x, weight, bias, alpha):
    y = jax.lax.conv_general_dilated(
        x.astype(jnp.float32), weight.astype(jnp.float32),
        window_strides=(1, 1), padding=((1, 1), (1, 1)),
        dimension_numbers=("NCHW", "OIHW", "NCHW"),
        precision=jax.lax.Precision.HIGHEST)
    y = y + bias.reshape(1, -1, 1, 1).astype(jnp.float32)
    y = jnp.where(y > 0, y, alpha * y)                       # PReLU
    return (x.astype(jnp.float32) + y).astype(x.dtype)


if __name__ == "__main__":
    B, C, H, W = 2, 4, 16, 16

    key = jax.random.PRNGKey(0)
    k1, k2, k3 = jax.random.split(key, 3)
    weight = 0.1 * jax.random.normal(k1, (C, C, 3, 3), jnp.float32)
    bias = 0.1 * jax.random.normal(k2, (C,), jnp.float32)
    alpha = jnp.float32(0.25)                                # nn.PReLU() default init
    x = jax.random.normal(k3, (B, C, H, W), jnp.float32)

    out = jax.block_until_ready(res_block_2d(x, weight, bias, alpha))
    ref = jax.block_until_ready(res_block_2d_ref(x, weight, bias, alpha))

    assert out.shape == x.shape and out.dtype == x.dtype
    np.testing.assert_allclose(np.asarray(out), np.asarray(ref), rtol=1e-4, atol=1e-4)
    print("KERNEL_OK")
</pallas_src>

<mosaic_0001>
module attributes {stable_mosaic.version = 11 : i64} {
  func.func @_res_block_2d_kernel(%arg0: i32, %arg1: memref<9x1x256xf32, #tpu.memory_space<vmem>>, %arg2: memref<9x8x8xf32, #tpu.memory_space<vmem>>, %arg3: memref<8x1xf32, #tpu.memory_space<vmem>>, %arg4: memref<1xf32, #tpu.memory_space<smem>>, %arg5: memref<1x8x256xf32, #tpu.memory_space<vmem>>, %arg6: memref<1x8x256xf32, #tpu.memory_space<vmem>>) attributes {dimension_semantics = [#tpu.dimension_semantics<parallel>], iteration_bounds = array<i64: 2>, scalar_prefetch = 0 : i64, scratch_operands = 0 : i64, tpu.core_type = #tpu.core_type<tc>, window_params = [{pipeline_mode = #tpu.pipeline_mode<synchronous>, transform_indices = @transform_0, window_bounds = array<i64: 9, 1, 256>}, {pipeline_mode = #tpu.pipeline_mode<synchronous>, transform_indices = @transform_1, window_bounds = array<i64: 9, 8, 8>}, {pipeline_mode = #tpu.pipeline_mode<synchronous>, transform_indices = @transform_2, window_bounds = array<i64: 8, 1>}, {transform_indices = @transform_3, window_bounds = array<i64: 1>}, {transform_indices = @transform_4, window_bounds = array<i64: 1, 8, 256>}, {transform_indices = @transform_5, window_bounds = array<i64: 1, 8, 256>}]} {
    %c0 = arith.constant 0 : index
    %c0_0 = arith.constant 0 : index
    %c0_1 = arith.constant 0 : index
    %0 = vector.load %arg5[%c0, %c0_0, %c0_1] : memref<1x8x256xf32, #tpu.memory_space<vmem>>, vector<1x8x256xf32>
    %1 = vector.shape_cast %0 : vector<1x8x256xf32> to vector<8x256xf32>
    %cst = arith.constant 0.000000e+00 : f32
    %2 = vector.broadcast %cst : f32 to vector<8x256xf32>
    %c17_i32 = arith.constant 17 : i32
    %3 = tpu.dynamic_rotate %1 by %c17_i32 dim 1 : vector<8x256xf32>, i32 -> vector<8x256xf32>
    %c0_2 = arith.constant 0 : index
    %c0_3 = arith.constant 0 : index
    %c0_4 = arith.constant 0 : index
    %4 = vector.load %arg1[%c0_2, %c0_3, %c0_4] : memref<9x1x256xf32, #tpu.memory_space<vmem>>, vector<1x1x256xf32>
    %5 = vector.shape_cast %4 : vector<1x1x256xf32> to vector<1x256xf32>
    %6 = vector.broadcast %5 : vector<1x256xf32> to vector<8x256xf32>
    %7 = arith.mulf %3, %6 : vector<8x256xf32>
    %c0_5 = arith.constant 0 : index
    %c0_6 = arith.constant 0 : index
    %c0_7 = arith.constant 0 : index
    %8 = vector.load %arg2[%c0_5, %c0_6, %c0_7] : memref<9x8x8xf32, #tpu.memory_space<vmem>>, vector<1x8x8xf32>
    %9 = vector.shape_cast %8 : vector<1x8x8xf32> to vector<8x8xf32>
    %cst_8 = arith.constant dense<0.000000e+00> : vector<8x256xf32>
    %10 = tpu.matmul %9, %7, %cst_8 {dimension_numbers = #tpu.dot_dimension_numbers<[1], [0], [0], [1], [0, 0, 1, 1], [], []>, precision = #tpu.contract_precision<fp32>} : vector<8x8xf32>, vector<8x256xf32>, vector<8x256xf32> -> vector<8x256xf32>
    %11 = arith.addf %2, %10 : vector<8x256xf32>
    %c16_i32 = arith.constant 16 : i32
    %12 = tpu.dynamic_rotate %1 by %c16_i32 dim 1 : vector<8x256xf32>, i32 -> vector<8x256xf32>
    %c1 = arith.constant 1 : index
    %c0_9 = arith.constant 0 : index
    %c0_10 = arith.constant 0 : index
    %13 = vector.load %arg1[%c1, %c0_9, %c0_10] : memref<9x1x256xf32, #tpu.memory_space<vmem>>, vector<1x1x256xf32>
    %14 = vector.shape_cast %13 : vector<1x1x256xf32> to vector<1x256xf32>
    %15 = vector.broadcast %14 : vector<1x256xf32> to vector<8x256xf32>
    %16 = arith.mulf %12, %15 : vector<8x256xf32>
    %c1_11 = arith.constant 1 : index
    %c0_12 = arith.constant 0 : index
    %c0_13 = arith.constant 0 : index
    %17 = vector.load %arg2[%c1_11, %c0_12, %c0_13] : memref<9x8x8xf32, #tpu.memory_space<vmem>>, vector<1x8x8xf32>
    %18 = vector.shape_cast %17 : vector<1x8x8xf32> to vector<8x8xf32>
    %cst_14 = arith.constant dense<0.000000e+00> : vector<8x256xf32>
    %19 = tpu.matmul %18, %16, %cst_14 {dimension_numbers = #tpu.dot_dimension_numbers<[1], [0], [0], [1], [0, 0, 1, 1], [], []>, precision = #tpu.contract_precision<fp32>} : vector<8x8xf32>, vector<8x256xf32>, vector<8x256xf32> -> vector<8x256xf32>
    %20 = arith.addf %11, %19 : vector<8x256xf32>
    %c15_i32 = arith.constant 15 : i32
    %21 = tpu.dynamic_rotate %1 by %c15_i32 dim 1 : vector<8x256xf32>, i32 -> vector<8x256xf32>
    %c2 = arith.constant 2 : index
    %c0_15 = arith.constant 0 : index
    %c0_16 = arith.constant 0 : index
    %22 = vector.load %arg1[%c2, %c0_15, %c0_16] : memref<9x1x256xf32, #tpu.memory_space<vmem>>, vector<1x1x256xf32>
    %23 = vector.shape_cast %22 : vector<1x1x256xf32> to vector<1x256xf32>
    %24 = vector.broadcast %23 : vector<1x256xf32> to vector<8x256xf32>
    %25 = arith.mulf %21, %24 : vector<8x256xf32>
    %c2_17 = arith.constant 2 : index
    %c0_18 = arith.constant 0 : index
    %c0_19 = arith.constant 0 : index
    %26 = vector.load %arg2[%c2_17, %c0_18, %c0_19] : memref<9x8x8xf32, #tpu.memory_space<vmem>>, vector<1x8x8xf32>
    %27 = vector.shape_cast %26 : vector<1x8x8xf32> to vector<8x8xf32>
    %cst_20 = arith.constant dense<0.000000e+00> : vector<8x256xf32>
    %28 = tpu.matmul %27, %25, %cst_20 {dimension_numbers = #tpu.dot_dimension_numbers<[1], [0], [0], [1], [0, 0, 1, 1], [], []>, precision = #tpu.contract_precision<fp32>} : vector<8x8xf32>, vector<8x256xf32>, vector<8x256xf32> -> vector<8x256xf32>
    %29 = arith.addf %20, %28 : vector<8x256xf32>
    %c1_i32 = arith.constant 1 : i32
    %30 = tpu.dynamic_rotate %1 by %c1_i32 dim 1 : vector<8x256xf32>, i32 -> vector<8x256xf32>
    %c3 = arith.constant 3 : index
    %c0_21 = arith.constant 0 : index
    %c0_22 = arith.constant 0 : index
    %31 = vector.load %arg1[%c3, %c0_21, %c0_22] : memref<9x1x256xf32, #tpu.memory_space<vmem>>, vector<1x1x256xf32>
    %32 = vector.shape_cast %31 : vector<1x1x256xf32> to vector<1x256xf32>
    %33 = vector.broadcast %32 : vector<1x256xf32> to vector<8x256xf32>
    %34 = arith.mulf %30, %33 : vector<8x256xf32>
    %c3_23 = arith.constant 3 : index
    %c0_24 = arith.constant 0 : index
    %c0_25 = arith.constant 0 : index
    %35 = vector.load %arg2[%c3_23, %c0_24, %c0_25] : memref<9x8x8xf32, #tpu.memory_space<vmem>>, vector<1x8x8xf32>
    %36 = vector.shape_cast %35 : vector<1x8x8xf32> to vector<8x8xf32>
    %cst_26 = arith.constant dense<0.000000e+00> : vector<8x256xf32>
    %37 = tpu.matmul %36, %34, %cst_26 {dimension_numbers = #tpu.dot_dimension_numbers<[1], [0], [0], [1], [0, 0, 1, 1], [], []>, precision = #tpu.contract_precision<fp32>} : vector<8x8xf32>, vector<8x256xf32>, vector<8x256xf32> -> vector<8x256xf32>
    %38 = arith.addf %29, %37 : vector<8x256xf32>
    %c4 = arith.constant 4 : index
    %c0_27 = arith.constant 0 : index
    %c0_28 = arith.constant 0 : index
    %39 = vector.load %arg2[%c4, %c0_27, %c0_28] : memref<9x8x8xf32, #tpu.memory_space<vmem>>, vector<1x8x8xf32>
    %40 = vector.shape_cast %39 : vector<1x8x8xf32> to vector<8x8xf32>
    %cst_29 = arith.constant dense<0.000000e+00> : vector<8x256xf32>
    %41 = tpu.matmul %40, %1, %cst_29 {dimension_numbers = #tpu.dot_dimension_numbers<[1], [0], [0], [1], [0, 0, 1, 1], [], []>, precision = #tpu.contract_precision<fp32>} : vector<8x8xf32>, vector<8x256xf32>, vector<8x256xf32> -> vector<8x256xf32>
    %42 = arith.addf %38, %41 : vector<8x256xf32>
    %c255_i32 = arith.constant 255 : i32
    %43 = tpu.dynamic_rotate %1 by %c255_i32 dim 1 : vector<8x256xf32>, i32 -> vector<8x256xf32>
    %c5 = arith.constant 5 : index
    %c0_30 = arith.constant 0 : index
    %c0_31 = arith.constant 0 : index
    %44 = vector.load %arg1[%c5, %c0_30, %c0_31] : memref<9x1x256xf32, #tpu.memory_space<vmem>>, vector<1x1x256xf32>
    %45 = vector.shape_cast %44 : vector<1x1x256xf32> to vector<1x256xf32>
    %46 = vector.broadcast %45 : vector<1x256xf32> to vector<8x256xf32>
    %47 = arith.mulf %43, %46 : vector<8x256xf32>
    %c5_32 = arith.constant 5 : index
    %c0_33 = arith.constant 0 : index
    %c0_34 = arith.constant 0 : index
    %48 = vector.load %arg2[%c5_32, %c0_33, %c0_34] : memref<9x8x8xf32, #tpu.memory_space<vmem>>, vector<1x8x8xf32>
    %49 = vector.shape_cast %48 : vector<1x8x8xf32> to vector<8x8xf32>
    %cst_35 = arith.constant dense<0.000000e+00> : vector<8x256xf32>
    %50 = tpu.matmul %49, %47, %cst_35 {dimension_numbers = #tpu.dot_dimension_numbers<[1], [0], [0], [1], [0, 0, 1, 1], [], []>, precision = #tpu.contract_precision<fp32>} : vector<8x8xf32>, vector<8x256xf32>, vector<8x256xf32> -> vector<8x256xf32>
    %51 = arith.addf %42, %50 : vector<8x256xf32>
    %c241_i32 = arith.constant 241 : i32
    %52 = tpu.dynamic_rotate %1 by %c241_i32 dim 1 : vector<8x256xf32>, i32 -> vector<8x256xf32>
    %c6 = arith.constant 6 : index
    %c0_36 = arith.constant 0 : index
    %c0_37 = arith.constant 0 : index
    %53 = vector.load %arg1[%c6, %c0_36, %c0_37] : memref<9x1x256xf32, #tpu.memory_space<vmem>>, vector<1x1x256xf32>
    %54 = vector.shape_cast %53 : vector<1x1x256xf32> to vector<1x256xf32>
    %55 = vector.broadcast %54 : vector<1x256xf32> to vector<8x256xf32>
    %56 = arith.mulf %52, %55 : vector<8x256xf32>
    %c6_38 = arith.constant 6 : index
    %c0_39 = arith.constant 0 : index
    %c0_40 = arith.constant 0 : index
    %57 = vector.load %arg2[%c6_38, %c0_39, %c0_40] : memref<9x8x8xf32, #tpu.memory_space<vmem>>, vector<1x8x8xf32>
    %58 = vector.shape_cast %57 : vector<1x8x8xf32> to vector<8x8xf32>
    %cst_41 = arith.constant dense<0.000000e+00> : vector<8x256xf32>
    %59 = tpu.matmul %58, %56, %cst_41 {dimension_numbers = #tpu.dot_dimension_numbers<[1], [0], [0], [1], [0, 0, 1, 1], [], []>, precision = #tpu.contract_precision<fp32>} : vector<8x8xf32>, vector<8x256xf32>, vector<8x256xf32> -> vector<8x256xf32>
    %60 = arith.addf %51, %59 : vector<8x256xf32>
    %c240_i32 = arith.constant 240 : i32
    %61 = tpu.dynamic_rotate %1 by %c240_i32 dim 1 : vector<8x256xf32>, i32 -> vector<8x256xf32>
    %c7 = arith.constant 7 : index
    %c0_42 = arith.constant 0 : index
    %c0_43 = arith.constant 0 : index
    %62 = vector.load %arg1[%c7, %c0_42, %c0_43] : memref<9x1x256xf32, #tpu.memory_space<vmem>>, vector<1x1x256xf32>
    %63 = vector.shape_cast %62 : vector<1x1x256xf32> to vector<1x256xf32>
    %64 = vector.broadcast %63 : vector<1x256xf32> to vector<8x256xf32>
    %65 = arith.mulf %61, %64 : vector<8x256xf32>
    %c7_44 = arith.constant 7 : index
    %c0_45 = arith.constant 0 : index
    %c0_46 = arith.constant 0 : index
    %66 = vector.load %arg2[%c7_44, %c0_45, %c0_46] : memref<9x8x8xf32, #tpu.memory_space<vmem>>, vector<1x8x8xf32>
    %67 = vector.shape_cast %66 : vector<1x8x8xf32> to vector<8x8xf32>
    %cst_47 = arith.constant dense<0.000000e+00> : vector<8x256xf32>
    %68 = tpu.matmul %67, %65, %cst_47 {dimension_numbers = #tpu.dot_dimension_numbers<[1], [0], [0], [1], [0, 0, 1, 1], [], []>, precision = #tpu.contract_precision<fp32>} : vector<8x8xf32>, vector<8x256xf32>, vector<8x256xf32> -> vector<8x256xf32>
    %69 = arith.addf %60, %68 : vector<8x256xf32>
    %c239_i32 = arith.constant 239 : i32
    %70 = tpu.dynamic_rotate %1 by %c239_i32 dim 1 : vector<8x256xf32>, i32 -> vector<8x256xf32>
    %c8 = arith.constant 8 : index
    %c0_48 = arith.constant 0 : index
    %c0_49 = arith.constant 0 : index
    %71 = vector.load %arg1[%c8, %c0_48, %c0_49] : memref<9x1x256xf32, #tpu.memory_space<vmem>>, vector<1x1x256xf32>
    %72 = vector.shape_cast %71 : vector<1x1x256xf32> to vector<1x256xf32>
    %73 = vector.broadcast %72 : vector<1x256xf32> to vector<8x256xf32>
    %74 = arith.mulf %70, %73 : vector<8x256xf32>
    %c8_50 = arith.constant 8 : index
    %c0_51 = arith.constant 0 : index
    %c0_52 = arith.constant 0 : index
    %75 = vector.load %arg2[%c8_50, %c0_51, %c0_52] : memref<9x8x8xf32, #tpu.memory_space<vmem>>, vector<1x8x8xf32>
    %76 = vector.shape_cast %75 : vector<1x8x8xf32> to vector<8x8xf32>
    %cst_53 = arith.constant dense<0.000000e+00> : vector<8x256xf32>
    %77 = tpu.matmul %76, %74, %cst_53 {dimension_numbers = #tpu.dot_dimension_numbers<[1], [0], [0], [1], [0, 0, 1, 1], [], []>, precision = #tpu.contract_precision<fp32>} : vector<8x8xf32>, vector<8x256xf32>, vector<8x256xf32> -> vector<8x256xf32>
    %78 = arith.addf %69, %77 : vector<8x256xf32>
    %c0_54 = arith.constant 0 : index
    %c0_55 = arith.constant 0 : index
    %79 = vector.load %arg3[%c0_54, %c0_55] : memref<8x1xf32, #tpu.memory_space<vmem>>, vector<8x1xf32>
    %80 = vector.broadcast %79 : vector<8x1xf32> to vector<8x256xf32>
    %81 = arith.addf %78, %80 : vector<8x256xf32>
    %c0_56 = arith.constant 0 : index
    %82 = memref.load %arg4[%c0_56] : memref<1xf32, #tpu.memory_space<smem>>
    %cst_57 = arith.constant 0.000000e+00 : f32
    %83 = vector.broadcast %cst_57 : f32 to vector<8x256xf32>
    %84 = arith.cmpf ogt, %81, %83 : vector<8x256xf32>
    %85 = vector.broadcast %82 : f32 to vector<8x256xf32>
    %86 = arith.mulf %85, %81 : vector<8x256xf32>
    %87 = arith.select %84, %81, %86 : vector<8x256xi1>, vector<8x256xf32>
    %88 = arith.addf %1, %87 : vector<8x256xf32>
    %c0_58 = arith.constant 0 : index
    %c0_59 = arith.constant 0 : index
    %c0_60 = arith.constant 0 : index
    %89 = vector.load %arg6[%c0_58, %c0_59, %c0_60] : memref<1x8x256xf32, #tpu.memory_space<vmem>>, vector<1x8x256xf32>
    %90 = vector.shape_cast %89 : vector<1x8x256xf32> to vector<8x256xf32>
    %91 = vector.shape_cast %88 : vector<8x256xf32> to vector<1x8x256xf32>
    tpu.vector_store %arg6[%c0_58, %c0_59, %c0_60], %91 {strides = array<i32>} : memref<1x8x256xf32, #tpu.memory_space<vmem>>, vector<1x8x256xf32>,
    return
  }
  func.func @transform_0(%arg0: i32) -> (i32, i32, i32) {
    %c0_i32 = arith.constant 0 : i32
    %c0_i32_0 = arith.constant 0 : i32
    %c0_i32_1 = arith.constant 0 : i32
    %c0_i32_2 = arith.constant 0 : i32
    return %c0_i32, %c0_i32_0, %c0_i32_1 : i32, i32, i32
  }
  func.func @transform_1(%arg0: i32) -> (i32, i32, i32) {
    %c0_i32 = arith.constant 0 : i32
    %c0_i32_0 = arith.constant 0 : i32
    %c0_i32_1 = arith.constant 0 : i32
    %c0_i32_2 = arith.constant 0 : i32
    return %c0_i32, %c0_i32_0, %c0_i32_1 : i32, i32, i32
  }
  func.func @transform_2(%arg0: i32) -> (i32, i32) {
    %c0_i32 = arith.constant 0 : i32
    %c0_i32_0 = arith.constant 0 : i32
    %c0_i32_1 = arith.constant 0 : i32
    return %c0_i32, %c0_i32_0 : i32, i32
  }
  func.func @transform_3(%arg0: i32) -> i32 {
    %c0_i32 = arith.constant 0 : i32
    %c0_i32_0 = arith.constant 0 : i32
    return %c0_i32 : i32
  }
  func.func @transform_4(%arg0: i32) -> (i32, i32, i32) {
    %c0_i32 = arith.constant 0 : i32
    %c0_i32_0 = arith.constant 0 : i32
    %c0_i32_1 = arith.constant 0 : i32
    return %arg0, %c0_i32, %c0_i32_0 : i32, i32, i32
  }
  func.func @transform_5(%arg0: i32) -> (i32, i32, i32) {
    %c0_i32 = arith.constant 0 : i32
    %c0_i32_0 = arith.constant 0 : i32
    %c0_i32_1 = arith.constant 0 : i32
    return %arg0, %c0_i32, %c0_i32_0 : i32, i32, i32
  }
}

</mosaic_0001>

<llo_original>
// kernel: tpu_custom_call.1
$region0: #{tpu_custom_call.1}
  #allocation0 [shape = 'u32[]', space=smem, size = 0x4, offset = 0x4, fixed_abs, tag = 'smem constant byte address 0x4 - core index']
  #allocation1 [shape = 'u32[72,128]{1,0:T(1,128)}', space=vmem, size = 0x9000, scoped, tag = 'internal scratch']
  #allocation2 [shape = 'f32[1]{0:T(128)S(6)}', space=smem, size = 0x200, scoped, tag = 'scoped memory for tpu_custom_call.1']
  %s0 = inlined_call_operand.vmem [shape: f32[9,1,256], index: 0, kind: input, shape index: {}]
  %s1 = inlined_call_operand.vmem [shape: f32[9,8,8], index: 1, kind: input, shape index: {}]
  %s2 = inlined_call_operand.vmem [shape: f32[8,1], index: 2, kind: input, shape index: {}]
  %s3 = inlined_call_operand.<no memory space> [shape: f32[1], index: 3, kind: input, shape index: {}]
  %s4 = inlined_call_operand.vmem [shape: f32[2,8,256], index: 4, kind: input, shape index: {}]
  %s5 = inlined_call_operand.hbm [shape: f32[2,8,256], index: 5, kind: output, shape index: {}]
  %s6 = sld [smem:[#allocation0]]
  $region53: #{tpu_custom_call.1} parent=0
    _
  %s8 = ssub.s32 1, %s6
  %s9 = scalar_select 0, %s8, %s6
  %10 = sst [smem:[#allocation2]] %s3
  $region1: #{tpu_custom_call.1} parent=0
    #allocation3 [shape = 'u8[16384]{0}', space=vmem, size = 0x4000, scoped, tag = 'output window, operand 0']
    #allocation4 [shape = 's32[2]{0}', space=sflag, size = 0x8, scoped, tag = 'scoped memory for tpu_custom_call.1']
    %11 = vsyncpa [#allocation4], 0
    %s12 = scalar_lea.sflag [#allocation4], 1
    %13 = vsyncpa %s12, 0
    loop: start=0, step=1, limit=4
    $region2: #{tpu_custom_call.1} parent=1 // loop_pre_header
      _
    $region3: #{tpu_custom_call.1} parent=1 // loop_header
      %s15 = sphi 0, %s19
      %p16 = scmp.ge.s32.totalorder %s15, 4
      %s23 = sphi 0, %s23
      %s25 = sphi 0, %s23
      %s26 = sphi 0, %s25
      %s40 = sphi 0, %s26
      %s44 = sphi 0, %s44
      %s46 = sphi 0, %s44
      %s47 = sphi 0, %s46
      %s61 = sphi 0, %s47
      %s65 = sphi 0, %s65
      %s67 = sphi 0, %s65
      %s68 = sphi 0, %s67
      %s82 = sphi 0, %s68
      %s86 = sphi 0, %s86
      %s88 = sphi 0, %s86
      %s89 = sphi 0, %s88
      %s103 = sphi 0, %s89
      %s109 = sphi 0, %s111
      %s112 = sphi 0, %s109
      %s113 = sphi 0, %s112
      %s129 = sphi 0, %s113
      %s135 = sphi 0, %s137
      %s138 = sphi 0, %s135
      %s139 = sphi 0, %s138
      %s155 = sphi 0, %s139
    $region4: #{tpu_custom_call.1} parent=1 // loop_header_branch
      %18 = sbr.rel (%p16) target = $region8
    $region5: #{tpu_custom_call.1} parent=1 // loop_body
      %s20 = ssub.s32 %s15, 1
      %s21 = ssub.s32 %s15, 2
      %s22 = sadd.s32 %s15, 1
      %s24 = sadd.s32 %s23, 1
      %p27 = scmp.eq.s32.totalorder %s15, 1
      %p28 = scmp.ne.s32.totalorder %s23, %s25
      %p29 = scmp.eq.s32.totalorder %s15, 0
      %p30 = por %p28, %p29
      %p31 = scmp.ne.s32.totalorder %s23, %s25
      %p32 = scmp.eq.s32.totalorder %s20, 1
      %p33 = por %p31, %p32
      %p34 = scmp.ne.s32.totalorder %s25, %s26
      %p35 = scmp.eq.s32.totalorder %s20, 0
      %p36 = por %p34, %p35
      %p37 = scmp.ne.s32.totalorder %s25, %s26
      %p38 = scmp.eq.s32.totalorder %s21, 1
      %p39 = por %p37, %p38
      %p41 = scmp.ne.s32.totalorder %s26, %s40
      %p42 = scmp.eq.s32.totalorder %s21, 0
      %p43 = por %p41, %p42
      %s45 = sadd.s32 %s44, 1
      %p48 = scmp.eq.s32.totalorder %s15, 1
      %p49 = scmp.ne.s32.totalorder %s44, %s46
      %p50 = scmp.eq.s32.totalorder %s15, 0
      %p51 = por %p49, %p50
      %p52 = scmp.ne.s32.totalorder %s44, %s46
      %p53 = scmp.eq.s32.totalorder %s20, 1
      %p54 = por %p52, %p53
      %p55 = scmp.ne.s32.totalorder %s46, %s47
      %p56 = scmp.eq.s32.totalorder %s20, 0
      %p57 = por %p55, %p56
      %p58 = scmp.ne.s32.totalorder %s46, %s47
      %p59 = scmp.eq.s32.totalorder %s21, 1
      %p60 = por %p58, %p59
      %p62 = scmp.ne.s32.totalorder %s47, %s61
      %p63 = scmp.eq.s32.totalorder %s21, 0
      %p64 = por %p62, %p63
      %s66 = sadd.s32 %s65, 1
      %p69 = scmp.eq.s32.totalorder %s15, 1
      %p70 = scmp.ne.s32.totalorder %s65, %s67
      %p71 = scmp.eq.s32.totalorder %s15, 0
      %p72 = por %p70, %p71
      %p73 = scmp.ne.s32.totalorder %s65, %s67
      %p74 = scmp.eq.s32.totalorder %s20, 1
      %p75 = por %p73, %p74
      %p76 = scmp.ne.s32.totalorder %s67, %s68
      %p77 = scmp.eq.s32.totalorder %s20, 0
      %p78 = por %p76, %p77
      %p79 = scmp.ne.s32.totalorder %s67, %s68
      %p80 = scmp.eq.s32.totalorder %s21, 1
      %p81 = por %p79, %p80
      %p83 = scmp.ne.s32.totalorder %s68, %s82
      %p84 = scmp.eq.s32.totalorder %s21, 0
      %p85 = por %p83, %p84
      %s87 = sadd.s32 %s86, 1
      %p90 = scmp.eq.s32.totalorder %s15, 1
      %p91 = scmp.ne.s32.totalorder %s86, %s88
      %p92 = scmp.eq.s32.totalorder %s15, 0
      %p93 = por %p91, %p92
      %p94 = scmp.ne.s32.totalorder %s86, %s88
      %p95 = scmp.eq.s32.totalorder %s20, 1
      %p96 = por %p94, %p95
      %p97 = scmp.ne.s32.totalorder %s88, %s89
      %p98 = scmp.eq.s32.totalorder %s20, 0
      %p99 = por %p97, %p98
      %p100 = scmp.ne.s32.totalorder %s88, %s89
      %p101 = scmp.eq.s32.totalorder %s21, 1
      %p102 = por %p100, %p101
      %p104 = scmp.ne.s32.totalorder %s89, %s103
      %p105 = scmp.eq.s32.totalorder %s21, 0
      %p106 = por %p104, %p105
      %s107 = ssub.s32 %s15, %s22
      %p108 = scmp.eq.s32.totalorder %s107, 0
      %s110 = sadd.s32 %s109, 1
      %s111 = scalar_select %p108, %s109, %s110
      %p114 = pneg %p108
      %p115 = scmp.eq.s32.totalorder %s15, 1
      %p116 = por %p114, %p115
      %p117 = scmp.ne.s32.totalorder %s109, %s112
      %p118 = scmp.eq.s32.totalorder %s15, 0
      %p119 = por %p117, %p118
      %p120 = scmp.ne.s32.totalorder %s109, %s112
      %p121 = scmp.eq.s32.totalorder %s20, 1
      %p122 = por %p120, %p121
      %p123 = scmp.ne.s32.totalorder %s112, %s113
      %p124 = scmp.eq.s32.totalorder %s20, 0
      %p125 = por %p123, %p124
      %p126 = scmp.ne.s32.totalorder %s112, %s113
      %p127 = scmp.eq.s32.totalorder %s21, 1
      %p128 = por %p126, %p127
      %p130 = scmp.ne.s32.totalorder %s113, %s129
      %p131 = scmp.eq.s32.totalorder %s21, 0
      %p132 = por %p130, %p131
      %s133 = ssub.s32 %s15, %s22
      %p134 = scmp.eq.s32.totalorder %s133, 0
      %s136 = sadd.s32 %s135, 1
      %s137 = scalar_select %p134, %s135, %s136
      %p140 = pneg %p134
      %p141 = scmp.eq.s32.totalorder %s15, 1
      %p142 = por %p140, %p141
      %p143 = scmp.ne.s32.totalorder %s135, %s138
      %p144 = scmp.eq.s32.totalorder %s15, 0
      %p145 = por %p143, %p144
      %p146 = scmp.ne.s32.totalorder %s135, %s138
      %p147 = scmp.eq.s32.totalorder %s20, 1
      %p148 = por %p146, %p147
      %p149 = scmp.ne.s32.totalorder %s138, %s139
      %p150 = scmp.eq.s32.totalorder %s20, 0
      %p151 = por %p149, %p150
      %p152 = scmp.ne.s32.totalorder %s138, %s139
      %p153 = scmp.eq.s32.totalorder %s21, 1
      %p154 = por %p152, %p153
      %p156 = scmp.ne.s32.totalorder %s139, %s155
      %p157 = scmp.eq.s32.totalorder %s21, 0
      %p158 = por %p156, %p157
      %p159 = scmp.le.s32.totalorder 1, %s15
      %p160 = scmp.lt.s32.totalorder %s15, 3
      %p161 = pnand %p159, %p160
      %p162 = pneg %p161
      // Predicated region
      $region9: #{tpu_custom_call.1} parent=5 // pred_check
        _
      $region10: #{tpu_custom_call.1} parent=5 // pred_check_branch
        %164 = sbr.rel (%p161) target = $region12
      $region11: #{tpu_custom_call.1} parent=5 // pred_region
        %s165 = ssub.s32 %s15, 1
        // Predicated region
        $region13: #{tpu_custom_call.1} parent=11 // pred_check
          %p166 = pneg %p36
        $region14: #{tpu_custom_call.1} parent=11 // pred_check_branch
          %168 = sbr.rel (%p166) target = $region16
        $region15: #{tpu_custom_call.1} parent=11 // pred_region
          _
        $region16: #{tpu_custom_call.1} parent=11 // pred_fallthru
          _
        // Predicated region
        $region17: #{tpu_custom_call.1} parent=11 // pred_check
          %p169 = pneg %p57
        $region18: #{tpu_custom_call.1} parent=11 // pred_check_branch
          %171 = sbr.rel (%p169) target = $region20
        $region19: #{tpu_custom_call.1} parent=11 // pred_region
          _
        $region20: #{tpu_custom_call.1} parent=11 // pred_fallthru
          _
        // Predicated region
        $region21: #{tpu_custom_call.1} parent=11 // pred_check
          %p172 = pneg %p78
        $region22: #{tpu_custom_call.1} parent=11 // pred_check_branch
          %174 = sbr.rel (%p172) target = $region24
        $region23: #{tpu_custom_call.1} parent=11 // pred_region
          _
        $region24: #{tpu_custom_call.1} parent=11 // pred_fallthru
          _
        // Predicated region
        $region25: #{tpu_custom_call.1} parent=11 // pred_check
          %p175 = pneg %p99
        $region26: #{tpu_custom_call.1} parent=11 // pred_check_branch
          %177 = sbr.rel (%p175) target = $region28
        $region27: #{tpu_custom_call.1} parent=11 // pred_region
          _
        $region28: #{tpu_custom_call.1} parent=11 // pred_fallthru
          _
      $region12: #{tpu_custom_call.1} parent=5 // pred_fallthru
        _
      %p178 = scmp.lt.s32.totalorder %s15, 2
      // Predicated region
      $region29: #{tpu_custom_call.1} parent=5 // pred_check
        %p179 = pneg %p178
      $region30: #{tpu_custom_call.1} parent=5 // pred_check_branch
        %181 = sbr.rel (%p179) target = $region32
      $region31: #{tpu_custom_call.1} parent=5 // pred_region
        // Predicated region
        $region33: #{tpu_custom_call.1} parent=31 // pred_check
          %p182 = pneg %p119
        $region34: #{tpu_custom_call.1} parent=31 // pred_check_branch
          %184 = sbr.rel (%p182) target = $region36
        $region35: #{tpu_custom_call.1} parent=31 // pred_region
          %p185 = scmp.lt.s32.totalorder %s15, 1
          %s186 = scalar_select %p185, %s15, 1
          %s187 = smul.addr %s186, 2
          %s188 = smul.addr %s187, 8
          %s189 = scalar_lea.vmem %s4, %s188
        $region36: #{tpu_custom_call.1} parent=31 // pred_fallthru
          _
      $region32: #{tpu_custom_call.1} parent=5 // pred_fallthru
        _
      %p190 = scmp.le.s32.totalorder 1, %s15
      %p191 = scmp.lt.s32.totalorder %s15, 3
      %p192 = pnand %p190, %p191
      %p193 = pneg %p192
      // Predicated region
      $region37: #{tpu_custom_call.1} parent=5 // pred_check
        _
      $region38: #{tpu_custom_call.1} parent=5 // pred_check_branch
        %195 = sbr.rel (%p192) target = $region40
      $region39: #{tpu_custom_call.1} parent=5 // pred_region
        %s196 = ssub.s32 %s15, 1
        %p197 = pneg %p36
        %p198 = pneg %p33
        %p199 = pneg %p57
        %p200 = pneg %p54
        %p201 = pneg %p78
        %p202 = pneg %p75
        %p203 = pneg %p99
        %p204 = pneg %p96
        %p205 = scmp.lt.s32.totalorder %s20, 1
        %s206 = scalar_select %p205, %s20, 1
        %s207 = smul.addr %s206, 2
        %s208 = smul.addr %s207, 8
        %s209 = scalar_lea.vmem %s4, %s208
        %p210 = pneg %p125
        %p211 = pneg %p122
        %p212 = pneg %p151
        %p213 = pneg %p148
        %s214 = sand.u32 %s138, 1
        %s215 = scalar_lea.sflag [#allocation4], %s214
        %s216 = sand.u32 %s138, 1
        %s217 = smul.addr %s216, 16
        %s218 = scalar_lea.vmem [#allocation3], %s217
        %p219 = scmp.lt.s32.totalorder %s20, 1
        %s220 = scalar_select %p219, %s20, 1
        %s221 = smul.addr %s220, 2
        %s222 = smul.addr %s221, 8
        %s223 = scalar_lea.vmem %s4, %s222
        %v224 = vld [vmem:[%s223] sm:$0xff]
        %v225 = vld [vmem:[%s223 + $0x8] sm:$0xff]
        %226 = vrot.lane.b32.xlu0 %v224, 17
        %v227 = vpop.permute.xlu0 %226
        %228 = vrot.lane.b32.xlu0 %v225, 17
        %v229 = vpop.permute.xlu0 %228
        %v230 = vlaneseq
        %v231 = vand.u32 %v230, 127
        %vm232 = vcmp.lt.s32.totalorder %v231, 17
        %v233 = vsel %vm232, %v227, %v229
        %v234 = vsel %vm232, %v229, %v227
        %v235 = vld [vmem:[%s0] sm:$0x3]
        %v237 = vperm.slane %v235, 0
        %v238 = vperm.slane %v235, 1
        %v241 = vmul.f32 %v234, %v237
        %v242 = vmul.f32 %v233, %v238
        %v243 = vld [vmem:[%s1] sm:$0xff]
        %244 = vrot.lane.b32.xlu0 %v224, 16
        %v245 = vpop.permute.xlu0 %244
        %246 = vrot.lane.b32.xlu0 %v225, 16
        %v247 = vpop.permute.xlu0 %246
        %vm248 = vcmp.lt.s32.totalorder %v231, 16
        %v249 = vsel %vm248, %v245, %v247
        %v250 = vsel %vm248, %v247, %v245
        %s251 = scalar_lea.vmem %s0, 2
        %v252 = vld [vmem:[%s251] sm:$0x3]
        %v254 = vperm.slane %v252, 0
        %v255 = vperm.slane %v252, 1
        %v258 = vmul.f32 %v250, %v254
        %v259 = vmul.f32 %v249, %v255
        %s260 = scalar_lea.vmem %s1, 8
        %v261 = vld [vmem:[%s260] sm:$0xff]
        %vm262 = vcmask 64512
        %v264 = vsel %vm262, %v261, 0
        %266 = vmatpush.msra.mxu0 0.0
        %267 = vmatpush.msra.mxu0 0.0
        %268 = vmatpush.msra.mxu0 0.0
        %269 = vmatpush.msra.mxu0 0.0
        %270 = vmatpush.msra.mxu0 0.0
        %271 = vmatpush.msra.mxu0 0.0
        %272 = vmatpush.msra.mxu0 0.0
        %273 = vmatpush.msra.mxu0 0.0
        %274 = vmatpush.msra.mxu0 0.0
        %275 = vmatpush.msra.mxu0 0.0
        %276 = vmatpush.msra.mxu0 0.0
        %277 = vmatpush.msra.mxu0 0.0
        %278 = vmatpush.msra.mxu0 0.0
        %279 = vmatpush.msra.mxu0 0.0
        %280 = vmatpush.msra.mxu0 0.0
        %v281 = vand.u32 %v258, 4294901760
        %282 = vmatpush.msra.mxu0 %v281
        %v283 = vand.u32 %v264, 4294901760
        %v284 = vsub.f32 %v264, %v283
        %v285 = vand.u32 %v284, 4294901760
        %v286 = vsub.f32 %v284, %v285
        %v287 = vand.u32 %v286, 4294901760
        %288 = vmatmul.f32.gmra.mxu0 %v287
        %v289 = vpop.f32.mrf.mxu0
        %v290 = vadd.f32 0.0, %v289
        %291 = vdwg.mxu0
        %292 = vmatpush.msra.mxu0 0.0
        %293 = vmatpush.msra.mxu0 0.0
        %294 = vmatpush.msra.mxu0 0.0
        %295 = vmatpush.msra.mxu0 0.0
        %296 = vmatpush.msra.mxu0 0.0
        %297 = vmatpush.msra.mxu0 0.0
        %298 = vmatpush.msra.mxu0 0.0
        %299 = vmatpush.msra.mxu0 0.0
        %300 = vmatpush.msra.mxu0 0.0
        %301 = vmatpush.msra.mxu0 0.0
        %302 = vmatpush.msra.mxu0 0.0
        %303 = vmatpush.msra.mxu0 0.0
        %304 = vmatpush.msra.mxu0 0.0
        %305 = vmatpush.msra.mxu0 0.0
        %306 = vmatpush.msra.mxu0 0.0
        %v307 = vand.u32 %v258, 4294901760
        %v308 = vsub.f32 %v258, %v307
        %v309 = vand.u32 %v308, 4294901760
        %v310 = vsub.f32 %v308, %v309
        %v311 = vand.u32 %v310, 4294901760
        %312 = vmatpush.msra.mxu0 %v311
        %v313 = vand.u32 %v264, 4294901760
        %314 = vmatmul.f32.gmra.mxu0 %v313
        %v315 = vpop.f32.mrf.mxu0
        %v316 = vadd.f32 %v290, %v315
        %317 = vdwg.mxu0
        %318 = vmatpush.msra.mxu0 0.0
        %319 = vmatpush.msra.mxu0 0.0
        %320 = vmatpush.msra.mxu0 0.0
        %321 = vmatpush.msra.mxu0 0.0
        %322 = vmatpush.msra.mxu0 0.0
        %323 = vmatpush.msra.mxu0 0.0
        %324 = vmatpush.msra.mxu0 0.0
        %325 = vmatpush.msra.mxu0 0.0
        %326 = vmatpush.msra.mxu0 0.0
        %327 = vmatpush.msra.mxu0 0.0
        %328 = vmatpush.msra.mxu0 0.0
        %329 = vmatpush.msra.mxu0 0.0
        %330 = vmatpush.msra.mxu0 0.0
        %331 = vmatpush.msra.mxu0 0.0
        %332 = vmatpush.msra.mxu0 0.0
        %v333 = vand.u32 %v258, 4294901760
        %v334 = vsub.f32 %v258, %v333
        %335 = vmatpush.msra.mxu0 %v334
        %v336 = vand.u32 %v264, 4294901760
        %v337 = vsub.f32 %v264, %v336
        %338 = vmatmul.f32.gmra.mxu0 %v337
        %v339 = vpop.f32.mrf.mxu0
        %v340 = vadd.f32 %v316, %v339
        %341 = vdwg.mxu0
        %342 = vmatpush.msra.mxu0 0.0
        %343 = vmatpush.msra.mxu0 0.0
        %344 = vmatpush.msra.mxu0 0.0
        %345 = vmatpush.msra.mxu0 0.0
        %346 = vmatpush.msra.mxu0 0.0
        %347 = vmatpush.msra.mxu0 0.0
        %348 = vmatpush.msra.mxu0 0.0
        %349 = vmatpush.msra.mxu0 0.0
        %350 = vmatpush.msra.mxu0 0.0
        %351 = vmatpush.msra.mxu0 0.0
        %352 = vmatpush.msra.mxu0 0.0
        %353 = vmatpush.msra.mxu0 0.0
        %354 = vmatpush.msra.mxu0 0.0
        %355 = vmatpush.msra.mxu0 0.0
        %356 = vmatpush.msra.mxu0 0.0
        %v357 = vand.u32 %v258, 4294901760
        %358 = vmatpush.msra.mxu0 %v357
        %v359 = vand.u32 %v264, 4294901760
        %v360 = vsub.f32 %v264, %v359
        %v361 = vand.u32 %v360, 4294901760
        %362 = vmatmul.f32.gmra.mxu0 %v361
        %v363 = vpop.f32.mrf.mxu0
        %v364 = vadd.f32 %v340, %v363
        %365 = vdwg.mxu0
        %366 = vmatpush.msra.mxu0 0.0
        %367 = vmatpush.msra.mxu0 0.0
        %368 = vmatpush.msra.mxu0 0.0
        %369 = vmatpush.msra.mxu0 0.0
        %370 = vmatpush.msra.mxu0 0.0
        %371 = vmatpush.msra.mxu0 0.0
        %372 = vmatpush.msra.mxu0 0.0
        %373 = vmatpush.msra.mxu0 0.0
        %374 = vmatpush.msra.mxu0 0.0
        %375 = vmatpush.msra.mxu0 0.0
        %376 = vmatpush.msra.mxu0 0.0
        %377 = vmatpush.msra.mxu0 0.0
        %378 = vmatpush.msra.mxu0 0.0
        %379 = vmatpush.msra.mxu0 0.0
        %380 = vmatpush.msra.mxu0 0.0
        %v381 = vand.u32 %v258, 4294901760
        %v382 = vsub.f32 %v258, %v381
        %v383 = vand.u32 %v382, 4294901760
        %384 = vmatpush.msra.mxu0 %v383
        %v385 = vand.u32 %v264, 4294901760
        %386 = vmatmul.f32.gmra.mxu0 %v385
        %v387 = vpop.f32.mrf.mxu0
        %v388 = vadd.f32 %v364, %v387
        %389 = vdwg.mxu0
        %390 = vmatpush.msra.mxu0 0.0
        %391 = vmatpush.msra.mxu0 0.0
        %392 = vmatpush.msra.mxu0 0.0
        %393 = vmatpush.msra.mxu0 0.0
        %394 = vmatpush.msra.mxu0 0.0
        %395 = vmatpush.msra.mxu0 0.0
        %396 = vmatpush.msra.mxu0 0.0
        %397 = vmatpush.msra.mxu0 0.0
        %398 = vmatpush.msra.mxu0 0.0
        %399 = vmatpush.msra.mxu0 0.0
        %400 = vmatpush.msra.mxu0 0.0
        %401 = vmatpush.msra.mxu0 0.0
        %402 = vmatpush.msra.mxu0 0.0
        %403 = vmatpush.msra.mxu0 0.0
        %404 = vmatpush.msra.mxu0 0.0
        %v405 = vand.u32 %v258, 4294901760
        %406 = vmatpush.msra.mxu0 %v405
        %v407 = vand.u32 %v264, 4294901760
        %408 = vmatmul.f32.gmra.mxu0 %v407
        %v409 = vpop.f32.mrf.mxu0
        %v410 = vadd.f32 %v388, %v409
        %411 = vdwg.mxu0
        %412 = vmatpush.msra.mxu0 0.0
        %413 = vmatpush.msra.mxu0 0.0
        %414 = vmatpush.msra.mxu0 0.0
        %415 = vmatpush.msra.mxu0 0.0
        %416 = vmatpush.msra.mxu0 0.0
        %417 = vmatpush.msra.mxu0 0.0
        %418 = vmatpush.msra.mxu0 0.0
        %419 = vmatpush.msra.mxu0 0.0
        %420 = vmatpush.msra.mxu0 0.0
        %421 = vmatpush.msra.mxu0 0.0
        %422 = vmatpush.msra.mxu0 0.0
        %423 = vmatpush.msra.mxu0 0.0
        %424 = vmatpush.msra.mxu0 0.0
        %425 = vmatpush.msra.mxu0 0.0
        %426 = vmatpush.msra.mxu0 0.0
        %v427 = vand.u32 %v259, 4294901760
        %428 = vmatpush.msra.mxu0 %v427
        %v429 = vand.u32 %v264, 4294901760
        %v430 = vsub.f32 %v264, %v429
        %v431 = vand.u32 %v430, 4294901760
        %v432 = vsub.f32 %v430, %v431
        %v433 = vand.u32 %v432, 4294901760
        %434 = vmatmul.f32.gmra.mxu0 %v433
        %v435 = vpop.f32.mrf.mxu0
        %v436 = vadd.f32 0.0, %v435
        %437 = vdwg.mxu0
        %438 = vmatpush.msra.mxu0 0.0
        %439 = vmatpush.msra.mxu0 0.0
        %440 = vmatpush.msra.mxu0 0.0
        %441 = vmatpush.msra.mxu0 0.0
        %442 = vmatpush.msra.mxu0 0.0
        %443 = vmatpush.msra.mxu0 0.0
        %444 = vmatpush.msra.mxu0 0.0
        %445 = vmatpush.msra.mxu0 0.0
        %446 = vmatpush.msra.mxu0 0.0
        %447 = vmatpush.msra.mxu0 0.0
        %448 = vmatpush.msra.mxu0 0.0
        %449 = vmatpush.msra.mxu0 0.0
        %450 = vmatpush.msra.mxu0 0.0
        %451 = vmatpush.msra.mxu0 0.0
        %452 = vmatpush.msra.mxu0 0.0
        %v453 = vand.u32 %v259, 4294901760
        %v454 = vsub.f32 %v259, %v453
        %v455 = vand.u32 %v454, 4294901760
        %v456 = vsub.f32 %v454, %v455
        %v457 = vand.u32 %v456, 4294901760
        %458 = vmatpush.msra.mxu0 %v457
        %v459 = vand.u32 %v264, 4294901760
        %460 = vmatmul.f32.gmra.mxu0 %v459
        %v461 = vpop.f32.mrf.mxu0
        %v462 = vadd.f32 %v436, %v461
        %463 = vdwg.mxu0
        %464 = vmatpush.msra.mxu0 0.0
        %465 = vmatpush.msra.mxu0 0.0
        %466 = vmatpush.msra.mxu0 0.0
        %467 = vmatpush.msra.mxu0 0.0
        %468 = vmatpush.msra.mxu0 0.0
        %469 = vmatpush.msra.mxu0 0.0
        %470 = vmatpush.msra.mxu0 0.0
        %471 = vmatpush.msra.mxu0 0.0
        %472 = vmatpush.msra.mxu0 0.0
        %473 = vmatpush.msra.mxu0 0.0
        %474 = vmatpush.msra.mxu0 0.0
        %475 = vmatpush.msra.mxu0 0.0
        %476 = vmatpush.msra.mxu0 0.0
        %477 = vmatpush.msra.mxu0 0.0
        %478 = vmatpush.msra.mxu0 0.0
        %v479 = vand.u32 %v259, 4294901760
        %v480 = vsub.f32 %v259, %v479
        %481 = vmatpush.msra.mxu0 %v480
        %v482 = vand.u32 %v264, 4294901760
        %v483 = vsub.f32 %v264, %v482
        %484 = vmatmul.f32.gmra.mxu0 %v483
        %v485 = vpop.f32.mrf.mxu0
        %v486 = vadd.f32 %v462, %v485
        %487 = vdwg.mxu0
        %488 = vmatpush.msra.mxu0 0.0
        %489 = vmatpush.msra.mxu0 0.0
        %490 = vmatpush.msra.mxu0 0.0
        %491 = vmatpush.msra.mxu0 0.0
        %492 = vmatpush.msra.mxu0 0.0
        %493 = vmatpush.msra.mxu0 0.0
        %494 = vmatpush.msra.mxu0 0.0
        %495 = vmatpush.msra.mxu0 0.0
        %496 = vmatpush.msra.mxu0 0.0
        %497 = vmatpush.msra.mxu0 0.0
        %498 = vmatpush.msra.mxu0 0.0
        %499 = vmatpush.msra.mxu0 0.0
        %500 = vmatpush.msra.mxu0 0.0
        %501 = vmatpush.msra.mxu0 0.0
        %502 = vmatpush.msra.mxu0 0.0
        %v503 = vand.u32 %v259, 4294901760
        %504 = vmatpush.msra.mxu0 %v503
        %v505 = vand.u32 %v264, 4294901760
        %v506 = vsub.f32 %v264, %v505
        %v507 = vand.u32 %v506, 4294901760
        %508 = vmatmul.f32.gmra.mxu0 %v507
        %v509 = vpop.f32.mrf.mxu0
        %v510 = vadd.f32 %v486, %v509
        %511 = vdwg.mxu0
        %512 = vmatpush.msra.mxu0 0.0
        %513 = vmatpush.msra.mxu0 0.0
        %514 = vmatpush.msra.mxu0 0.0
        %515 = vmatpush.msra.mxu0 0.0
        %516 = vmatpush.msra.mxu0 0.0
        %517 = vmatpush.msra.mxu0 0.0
        %518 = vmatpush.msra.mxu0 0.0
        %519 = vmatpush.msra.mxu0 0.0
        %520 = vmatpush.msra.mxu0 0.0
        %521 = vmatpush.msra.mxu0 0.0
        %522 = vmatpush.msra.mxu0 0.0
        %523 = vmatpush.msra.mxu0 0.0
        %524 = vmatpush.msra.mxu0 0.0
        %525 = vmatpush.msra.mxu0 0.0
        %526 = vmatpush.msra.mxu0 0.0
        %v527 = vand.u32 %v259, 4294901760
        %v528 = vsub.f32 %v259, %v527
        %v529 = vand.u32 %v528, 4294901760
        %530 = vmatpush.msra.mxu0 %v529
        %v531 = vand.u32 %v264, 4294901760
        %532 = vmatmul.f32.gmra.mxu0 %v531
        %v533 = vpop.f32.mrf.mxu0
        %v534 = vadd.f32 %v510, %v533
        %535 = vdwg.mxu0
        %536 = vmatpush.msra.mxu0 0.0
        %537 = vmatpush.msra.mxu0 0.0
        %538 = vmatpush.msra.mxu0 0.0
        %539 = vmatpush.msra.mxu0 0.0
        %540 = vmatpush.msra.mxu0 0.0
        %541 = vmatpush.msra.mxu0 0.0
        %542 = vmatpush.msra.mxu0 0.0
        %543 = vmatpush.msra.mxu0 0.0
        %544 = vmatpush.msra.mxu0 0.0
        %545 = vmatpush.msra.mxu0 0.0
        %546 = vmatpush.msra.mxu0 0.0
        %547 = vmatpush.msra.mxu0 0.0
        %548 = vmatpush.msra.mxu0 0.0
        %549 = vmatpush.msra.mxu0 0.0
        %550 = vmatpush.msra.mxu0 0.0
        %v551 = vand.u32 %v259, 4294901760
        %552 = vmatpush.msra.mxu0 %v551
        %v553 = vand.u32 %v264, 4294901760
        %554 = vmatmul.f32.gmra.mxu0 %v553
        %v555 = vpop.f32.mrf.mxu0
        %v556 = vadd.f32 %v534, %v555
        %557 = vdwg.mxu0
        %v559 = vsel %vm262, %v243, 0
        %561 = vmatpush.msra.mxu0 0.0
        %562 = vmatpush.msra.mxu0 0.0
        %563 = vmatpush.msra.mxu0 0.0
        %564 = vmatpush.msra.mxu0 0.0
        %565 = vmatpush.msra.mxu0 0.0
        %566 = vmatpush.msra.mxu0 0.0
        %567 = vmatpush.msra.mxu0 0.0
        %568 = vmatpush.msra.mxu0 0.0
        %569 = vmatpush.msra.mxu0 0.0
        %570 = vmatpush.msra.mxu0 0.0
        %571 = vmatpush.msra.mxu0 0.0
        %572 = vmatpush.msra.mxu0 0.0
        %573 = vmatpush.msra.mxu0 0.0
        %574 = vmatpush.msra.mxu0 0.0
        %575 = vmatpush.msra.mxu0 0.0
        %v576 = vand.u32 %v241, 4294901760
        %577 = vmatpush.msra.mxu0 %v576
        %v578 = vand.u32 %v559, 4294901760
        %v579 = vsub.f32 %v559, %v578
        %v580 = vand.u32 %v579, 4294901760
        %v581 = vsub.f32 %v579, %v580
        %v582 = vand.u32 %v581, 4294901760
        %583 = vmatmul.f32.gmra.mxu0 %v582
        %v584 = vpop.f32.mrf.mxu0
        %v585 = vadd.f32 %v410, %v584
        %586 = vdwg.mxu0
        %587 = vmatpush.msra.mxu0 0.0
        %588 = vmatpush.msra.mxu0 0.0
        %589 = vmatpush.msra.mxu0 0.0
        %590 = vmatpush.msra.mxu0 0.0
        %591 = vmatpush.msra.mxu0 0.0
        %592 = vmatpush.msra.mxu0 0.0
        %593 = vmatpush.msra.mxu0 0.0
        %594 = vmatpush.msra.mxu0 0.0
        %595 = vmatpush.msra.mxu0 0.0
        %596 = vmatpush.msra.mxu0 0.0
        %597 = vmatpush.msra.mxu0 0.0
        %598 = vmatpush.msra.mxu0 0.0
        %599 = vmatpush.msra.mxu0 0.0
        %600 = vmatpush.msra.mxu0 0.0
        %601 = vmatpush.msra.mxu0 0.0
        %v602 = vand.u32 %v241, 4294901760
        %v603 = vsub.f32 %v241, %v602
        %v604 = vand.u32 %v603, 4294901760
        %v605 = vsub.f32 %v603, %v604
        %v606 = vand.u32 %v605, 4294901760
        %607 = vmatpush.msra.mxu0 %v606
        %v608 = vand.u32 %v559, 4294901760
        %609 = vmatmul.f32.gmra.mxu0 %v608
        %v610 = vpop.f32.mrf.mxu0
        %v611 = vadd.f32 %v585, %v610
        %612 = vdwg.mxu0
        %613 = vmatpush.msra.mxu0 0.0
        %614 = vmatpush.msra.mxu0 0.0
        %615 = vmatpush.msra.mxu0 0.0
        %616 = vmatpush.msra.mxu0 0.0
        %617 = vmatpush.msra.mxu0 0.0
        %618 = vmatpush.msra.mxu0 0.0
        %619 = vmatpush.msra.mxu0 0.0
        %620 = vmatpush.msra.mxu0 0.0
        %621 = vmatpush.msra.mxu0 0.0
        %622 = vmatpush.msra.mxu0 0.0
        %623 = vmatpush.msra.mxu0 0.0
        %624 = vmatpush.msra.mxu0 0.0
        %625 = vmatpush.msra.mxu0 0.0
        %626 = vmatpush.msra.mxu0 0.0
        %627 = vmatpush.msra.mxu0 0.0
        %v628 = vand.u32 %v241, 4294901760
        %v629 = vsub.f32 %v241, %v628
        %630 = vmatpush.msra.mxu0 %v629
        %v631 = vand.u32 %v559, 4294901760
        %v632 = vsub.f32 %v559, %v631
        %633 = vmatmul.f32.gmra.mxu0 %v632
        %v634 = vpop.f32.mrf.mxu0
        %v635 = vadd.f32 %v611, %v634
        %636 = vdwg.mxu0
        %637 = vmatpush.msra.mxu0 0.0
        %638 = vmatpush.msra.mxu0 0.0
        %639 = vmatpush.msra.mxu0 0.0
        %640 = vmatpush.msra.mxu0 0.0
        %641 = vmatpush.msra.mxu0 0.0
        %642 = vmatpush.msra.mxu0 0.0
        %643 = vmatpush.msra.mxu0 0.0
        %644 = vmatpush.msra.mxu0 0.0
        %645 = vmatpush.msra.mxu0 0.0
        %646 = vmatpush.msra.mxu0 0.0
        %647 = vmatpush.msra.mxu0 0.0
        %648 = vmatpush.msra.mxu0 0.0
        %649 = vmatpush.msra.mxu0 0.0
        %650 = vmatpush.msra.mxu0 0.0
        %651 = vmatpush.msra.mxu0 0.0
        %v652 = vand.u32 %v241, 4294901760
        %653 = vmatpush.msra.mxu0 %v652
        %v654 = vand.u32 %v559, 4294901760
        %v655 = vsub.f32 %v559, %v654
        %v656 = vand.u32 %v655, 4294901760
        %657 = vmatmul.f32.gmra.mxu0 %v656
        %v658 = vpop.f32.mrf.mxu0
        %v659 = vadd.f32 %v635, %v658
        %660 = vdwg.mxu0
        %661 = vmatpush.msra.mxu0 0.0
        %662 = vmatpush.msra.mxu0 0.0
        %663 = vmatpush.msra.mxu0 0.0
        %664 = vmatpush.msra.mxu0 0.0
        %665 = vmatpush.msra.mxu0 0.0
        %666 = vmatpush.msra.mxu0 0.0
        %667 = vmatpush.msra.mxu0 0.0
        %668 = vmatpush.msra.mxu0 0.0
        %669 = vmatpush.msra.mxu0 0.0
        %670 = vmatpush.msra.mxu0 0.0
        %671 = vmatpush.msra.mxu0 0.0
        %672 = vmatpush.msra.mxu0 0.0
        %673 = vmatpush.msra.mxu0 0.0
        %674 = vmatpush.msra.mxu0 0.0
        %675 = vmatpush.msra.mxu0 0.0
        %v676 = vand.u32 %v241, 4294901760
        %v677 = vsub.f32 %v241, %v676
        %v678 = vand.u32 %v677, 4294901760
        %679 = vmatpush.msra.mxu0 %v678
        %v680 = vand.u32 %v559, 4294901760
        %681 = vmatmul.f32.gmra.mxu0 %v680
        %v682 = vpop.f32.mrf.mxu0
        %v683 = vadd.f32 %v659, %v682
        %684 = vdwg.mxu0
        %685 = vmatpush.msra.mxu0 0.0
        %686 = vmatpush.msra.mxu0 0.0
        %687 = vmatpush.msra.mxu0 0.0
        %688 = vmatpush.msra.mxu0 0.0
        %689 = vmatpush.msra.mxu0 0.0
        %690 = vmatpush.msra.mxu0 0.0
        %691 = vmatpush.msra.mxu0 0.0
        %692 = vmatpush.msra.mxu0 0.0
        %693 = vmatpush.msra.mxu0 0.0
        %694 = vmatpush.msra.mxu0 0.0
        %695 = vmatpush.msra.mxu0 0.0
        %696 = vmatpush.msra.mxu0 0.0
        %697 = vmatpush.msra.mxu0 0.0
        %698 = vmatpush.msra.mxu0 0.0
        %699 = vmatpush.msra.mxu0 0.0
        %v700 = vand.u32 %v241, 4294901760
        %701 = vmatpush.msra.mxu0 %v700
        %v702 = vand.u32 %v559, 4294901760
        %703 = vmatmul.f32.gmra.mxu0 %v702
        %v704 = vpop.f32.mrf.mxu0
        %v705 = vadd.f32 %v683, %v704
        %706 = vdwg.mxu0
        %707 = vmatpush.msra.mxu0 0.0
        %708 = vmatpush.msra.mxu0 0.0
        %709 = vmatpush.msra.mxu0 0.0
        %710 = vmatpush.msra.mxu0 0.0
        %711 = vmatpush.msra.mxu0 0.0
        %712 = vmatpush.msra.mxu0 0.0
        %713 = vmatpush.msra.mxu0 0.0
        %714 = vmatpush.msra.mxu0 0.0
        %715 = vmatpush.msra.mxu0 0.0
        %716 = vmatpush.msra.mxu0 0.0
        %717 = vmatpush.msra.mxu0 0.0
        %718 = vmatpush.msra.mxu0 0.0
        %719 = vmatpush.msra.mxu0 0.0
        %720 = vmatpush.msra.mxu0 0.0
        %721 = vmatpush.msra.mxu0 0.0
        %v722 = vand.u32 %v242, 4294901760
        %723 = vmatpush.msra.mxu0 %v722
        %v724 = vand.u32 %v559, 4294901760
        %v725 = vsub.f32 %v559, %v724
        %v726 = vand.u32 %v725, 4294901760
        %v727 = vsub.f32 %v725, %v726
        %v728 = vand.u32 %v727, 4294901760
        %729 = vmatmul.f32.gmra.mxu0 %v728
        %v730 = vpop.f32.mrf.mxu0
        %v731 = vadd.f32 %v556, %v730
        %732 = vdwg.mxu0
        %733 = vmatpush.msra.mxu0 0.0
        %734 = vmatpush.msra.mxu0 0.0
        %735 = vmatpush.msra.mxu0 0.0
        %736 = vmatpush.msra.mxu0 0.0
        %737 = vmatpush.msra.mxu0 0.0
        %738 = vmatpush.msra.mxu0 0.0
        %739 = vmatpush.msra.mxu0 0.0
        %740 = vmatpush.msra.mxu0 0.0
        %741 = vmatpush.msra.mxu0 0.0
        %742 = vmatpush.msra.mxu0 0.0
        %743 = vmatpush.msra.mxu0 0.0
        %744 = vmatpush.msra.mxu0 0.0
        %745 = vmatpush.msra.mxu0 0.0
        %746 = vmatpush.msra.mxu0 0.0
        %747 = vmatpush.msra.mxu0 0.0
        %v748 = vand.u32 %v242, 4294901760
        %v749 = vsub.f32 %v242, %v748
        %v750 = vand.u32 %v749, 4294901760
        %v751 = vsub.f32 %v749, %v750
        %v752 = vand.u32 %v751, 4294901760
        %753 = vmatpush.msra.mxu0 %v752
        %v754 = vand.u32 %v559, 4294901760
        %755 = vmatmul.f32.gmra.mxu0 %v754
        %v756 = vpop.f32.mrf.mxu0
        %v757 = vadd.f32 %v731, %v756
        %758 = vdwg.mxu0
        %759 = vmatpush.msra.mxu0 0.0
        %760 = vmatpush.msra.mxu0 0.0
        %761 = vmatpush.msra.mxu0 0.0
        %762 = vmatpush.msra.mxu0 0.0
        %763 = vmatpush.msra.mxu0 0.0
        %764 = vmatpush.msra.mxu0 0.0
        %765 = vmatpush.msra.mxu0 0.0
        %766 = vmatpush.msra.mxu0 0.0
        %767 = vmatpush.msra.mxu0 0.0
        %768 = vmatpush.msra.mxu0 0.0
        %769 = vmatpush.msra.mxu0 0.0
        %770 = vmatpush.msra.mxu0 0.0
        %771 = vmatpush.msra.mxu0 0.0
        %772 = vmatpush.msra.mxu0 0.0
        %773 = vmatpush.msra.mxu0 0.0
        %v774 = vand.u32 %v242, 4294901760
        %v775 = vsub.f32 %v242, %v774
        %776 = vmatpush.msra.mxu0 %v775
        %v777 = vand.u32 %v559, 4294901760
        %v778 = vsub.f32 %v559, %v777
        %779 = vmatmul.f32.gmra.mxu0 %v778
        %v780 = vpop.f32.mrf.mxu0
        %v781 = vadd.f32 %v757, %v780
        %782 = vdwg.mxu0
        %783 = vmatpush.msra.mxu0 0.0
        %784 = vmatpush.msra.mxu0 0.0
        %785 = vmatpush.msra.mxu0 0.0
        %786 = vmatpush.msra.mxu0 0.0
        %787 = vmatpush.msra.mxu0 0.0
        %788 = vmatpush.msra.mxu0 0.0
        %789 = vmatpush.msra.mxu0 0.0
        %790 = vmatpush.msra.mxu0 0.0
        %791 = vmatpush.msra.mxu0 0.0
        %792 = vmatpush.msra.mxu0 0.0
        %793 = vmatpush.msra.mxu0 0.0
        %794 = vmatpush.msra.mxu0 0.0
        %795 = vmatpush.msra.mxu0 0.0
        %796 = vmatpush.msra.mxu0 0.0
        %797 = vmatpush.msra.mxu0 0.0
        %v798 = vand.u32 %v242, 4294901760
        %799 = vmatpush.msra.mxu0 %v798
        %v800 = vand.u32 %v559, 4294901760
        %v801 = vsub.f32 %v559, %v800
        %v802 = vand.u32 %v801, 4294901760
        %803 = vmatmul.f32.gmra.mxu0 %v802
        %v804 = vpop.f32.mrf.mxu0
        %v805 = vadd.f32 %v781, %v804
        %806 = vdwg.mxu0
        %807 = vmatpush.msra.mxu0 0.0
        %808 = vmatpush.msra.mxu0 0.0
        %809 = vmatpush.msra.mxu0 0.0
        %810 = vmatpush.msra.mxu0 0.0
        %811 = vmatpush.msra.mxu0 0.0
        %812 = vmatpush.msra.mxu0 0.0
        %813 = vmatpush.msra.mxu0 0.0
        %814 = vmatpush.msra.mxu0 0.0
        %815 = vmatpush.msra.mxu0 0.0
        %816 = vmatpush.msra.mxu0 0.0
        %817 = vmatpush.msra.mxu0 0.0
        %818 = vmatpush.msra.mxu0 0.0
        %819 = vmatpush.msra.mxu0 0.0
        %820 = vmatpush.msra.mxu0 0.0
        %821 = vmatpush.msra.mxu0 0.0
        %v822 = vand.u32 %v242, 4294901760
        %v823 = vsub.f32 %v242, %v822
        %v824 = vand.u32 %v823, 4294901760
        %825 = vmatpush.msra.mxu0 %v824
        %v826 = vand.u32 %v559, 4294901760
        %827 = vmatmul.f32.gmra.mxu0 %v826
        %v828 = vpop.f32.mrf.mxu0
        %v829 = vadd.f32 %v805, %v828
        %830 = vdwg.mxu0
        %831 = vmatpush.msra.mxu0 0.0
        %832 = vmatpush.msra.mxu0 0.0
        %833 = vmatpush.msra.mxu0 0.0
        %834 = vmatpush.msra.mxu0 0.0
        %835 = vmatpush.msra.mxu0 0.0
        %836 = vmatpush.msra.mxu0 0.0
        %837 = vmatpush.msra.mxu0 0.0
        %838 = vmatpush.msra.mxu0 0.0
        %839 = vmatpush.msra.mxu0 0.0
        %840 = vmatpush.msra.mxu0 0.0
        %841 = vmatpush.msra.mxu0 0.0
        %842 = vmatpush.msra.mxu0 0.0
        %843 = vmatpush.msra.mxu0 0.0
        %844 = vmatpush.msra.mxu0 0.0
        %845 = vmatpush.msra.mxu0 0.0
        %v846 = vand.u32 %v242, 4294901760
        %847 = vmatpush.msra.mxu0 %v846
        %v848 = vand.u32 %v559, 4294901760
        %849 = vmatmul.f32.gmra.mxu0 %v848
        %v850 = vpop.f32.mrf.mxu0
        %v851 = vadd.f32 %v829, %v850
        %852 = vdwg.mxu0
        %853 = vrot.lane.b32.xlu0 %v224, 15
        %v854 = vpop.permute.xlu0 %853
        %855 = vrot.lane.b32.xlu0 %v225, 15
        %v856 = vpop.permute.xlu0 %855
        %vm857 = vcmp.lt.s32.totalorder %v231, 15
        %v858 = vsel %vm857, %v854, %v856
        %v859 = vsel %vm857, %v856, %v854
        %s860 = scalar_lea.vmem %s0, 4
        %v861 = vld [vmem:[%s860] sm:$0x3]
        %v863 = vperm.slane %v861, 0
        %v864 = vperm.slane %v861, 1
        %v867 = vmul.f32 %v859, %v863
        %v868 = vmul.f32 %v858, %v864
        %s869 = scalar_lea.vmem %s1, 16
        %v870 = vld [vmem:[%s869] sm:$0xff]
        %v872 = vsel %vm262, %v870, 0
        %874 = vmatpush.msra.mxu0 0.0
        %875 = vmatpush.msra.mxu0 0.0
        %876 = vmatpush.msra.mxu0 0.0
        %877 = vmatpush.msra.mxu0 0.0
        %878 = vmatpush.msra.mxu0 0.0
        %879 = vmatpush.msra.mxu0 0.0
        %880 = vmatpush.msra.mxu0 0.0
        %881 = vmatpush.msra.mxu0 0.0
        %882 = vmatpush.msra.mxu0 0.0
        %883 = vmatpush.msra.mxu0 0.0
        %884 = vmatpush.msra.mxu0 0.0
        %885 = vmatpush.msra.mxu0 0.0
        %886 = vmatpush.msra.mxu0 0.0
        %887 = vmatpush.msra.mxu0 0.0
        %888 = vmatpush.msra.mxu0 0.0
        %v889 = vand.u32 %v867, 4294901760
        %890 = vmatpush.msra.mxu0 %v889
        %v891 = vand.u32 %v872, 4294901760
        %v892 = vsub.f32 %v872, %v891
        %v893 = vand.u32 %v892, 4294901760
        %v894 = vsub.f32 %v892, %v893
        %v895 = vand.u32 %v894, 4294901760
        %896 = vmatmul.f32.gmra.mxu0 %v895
        %v897 = vpop.f32.mrf.mxu0
        %v898 = vadd.f32 0.0, %v897
        %899 = vdwg.mxu0
        %900 = vmatpush.msra.mxu0 0.0
        %901 = vmatpush.msra.mxu0 0.0
        %902 = vmatpush.msra.mxu0 0.0
        %903 = vmatpush.msra.mxu0 0.0
        %904 = vmatpush.msra.mxu0 0.0
        %905 = vmatpush.msra.mxu0 0.0
        %906 = vmatpush.msra.mxu0 0.0
        %907 = vmatpush.msra.mxu0 0.0
        %908 = vmatpush.msra.mxu0 0.0
        %909 = vmatpush.msra.mxu0 0.0
        %910 = vmatpush.msra.mxu0 0.0
        %911 = vmatpush.msra.mxu0 0.0
        %912 = vmatpush.msra.mxu0 0.0
        %913 = vmatpush.msra.mxu0 0.0
        %914 = vmatpush.msra.mxu0 0.0
        %v915 = vand.u32 %v867, 4294901760
        %v916 = vsub.f32 %v867, %v915
        %v917 = vand.u32 %v916, 4294901760
        %v918 = vsub.f32 %v916, %v917
        %v919 = vand.u32 %v918, 4294901760
        %920 = vmatpush.msra.mxu0 %v919
        %v921 = vand.u32 %v872, 4294901760
        %922 = vmatmul.f32.gmra.mxu0 %v921
        %v923 = vpop.f32.mrf.mxu0
        %v924 = vadd.f32 %v898, %v923
        %925 = vdwg.mxu0
        %926 = vmatpush.msra.mxu0 0.0
        %927 = vmatpush.msra.mxu0 0.0
        %928 = vmatpush.msra.mxu0 0.0
        %929 = vmatpush.msra.mxu0 0.0
        %930 = vmatpush.msra.mxu0 0.0
        %931 = vmatpush.msra.mxu0 0.0
        %932 = vmatpush.msra.mxu0 0.0
        %933 = vmatpush.msra.mxu0 0.0
        %934 = vmatpush.msra.mxu0 0.0
        %935 = vmatpush.msra.mxu0 0.0
        %936 = vmatpush.msra.mxu0 0.0
        %937 = vmatpush.msra.mxu0 0.0
        %938 = vmatpush.msra.mxu0 0.0
        %939 = vmatpush.msra.mxu0 0.0
        %940 = vmatpush.msra.mxu0 0.0
        %v941 = vand.u32 %v867, 4294901760
        %v942 = vsub.f32 %v867, %v941
        %943 = vmatpush.msra.mxu0 %v942
        %v944 = vand.u32 %v872, 4294901760
        %v945 = vsub.f32 %v872, %v944
        %946 = vmatmul.f32.gmra.mxu0 %v945
        %v947 = vpop.f32.mrf.mxu0
        %v948 = vadd.f32 %v924, %v947
        %949 = vdwg.mxu0
        %950 = vmatpush.msra.mxu0 0.0
        %951 = vmatpush.msra.mxu0 0.0
        %952 = vmatpush.msra.mxu0 0.0
        %953 = vmatpush.msra.mxu0 0.0
        %954 = vmatpush.msra.mxu0 0.0
        %955 = vmatpush.msra.mxu0 0.0
        %956 = vmatpush.msra.mxu0 0.0
        %957 = vmatpush.msra.mxu0 0.0
        %958 = vmatpush.msra.mxu0 0.0
        %959 = vmatpush.msra.mxu0 0.0
        %960 = vmatpush.msra.mxu0 0.0
        %961 = vmatpush.msra.mxu0 0.0
        %962 = vmatpush.msra.mxu0 0.0
        %963 = vmatpush.msra.mxu0 0.0
        %964 = vmatpush.msra.mxu0 0.0
        %v965 = vand.u32 %v867, 4294901760
        %966 = vmatpush.msra.mxu0 %v965
        %v967 = vand.u32 %v872, 4294901760
        %v968 = vsub.f32 %v872, %v967
        %v969 = vand.u32 %v968, 4294901760
        %970 = vmatmul.f32.gmra.mxu0 %v969
        %v971 = vpop.f32.mrf.mxu0
        %v972 = vadd.f32 %v948, %v971
        %973 = vdwg.mxu0
        %974 = vmatpush.msra.mxu0 0.0
        %975 = vmatpush.msra.mxu0 0.0
        %976 = vmatpush.msra.mxu0 0.0
        %977 = vmatpush.msra.mxu0 0.0
        %978 = vmatpush.msra.mxu0 0.0
        %979 = vmatpush.msra.mxu0 0.0
        %980 = vmatpush.msra.mxu0 0.0
        %981 = vmatpush.msra.mxu0 0.0
        %982 = vmatpush.msra.mxu0 0.0
        %983 = vmatpush.msra.mxu0 0.0
        %984 = vmatpush.msra.mxu0 0.0
        %985 = vmatpush.msra.mxu0 0.0
        %986 = vmatpush.msra.mxu0 0.0
        %987 = vmatpush.msra.mxu0 0.0
        %988 = vmatpush.msra.mxu0 0.0
        %v989 = vand.u32 %v867, 4294901760
        %v990 = vsub.f32 %v867, %v989
        %v991 = vand.u32 %v990, 4294901760
        %992 = vmatpush.msra.mxu0 %v991
        %v993 = vand.u32 %v872, 4294901760
        %994 = vmatmul.f32.gmra.mxu0 %v993
        %v995 = vpop.f32.mrf.mxu0
        %v996 = vadd.f32 %v972, %v995
        %997 = vdwg.mxu0
        %998 = vmatpush.msra.mxu0 0.0
        %999 = vmatpush.msra.mxu0 0.0
        %1000 = vmatpush.msra.mxu0 0.0
        %1001 = vmatpush.msra.mxu0 0.0
        %1002 = vmatpush.msra.mxu0 0.0
        %1003 = vmatpush.msra.mxu0 0.0
        %1004 = vmatpush.msra.mxu0 0.0
        %1005 = vmatpush.msra.mxu0 0.0
        %1006 = vmatpush.msra.mxu0 0.0
        %1007 = vmatpush.msra.mxu0 0.0
        %1008 = vmatpush.msra.mxu0 0.0
        %1009 = vmatpush.msra.mxu0 0.0
        %1010 = vmatpush.msra.mxu0 0.0
        %1011 = vmatpush.msra.mxu0 0.0
        %1012 = vmatpush.msra.mxu0 0.0
        %v1013 = vand.u32 %v867, 4294901760
        %1014 = vmatpush.msra.mxu0 %v1013
        %v1015 = vand.u32 %v872, 4294901760
        %1016 = vmatmul.f32.gmra.mxu0 %v1015
        %v1017 = vpop.f32.mrf.mxu0
        %v1018 = vadd.f32 %v996, %v1017
        %1019 = vdwg.mxu0
        %1020 = vmatpush.msra.mxu0 0.0
        %1021 = vmatpush.msra.mxu0 0.0
        %1022 = vmatpush.msra.mxu0 0.0
        %1023 = vmatpush.msra.mxu0 0.0
        %1024 = vmatpush.msra.mxu0 0.0
        %1025 = vmatpush.msra.mxu0 0.0
        %1026 = vmatpush.msra.mxu0 0.0
        %1027 = vmatpush.msra.mxu0 0.0
        %1028 = vmatpush.msra.mxu0 0.0
        %1029 = vmatpush.msra.mxu0 0.0
        %1030 = vmatpush.msra.mxu0 0.0
        %1031 = vmatpush.msra.mxu0 0.0
        %1032 = vmatpush.msra.mxu0 0.0
        %1033 = vmatpush.msra.mxu0 0.0
        %1034 = vmatpush.msra.mxu0 0.0
        %v1035 = vand.u32 %v868, 4294901760
        %1036 = vmatpush.msra.mxu0 %v1035
        %v1037 = vand.u32 %v872, 4294901760
        %v1038 = vsub.f32 %v872, %v1037
        %v1039 = vand.u32 %v1038, 4294901760
        %v1040 = vsub.f32 %v1038, %v1039
        %v1041 = vand.u32 %v1040, 4294901760
        %1042 = vmatmul.f32.gmra.mxu0 %v1041
        %v1043 = vpop.f32.mrf.mxu0
        %v1044 = vadd.f32 0.0, %v1043
        %1045 = vdwg.mxu0
        %1046 = vmatpush.msra.mxu0 0.0
        %1047 = vmatpush.msra.mxu0 0.0
        %1048 = vmatpush.msra.mxu0 0.0
        %1049 = vmatpush.msra.mxu0 0.0
        %1050 = vmatpush.msra.mxu0 0.0
        %1051 = vmatpush.msra.mxu0 0.0
        %1052 = vmatpush.msra.mxu0 0.0
        %1053 = vmatpush.msra.mxu0 0.0
        %1054 = vmatpush.msra.mxu0 0.0
        %1055 = vmatpush.msra.mxu0 0.0
        %1056 = vmatpush.msra.mxu0 0.0
        %1057 = vmatpush.msra.mxu0 0.0
        %1058 = vmatpush.msra.mxu0 0.0
        %1059 = vmatpush.msra.mxu0 0.0
        %1060 = vmatpush.msra.mxu0 0.0
        %v1061 = vand.u32 %v868, 4294901760
        %v1062 = vsub.f32 %v868, %v1061
        %v1063 = vand.u32 %v1062, 4294901760
        %v1064 = vsub.f32 %v1062, %v1063
        %v1065 = vand.u32 %v1064, 4294901760
        %1066 = vmatpush.msra.mxu0 %v1065
        %v1067 = vand.u32 %v872, 4294901760
        %1068 = vmatmul.f32.gmra.mxu0 %v1067
        %v1069 = vpop.f32.mrf.mxu0
        %v1070 = vadd.f32 %v1044, %v1069
        %1071 = vdwg.mxu0
        %1072 = vmatpush.msra.mxu0 0.0
        %1073 = vmatpush.msra.mxu0 0.0
        %1074 = vmatpush.msra.mxu0 0.0
        %1075 = vmatpush.msra.mxu0 0.0
        %1076 = vmatpush.msra.mxu0 0.0
        %1077 = vmatpush.msra.mxu0 0.0
        %1078 = vmatpush.msra.mxu0 0.0
        %1079 = vmatpush.msra.mxu0 0.0
        %1080 = vmatpush.msra.mxu0 0.0
        %1081 = vmatpush.msra.mxu0 0.0
        %1082 = vmatpush.msra.mxu0 0.0
        %1083 = vmatpush.msra.mxu0 0.0
        %1084 = vmatpush.msra.mxu0 0.0
        %1085 = vmatpush.msra.mxu0 0.0
        %1086 = vmatpush.msra.mxu0 0.0
        %v1087 = vand.u32 %v868, 4294901760
        %v1088 = vsub.f32 %v868, %v1087
        %1089 = vmatpush.msra.mxu0 %v1088
        %v1090 = vand.u32 %v872, 4294901760
        %v1091 = vsub.f32 %v872, %v1090
        %1092 = vmatmul.f32.gmra.mxu0 %v1091
        %v1093 = vpop.f32.mrf.mxu0
        %v1094 = vadd.f32 %v1070, %v1093
        %1095 = vdwg.mxu0
        %1096 = vmatpush.msra.mxu0 0.0
        %1097 = vmatpush.msra.mxu0 0.0
        %1098 = vmatpush.msra.mxu0 0.0
        %1099 = vmatpush.msra.mxu0 0.0
        %1100 = vmatpush.msra.mxu0 0.0
        %1101 = vmatpush.msra.mxu0 0.0
        %1102 = vmatpush.msra.mxu0 0.0
        %1103 = vmatpush.msra.mxu0 0.0
        %1104 = vmatpush.msra.mxu0 0.0
        %1105 = vmatpush.msra.mxu0 0.0
        %1106 = vmatpush.msra.mxu0 0.0
        %1107 = vmatpush.msra.mxu0 0.0
        %1108 = vmatpush.msra.mxu0 0.0
        %1109 = vmatpush.msra.mxu0 0.0
        %1110 = vmatpush.msra.mxu0 0.0
        %v1111 = vand.u32 %v868, 4294901760
        %1112 = vmatpush.msra.mxu0 %v1111
        %v1113 = vand.u32 %v872, 4294901760
        %v1114 = vsub.f32 %v872, %v1113
        %v1115 = vand.u32 %v1114, 4294901760
        %1116 = vmatmul.f32.gmra.mxu0 %v1115
        %v1117 = vpop.f32.mrf.mxu0
        %v1118 = vadd.f32 %v1094, %v1117
        %1119 = vdwg.mxu0
        %1120 = vmatpush.msra.mxu0 0.0
        %1121 = vmatpush.msra.mxu0 0.0
        %1122 = vmatpush.msra.mxu0 0.0
        %1123 = vmatpush.msra.mxu0 0.0
        %1124 = vmatpush.msra.mxu0 0.0
        %1125 = vmatpush.msra.mxu0 0.0
        %1126 = vmatpush.msra.mxu0 0.0
        %1127 = vmatpush.msra.mxu0 0.0
        %1128 = vmatpush.msra.mxu0 0.0
        %1129 = vmatpush.msra.mxu0 0.0
        %1130 = vmatpush.msra.mxu0 0.0
        %1131 = vmatpush.msra.mxu0 0.0
        %1132 = vmatpush.msra.mxu0 0.0
        %1133 = vmatpush.msra.mxu0 0.0
        %1134 = vmatpush.msra.mxu0 0.0
        %v1135 = vand.u32 %v868, 4294901760
        %v1136 = vsub.f32 %v868, %v1135
        %v1137 = vand.u32 %v1136, 4294901760
        %1138 = vmatpush.msra.mxu0 %v1137
        %v1139 = vand.u32 %v872, 4294901760
        %1140 = vmatmul.f32.gmra.mxu0 %v1139
        %v1141 = vpop.f32.mrf.mxu0
        %v1142 = vadd.f32 %v1118, %v1141
        %1143 = vdwg.mxu0
        %1144 = vmatpush.msra.mxu0 0.0
        %1145 = vmatpush.msra.mxu0 0.0
        %1146 = vmatpush.msra.mxu0 0.0
        %1147 = vmatpush.msra.mxu0 0.0
        %1148 = vmatpush.msra.mxu0 0.0
        %1149 = vmatpush.msra.mxu0 0.0
        %1150 = vmatpush.msra.mxu0 0.0
        %1151 = vmatpush.msra.mxu0 0.0
        %1152 = vmatpush.msra.mxu0 0.0
        %1153 = vmatpush.msra.mxu0 0.0
        %1154 = vmatpush.msra.mxu0 0.0
        %1155 = vmatpush.msra.mxu0 0.0
        %1156 = vmatpush.msra.mxu0 0.0
        %1157 = vmatpush.msra.mxu0 0.0
        %1158 = vmatpush.msra.mxu0 0.0
        %v1159 = vand.u32 %v868, 4294901760
        %1160 = vmatpush.msra.mxu0 %v1159
        %v1161 = vand.u32 %v872, 4294901760
        %1162 = vmatmul.f32.gmra.mxu0 %v1161
        %v1163 = vpop.f32.mrf.mxu0
        %v1164 = vadd.f32 %v1142, %v1163
        %1165 = vdwg.mxu0
        %v1166 = vadd.f32 %v705, %v1018
        %v1167 = vadd.f32 %v851, %v1164
        %1168 = vrot.lane.b32.xlu0 %v224, 1
        %v1169 = vpop.permute.xlu0 %1168
        %1170 = vrot.lane.b32.xlu0 %v225, 1
        %v1171 = vpop.permute.xlu0 %1170
        %vm1172 = vcmp.lt.s32.totalorder %v231, 1
        %v1173 = vsel %vm1172, %v1169, %v1171
        %v1174 = vsel %vm1172, %v1171, %v1169
        %s1175 = scalar_lea.vmem %s0, 6
        %v1176 = vld [vmem:[%s1175] sm:$0x3]
        %v1178 = vperm.slane %v1176, 0
        %v1179 = vperm.slane %v1176, 1
        %v1182 = vmul.f32 %v1174, %v1178
        %v1183 = vmul.f32 %v1173, %v1179
        %s1184 = scalar_lea.vmem %s1, 24
        %v1185 = vld [vmem:[%s1184] sm:$0xff]
        %v1187 = vsel %vm262, %v1185, 0
        %1189 = vmatpush.msra.mxu0 0.0
        %1190 = vmatpush.msra.mxu0 0.0
        %1191 = vmatpush.msra.mxu0 0.0
        %1192 = vmatpush.msra.mxu0 0.0
        %1193 = vmatpush.msra.mxu0 0.0
        %1194 = vmatpush.msra.mxu0 0.0
        %1195 = vmatpush.msra.mxu0 0.0
        %1196 = vmatpush.msra.mxu0 0.0
        %1197 = vmatpush.msra.mxu0 0.0
        %1198 = vmatpush.msra.mxu0 0.0
        %1199 = vmatpush.msra.mxu0 0.0
        %1200 = vmatpush.msra.mxu0 0.0
        %1201 = vmatpush.msra.mxu0 0.0
        %1202 = vmatpush.msra.mxu0 0.0
        %1203 = vmatpush.msra.mxu0 0.0
        %v1204 = vand.u32 %v1182, 4294901760
        %1205 = vmatpush.msra.mxu0 %v1204
        %v1206 = vand.u32 %v1187, 4294901760
        %v1207 = vsub.f32 %v1187, %v1206
        %v1208 = vand.u32 %v1207, 4294901760
        %v1209 = vsub.f32 %v1207, %v1208
        %v1210 = vand.u32 %v1209, 4294901760
        %1211 = vmatmul.f32.gmra.mxu0 %v1210
        %v1212 = vpop.f32.mrf.mxu0
        %v1213 = vadd.f32 0.0, %v1212
        %1214 = vdwg.mxu0
        %1215 = vmatpush.msra.mxu0 0.0
        %1216 = vmatpush.msra.mxu0 0.0
        %1217 = vmatpush.msra.mxu0 0.0
        %1218 = vmatpush.msra.mxu0 0.0
        %1219 = vmatpush.msra.mxu0 0.0
        %1220 = vmatpush.msra.mxu0 0.0
        %1221 = vmatpush.msra.mxu0 0.0
        %1222 = vmatpush.msra.mxu0 0.0
        %1223 = vmatpush.msra.mxu0 0.0
        %1224 = vmatpush.msra.mxu0 0.0
        %1225 = vmatpush.msra.mxu0 0.0
        %1226 = vmatpush.msra.mxu0 0.0
        %1227 = vmatpush.msra.mxu0 0.0
        %1228 = vmatpush.msra.mxu0 0.0
        %1229 = vmatpush.msra.mxu0 0.0
        %v1230 = vand.u32 %v1182, 4294901760
        %v1231 = vsub.f32 %v1182, %v1230
        %v1232 = vand.u32 %v1231, 4294901760
        %v1233 = vsub.f32 %v1231, %v1232
        %v1234 = vand.u32 %v1233, 4294901760
        %1235 = vmatpush.msra.mxu0 %v1234
        %v1236 = vand.u32 %v1187, 4294901760
        %1237 = vmatmul.f32.gmra.mxu0 %v1236
        %v1238 = vpop.f32.mrf.mxu0
        %v1239 = vadd.f32 %v1213, %v1238
        %1240 = vdwg.mxu0
        %1241 = vmatpush.msra.mxu0 0.0
        %1242 = vmatpush.msra.mxu0 0.0
        %1243 = vmatpush.msra.mxu0 0.0
        %1244 = vmatpush.msra.mxu0 0.0
        %1245 = vmatpush.msra.mxu0 0.0
        %1246 = vmatpush.msra.mxu0 0.0
        %1247 = vmatpush.msra.mxu0 0.0
        %1248 = vmatpush.msra.mxu0 0.0
        %1249 = vmatpush.msra.mxu0 0.0
        %1250 = vmatpush.msra.mxu0 0.0
        %1251 = vmatpush.msra.mxu0 0.0
        %1252 = vmatpush.msra.mxu0 0.0
        %1253 = vmatpush.msra.mxu0 0.0
        %1254 = vmatpush.msra.mxu0 0.0
        %1255 = vmatpush.msra.mxu0 0.0
        %v1256 = vand.u32 %v1182, 4294901760
        %v1257 = vsub.f32 %v1182, %v1256
        %1258 = vmatpush.msra.mxu0 %v1257
        %v1259 = vand.u32 %v1187, 4294901760
        %v1260 = vsub.f32 %v1187, %v1259
        %1261 = vmatmul.f32.gmra.mxu0 %v1260
        %v1262 = vpop.f32.mrf.mxu0
        %v1263 = vadd.f32 %v1239, %v1262
        %1264 = vdwg.mxu0
        %1265 = vmatpush.msra.mxu0 0.0
        %1266 = vmatpush.msra.mxu0 0.0
        %1267 = vmatpush.msra.mxu0 0.0
        %1268 = vmatpush.msra.mxu0 0.0
        %1269 = vmatpush.msra.mxu0 0.0
        %1270 = vmatpush.msra.mxu0 0.0
        %1271 = vmatpush.msra.mxu0 0.0
        %1272 = vmatpush.msra.mxu0 0.0
        %1273 = vmatpush.msra.mxu0 0.0
        %1274 = vmatpush.msra.mxu0 0.0
        %1275 = vmatpush.msra.mxu0 0.0
        %1276 = vmatpush.msra.mxu0 0.0
        %1277 = vmatpush.msra.mxu0 0.0
        %1278 = vmatpush.msra.mxu0 0.0
        %1279 = vmatpush.msra.mxu0 0.0
        %v1280 = vand.u32 %v1182, 4294901760
        %1281 = vmatpush.msra.mxu0 %v1280
        %v1282 = vand.u32 %v1187, 4294901760
        %v1283 = vsub.f32 %v1187, %v1282
        %v1284 = vand.u32 %v1283, 4294901760
        %1285 = vmatmul.f32.gmra.mxu0 %v1284
        %v1286 = vpop.f32.mrf.mxu0
        %v1287 = vadd.f32 %v1263, %v1286
        %1288 = vdwg.mxu0
        %1289 = vmatpush.msra.mxu0 0.0
        %1290 = vmatpush.msra.mxu0 0.0
        %1291 = vmatpush.msra.mxu0 0.0
        %1292 = vmatpush.msra.mxu0 0.0
        %1293 = vmatpush.msra.mxu0 0.0
        %1294 = vmatpush.msra.mxu0 0.0
        %1295 = vmatpush.msra.mxu0 0.0
        %1296 = vmatpush.msra.mxu0 0.0
        %1297 = vmatpush.msra.mxu0 0.0
        %1298 = vmatpush.msra.mxu0 0.0
        %1299 = vmatpush.msra.mxu0 0.0
        %1300 = vmatpush.msra.mxu0 0.0
        %1301 = vmatpush.msra.mxu0 0.0
        %1302 = vmatpush.msra.mxu0 0.0
        %1303 = vmatpush.msra.mxu0 0.0
        %v1304 = vand.u32 %v1182, 4294901760
        %v1305 = vsub.f32 %v1182, %v1304
        %v1306 = vand.u32 %v1305, 4294901760
        %1307 = vmatpush.msra.mxu0 %v1306
        %v1308 = vand.u32 %v1187, 4294901760
        %1309 = vmatmul.f32.gmra.mxu0 %v1308
        %v1310 = vpop.f32.mrf.mxu0
        %v1311 = vadd.f32 %v1287, %v1310
        %1312 = vdwg.mxu0
        %1313 = vmatpush.msra.mxu0 0.0
        %1314 = vmatpush.msra.mxu0 0.0
        %1315 = vmatpush.msra.mxu0 0.0
        %1316 = vmatpush.msra.mxu0 0.0
        %1317 = vmatpush.msra.mxu0 0.0
        %1318 = vmatpush.msra.mxu0 0.0
        %1319 = vmatpush.msra.mxu0 0.0
        %1320 = vmatpush.msra.mxu0 0.0
        %1321 = vmatpush.msra.mxu0 0.0
        %1322 = vmatpush.msra.mxu0 0.0
        %1323 = vmatpush.msra.mxu0 0.0
        %1324 = vmatpush.msra.mxu0 0.0
        %1325 = vmatpush.msra.mxu0 0.0
        %1326 = vmatpush.msra.mxu0 0.0
        %1327 = vmatpush.msra.mxu0 0.0
        %v1328 = vand.u32 %v1182, 4294901760
        %1329 = vmatpush.msra.mxu0 %v1328
        %v1330 = vand.u32 %v1187, 4294901760
        %1331 = vmatmul.f32.gmra.mxu0 %v1330
        %v1332 = vpop.f32.mrf.mxu0
        %v1333 = vadd.f32 %v1311, %v1332
        %1334 = vdwg.mxu0
        %1335 = vmatpush.msra.mxu0 0.0
        %1336 = vmatpush.msra.mxu0 0.0
        %1337 = vmatpush.msra.mxu0 0.0
        %1338 = vmatpush.msra.mxu0 0.0
        %1339 = vmatpush.msra.mxu0 0.0
        %1340 = vmatpush.msra.mxu0 0.0
        %1341 = vmatpush.msra.mxu0 0.0
        %1342 = vmatpush.msra.mxu0 0.0
        %1343 = vmatpush.msra.mxu0 0.0
        %1344 = vmatpush.msra.mxu0 0.0
        %1345 = vmatpush.msra.mxu0 0.0
        %1346 = vmatpush.msra.mxu0 0.0
        %1347 = vmatpush.msra.mxu0 0.0
        %1348 = vmatpush.msra.mxu0 0.0
        %1349 = vmatpush.msra.mxu0 0.0
        %v1350 = vand.u32 %v1183, 4294901760
        %1351 = vmatpush.msra.mxu0 %v1350
        %v1352 = vand.u32 %v1187, 4294901760
        %v1353 = vsub.f32 %v1187, %v1352
        %v1354 = vand.u32 %v1353, 4294901760
        %v1355 = vsub.f32 %v1353, %v1354
        %v1356 = vand.u32 %v1355, 4294901760
        %1357 = vmatmul.f32.gmra.mxu0 %v1356
        %v1358 = vpop.f32.mrf.mxu0
        %v1359 = vadd.f32 0.0, %v1358
        %1360 = vdwg.mxu0
        %1361 = vmatpush.msra.mxu0 0.0
        %1362 = vmatpush.msra.mxu0 0.0
        %1363 = vmatpush.msra.mxu0 0.0
        %1364 = vmatpush.msra.mxu0 0.0
        %1365 = vmatpush.msra.mxu0 0.0
        %1366 = vmatpush.msra.mxu0 0.0
        %1367 = vmatpush.msra.mxu0 0.0
        %1368 = vmatpush.msra.mxu0 0.0
        %1369 = vmatpush.msra.mxu0 0.0
        %1370 = vmatpush.msra.mxu0 0.0
        %1371 = vmatpush.msra.mxu0 0.0
        %1372 = vmatpush.msra.mxu0 0.0
        %1373 = vmatpush.msra.mxu0 0.0
        %1374 = vmatpush.msra.mxu0 0.0
        %1375 = vmatpush.msra.mxu0 0.0
        %v1376 = vand.u32 %v1183, 4294901760
        %v1377 = vsub.f32 %v1183, %v1376
        %v1378 = vand.u32 %v1377, 4294901760
        %v1379 = vsub.f32 %v1377, %v1378
        %v1380 = vand.u32 %v1379, 4294901760
        %1381 = vmatpush.msra.mxu0 %v1380
        %v1382 = vand.u32 %v1187, 4294901760
        %1383 = vmatmul.f32.gmra.mxu0 %v1382
        %v1384 = vpop.f32.mrf.mxu0
        %v1385 = vadd.f32 %v1359, %v1384
        %1386 = vdwg.mxu0
        %1387 = vmatpush.msra.mxu0 0.0
        %1388 = vmatpush.msra.mxu0 0.0
        %1389 = vmatpush.msra.mxu0 0.0
        %1390 = vmatpush.msra.mxu0 0.0
        %1391 = vmatpush.msra.mxu0 0.0
        %1392 = vmatpush.msra.mxu0 0.0
        %1393 = vmatpush.msra.mxu0 0.0
        %1394 = vmatpush.msra.mxu0 0.0
        %1395 = vmatpush.msra.mxu0 0.0
        %1396 = vmatpush.msra.mxu0 0.0
        %1397 = vmatpush.msra.mxu0 0.0
        %1398 = vmatpush.msra.mxu0 0.0
        %1399 = vmatpush.msra.mxu0 0.0
        %1400 = vmatpush.msra.mxu0 0.0
        %1401 = vmatpush.msra.mxu0 0.0
        %v1402 = vand.u32 %v1183, 4294901760
        %v1403 = vsub.f32 %v1183, %v1402
        %1404 = vmatpush.msra.mxu0 %v1403
        %v1405 = vand.u32 %v1187, 4294901760
        %v1406 = vsub.f32 %v1187, %v1405
        %1407 = vmatmul.f32.gmra.mxu0 %v1406
        %v1408 = vpop.f32.mrf.mxu0
        %v1409 = vadd.f32 %v1385, %v1408
        %1410 = vdwg.mxu0
        %1411 = vmatpush.msra.mxu0 0.0
        %1412 = vmatpush.msra.mxu0 0.0
        %1413 = vmatpush.msra.mxu0 0.0
        %1414 = vmatpush.msra.mxu0 0.0
        %1415 = vmatpush.msra.mxu0 0.0
        %1416 = vmatpush.msra.mxu0 0.0
        %1417 = vmatpush.msra.mxu0 0.0
        %1418 = vmatpush.msra.mxu0 0.0
        %1419 = vmatpush.msra.mxu0 0.0
        %1420 = vmatpush.msra.mxu0 0.0
        %1421 = vmatpush.msra.mxu0 0.0
        %1422 = vmatpush.msra.mxu0 0.0
        %1423 = vmatpush.msra.mxu0 0.0
        %1424 = vmatpush.msra.mxu0 0.0
        %1425 = vmatpush.msra.mxu0 0.0
        %v1426 = vand.u32 %v1183, 4294901760
        %1427 = vmatpush.msra.mxu0 %v1426
        %v1428 = vand.u32 %v1187, 4294901760
        %v1429 = vsub.f32 %v1187, %v1428
        %v1430 = vand.u32 %v1429, 4294901760
        %1431 = vmatmul.f32.gmra.mxu0 %v1430
        %v1432 = vpop.f32.mrf.mxu0
        %v1433 = vadd.f32 %v1409, %v1432
        %1434 = vdwg.mxu0
        %1435 = vmatpush.msra.mxu0 0.0
        %1436 = vmatpush.msra.mxu0 0.0
        %1437 = vmatpush.msra.mxu0 0.0
        %1438 = vmatpush.msra.mxu0 0.0
        %1439 = vmatpush.msra.mxu0 0.0
        %1440 = vmatpush.msra.mxu0 0.0
        %1441 = vmatpush.msra.mxu0 0.0
        %1442 = vmatpush.msra.mxu0 0.0
        %1443 = vmatpush.msra.mxu0 0.0
        %1444 = vmatpush.msra.mxu0 0.0
        %1445 = vmatpush.msra.mxu0 0.0
        %1446 = vmatpush.msra.mxu0 0.0
        %1447 = vmatpush.msra.mxu0 0.0
        %1448 = vmatpush.msra.mxu0 0.0
        %1449 = vmatpush.msra.mxu0 0.0
        %v1450 = vand.u32 %v1183, 4294901760
        %v1451 = vsub.f32 %v1183, %v1450
        %v1452 = vand.u32 %v1451, 4294901760
        %1453 = vmatpush.msra.mxu0 %v1452
        %v1454 = vand.u32 %v1187, 4294901760
        %1455 = vmatmul.f32.gmra.mxu0 %v1454
        %v1456 = vpop.f32.mrf.mxu0
        %v1457 = vadd.f32 %v1433, %v1456
        %1458 = vdwg.mxu0
        %1459 = vmatpush.msra.mxu0 0.0
        %1460 = vmatpush.msra.mxu0 0.0
        %1461 = vmatpush.msra.mxu0 0.0
        %1462 = vmatpush.msra.mxu0 0.0
        %1463 = vmatpush.msra.mxu0 0.0
        %1464 = vmatpush.msra.mxu0 0.0
        %1465 = vmatpush.msra.mxu0 0.0
        %1466 = vmatpush.msra.mxu0 0.0
        %1467 = vmatpush.msra.mxu0 0.0
        %1468 = vmatpush.msra.mxu0 0.0
        %1469 = vmatpush.msra.mxu0 0.0
        %1470 = vmatpush.msra.mxu0 0.0
        %1471 = vmatpush.msra.mxu0 0.0
        %1472 = vmatpush.msra.mxu0 0.0
        %1473 = vmatpush.msra.mxu0 0.0
        %v1474 = vand.u32 %v1183, 4294901760
        %1475 = vmatpush.msra.mxu0 %v1474
        %v1476 = vand.u32 %v1187, 4294901760
        %1477 = vmatmul.f32.gmra.mxu0 %v1476
        %v1478 = vpop.f32.mrf.mxu0
        %v1479 = vadd.f32 %v1457, %v1478
        %1480 = vdwg.mxu0
        %v1481 = vadd.f32 %v1166, %v1333
        %v1482 = vadd.f32 %v1167, %v1479
        %s1483 = scalar_lea.vmem %s1, 32
        %v1484 = vld [vmem:[%s1483] sm:$0xff]
        %v1486 = vsel %vm262, %v1484, 0
        %1488 = vmatpush.msra.mxu0 0.0
        %1489 = vmatpush.msra.mxu0 0.0
        %1490 = vmatpush.msra.mxu0 0.0
        %1491 = vmatpush.msra.mxu0 0.0
        %1492 = vmatpush.msra.mxu0 0.0
        %1493 = vmatpush.msra.mxu0 0.0
        %1494 = vmatpush.msra.mxu0 0.0
        %1495 = vmatpush.msra.mxu0 0.0
        %1496 = vmatpush.msra.mxu0 0.0
        %1497 = vmatpush.msra.mxu0 0.0
        %1498 = vmatpush.msra.mxu0 0.0
        %1499 = vmatpush.msra.mxu0 0.0
        %1500 = vmatpush.msra.mxu0 0.0
        %1501 = vmatpush.msra.mxu0 0.0
        %1502 = vmatpush.msra.mxu0 0.0
        %v1503 = vand.u32 %v224, 4294901760
        %1504 = vmatpush.msra.mxu0 %v1503
        %v1505 = vand.u32 %v1486, 4294901760
        %v1506 = vsub.f32 %v1486, %v1505
        %v1507 = vand.u32 %v1506, 4294901760
        %v1508 = vsub.f32 %v1506, %v1507
        %v1509 = vand.u32 %v1508, 4294901760
        %1510 = vmatmul.f32.gmra.mxu0 %v1509
        %v1511 = vpop.f32.mrf.mxu0
        %v1512 = vadd.f32 0.0, %v1511
        %1513 = vdwg.mxu0
        %1514 = vmatpush.msra.mxu0 0.0
        %1515 = vmatpush.msra.mxu0 0.0
        %1516 = vmatpush.msra.mxu0 0.0
        %1517 = vmatpush.msra.mxu0 0.0
        %1518 = vmatpush.msra.mxu0 0.0
        %1519 = vmatpush.msra.mxu0 0.0
        %1520 = vmatpush.msra.mxu0 0.0
        %1521 = vmatpush.msra.mxu0 0.0
        %1522 = vmatpush.msra.mxu0 0.0
        %1523 = vmatpush.msra.mxu0 0.0
        %1524 = vmatpush.msra.mxu0 0.0
        %1525 = vmatpush.msra.mxu0 0.0
        %1526 = vmatpush.msra.mxu0 0.0
        %1527 = vmatpush.msra.mxu0 0.0
        %1528 = vmatpush.msra.mxu0 0.0
        %v1529 = vand.u32 %v224, 4294901760
        %v1530 = vsub.f32 %v224, %v1529
        %v1531 = vand.u32 %v1530, 4294901760
        %v1532 = vsub.f32 %v1530, %v1531
        %v1533 = vand.u32 %v1532, 4294901760
        %1534 = vmatpush.msra.mxu0 %v1533
        %v1535 = vand.u32 %v1486, 4294901760
        %1536 = vmatmul.f32.gmra.mxu0 %v1535
        %v1537 = vpop.f32.mrf.mxu0
        %v1538 = vadd.f32 %v1512, %v1537
        %1539 = vdwg.mxu0
        %1540 = vmatpush.msra.mxu0 0.0
        %1541 = vmatpush.msra.mxu0 0.0
        %1542 = vmatpush.msra.mxu0 0.0
        %1543 = vmatpush.msra.mxu0 0.0
        %1544 = vmatpush.msra.mxu0 0.0
        %1545 = vmatpush.msra.mxu0 0.0
        %1546 = vmatpush.msra.mxu0 0.0
        %1547 = vmatpush.msra.mxu0 0.0
        %1548 = vmatpush.msra.mxu0 0.0
        %1549 = vmatpush.msra.mxu0 0.0
        %1550 = vmatpush.msra.mxu0 0.0
        %1551 = vmatpush.msra.mxu0 0.0
        %1552 = vmatpush.msra.mxu0 0.0
        %1553 = vmatpush.msra.mxu0 0.0
        %1554 = vmatpush.msra.mxu0 0.0
        %v1555 = vand.u32 %v224, 4294901760
        %v1556 = vsub.f32 %v224, %v1555
        %1557 = vmatpush.msra.mxu0 %v1556
        %v1558 = vand.u32 %v1486, 4294901760
        %v1559 = vsub.f32 %v1486, %v1558
        %1560 = vmatmul.f32.gmra.mxu0 %v1559
        %v1561 = vpop.f32.mrf.mxu0
        %v1562 = vadd.f32 %v1538, %v1561
        %1563 = vdwg.mxu0
        %1564 = vmatpush.msra.mxu0 0.0
        %1565 = vmatpush.msra.mxu0 0.0
        %1566 = vmatpush.msra.mxu0 0.0
        %1567 = vmatpush.msra.mxu0 0.0
        %1568 = vmatpush.msra.mxu0 0.0
        %1569 = vmatpush.msra.mxu0 0.0
        %1570 = vmatpush.msra.mxu0 0.0
        %1571 = vmatpush.msra.mxu0 0.0
        %1572 = vmatpush.msra.mxu0 0.0
        %1573 = vmatpush.msra.mxu0 0.0
        %1574 = vmatpush.msra.mxu0 0.0
        %1575 = vmatpush.msra.mxu0 0.0
        %1576 = vmatpush.msra.mxu0 0.0
        %1577 = vmatpush.msra.mxu0 0.0
        %1578 = vmatpush.msra.mxu0 0.0
        %v1579 = vand.u32 %v224, 4294901760
        %1580 = vmatpush.msra.mxu0 %v1579
        %v1581 = vand.u32 %v1486, 4294901760
        %v1582 = vsub.f32 %v1486, %v1581
        %v1583 = vand.u32 %v1582, 4294901760
        %1584 = vmatmul.f32.gmra.mxu0 %v1583
        %v1585 = vpop.f32.mrf.mxu0
        %v1586 = vadd.f32 %v1562, %v1585
        %1587 = vdwg.mxu0
        %1588 = vmatpush.msra.mxu0 0.0
        %1589 = vmatpush.msra.mxu0 0.0
        %1590 = vmatpush.msra.mxu0 0.0
        %1591 = vmatpush.msra.mxu0 0.0
        %1592 = vmatpush.msra.mxu0 0.0
        %1593 = vmatpush.msra.mxu0 0.0
        %1594 = vmatpush.msra.mxu0 0.0
        %1595 = vmatpush.msra.mxu0 0.0
        %1596 = vmatpush.msra.mxu0 0.0
        %1597 = vmatpush.msra.mxu0 0.0
        %1598 = vmatpush.msra.mxu0 0.0
        %1599 = vmatpush.msra.mxu0 0.0
        %1600 = vmatpush.msra.mxu0 0.0
        %1601 = vmatpush.msra.mxu0 0.0
        %1602 = vmatpush.msra.mxu0 0.0
        %v1603 = vand.u32 %v224, 4294901760
        %v1604 = vsub.f32 %v224, %v1603
        %v1605 = vand.u32 %v1604, 4294901760
        %1606 = vmatpush.msra.mxu0 %v1605
        %v1607 = vand.u32 %v1486, 4294901760
        %1608 = vmatmul.f32.gmra.mxu0 %v1607
        %v1609 = vpop.f32.mrf.mxu0
        %v1610 = vadd.f32 %v1586, %v1609
        %1611 = vdwg.mxu0
        %1612 = vmatpush.msra.mxu0 0.0
        %1613 = vmatpush.msra.mxu0 0.0
        %1614 = vmatpush.msra.mxu0 0.0
        %1615 = vmatpush.msra.mxu0 0.0
        %1616 = vmatpush.msra.mxu0 0.0
        %1617 = vmatpush.msra.mxu0 0.0
        %1618 = vmatpush.msra.mxu0 0.0
        %1619 = vmatpush.msra.mxu0 0.0
        %1620 = vmatpush.msra.mxu0 0.0
        %1621 = vmatpush.msra.mxu0 0.0
        %1622 = vmatpush.msra.mxu0 0.0
        %1623 = vmatpush.msra.mxu0 0.0
        %1624 = vmatpush.msra.mxu0 0.0
        %1625 = vmatpush.msra.mxu0 0.0
        %1626 = vmatpush.msra.mxu0 0.0
        %v1627 = vand.u32 %v224, 4294901760
        %1628 = vmatpush.msra.mxu0 %v1627
        %v1629 = vand.u32 %v1486, 4294901760
        %1630 = vmatmul.f32.gmra.mxu0 %v1629
        %v1631 = vpop.f32.mrf.mxu0
        %v1632 = vadd.f32 %v1610, %v1631
        %1633 = vdwg.mxu0
        %1634 = vmatpush.msra.mxu0 0.0
        %1635 = vmatpush.msra.mxu0 0.0
        %1636 = vmatpush.msra.mxu0 0.0
        %1637 = vmatpush.msra.mxu0 0.0
        %1638 = vmatpush.msra.mxu0 0.0
        %1639 = vmatpush.msra.mxu0 0.0
        %1640 = vmatpush.msra.mxu0 0.0
        %1641 = vmatpush.msra.mxu0 0.0
        %1642 = vmatpush.msra.mxu0 0.0
        %1643 = vmatpush.msra.mxu0 0.0
        %1644 = vmatpush.msra.mxu0 0.0
        %1645 = vmatpush.msra.mxu0 0.0
        %1646 = vmatpush.msra.mxu0 0.0
        %1647 = vmatpush.msra.mxu0 0.0
        %1648 = vmatpush.msra.mxu0 0.0
        %v1649 = vand.u32 %v225, 4294901760
        %1650 = vmatpush.msra.mxu0 %v1649
        %v1651 = vand.u32 %v1486, 4294901760
        %v1652 = vsub.f32 %v1486, %v1651
        %v1653 = vand.u32 %v1652, 4294901760
        %v1654 = vsub.f32 %v1652, %v1653
        %v1655 = vand.u32 %v1654, 4294901760
        %1656 = vmatmul.f32.gmra.mxu0 %v1655
        %v1657 = vpop.f32.mrf.mxu0
        %v1658 = vadd.f32 0.0, %v1657
        %1659 = vdwg.mxu0
        %1660 = vmatpush.msra.mxu0 0.0
        %1661 = vmatpush.msra.mxu0 0.0
        %1662 = vmatpush.msra.mxu0 0.0
        %1663 = vmatpush.msra.mxu0 0.0
        %1664 = vmatpush.msra.mxu0 0.0
        %1665 = vmatpush.msra.mxu0 0.0
        %1666 = vmatpush.msra.mxu0 0.0
        %1667 = vmatpush.msra.mxu0 0.0
        %1668 = vmatpush.msra.mxu0 0.0
        %1669 = vmatpush.msra.mxu0 0.0
        %1670 = vmatpush.msra.mxu0 0.0
        %1671 = vmatpush.msra.mxu0 0.0
        %1672 = vmatpush.msra.mxu0 0.0
        %1673 = vmatpush.msra.mxu0 0.0
        %1674 = vmatpush.msra.mxu0 0.0
        %v1675 = vand.u32 %v225, 4294901760
        %v1676 = vsub.f32 %v225, %v1675
        %v1677 = vand.u32 %v1676, 4294901760
        %v1678 = vsub.f32 %v1676, %v1677
        %v1679 = vand.u32 %v1678, 4294901760
        %1680 = vmatpush.msra.mxu0 %v1679
        %v1681 = vand.u32 %v1486, 4294901760
        %1682 = vmatmul.f32.gmra.mxu0 %v1681
        %v1683 = vpop.f32.mrf.mxu0
        %v1684 = vadd.f32 %v1658, %v1683
        %1685 = vdwg.mxu0
        %1686 = vmatpush.msra.mxu0 0.0
        %1687 = vmatpush.msra.mxu0 0.0
        %1688 = vmatpush.msra.mxu0 0.0
        %1689 = vmatpush.msra.mxu0 0.0
        %1690 = vmatpush.msra.mxu0 0.0
        %1691 = vmatpush.msra.mxu0 0.0
        %1692 = vmatpush.msra.mxu0 0.0
        %1693 = vmatpush.msra.mxu0 0.0
        %1694 = vmatpush.msra.mxu0 0.0
        %1695 = vmatpush.msra.mxu0 0.0
        %1696 = vmatpush.msra.mxu0 0.0
        %1697 = vmatpush.msra.mxu0 0.0
        %1698 = vmatpush.msra.mxu0 0.0
        %1699 = vmatpush.msra.mxu0 0.0
        %1700 = vmatpush.msra.mxu0 0.0
        %v1701 = vand.u32 %v225, 4294901760
        %v1702 = vsub.f32 %v225, %v1701
        %1703 = vmatpush.msra.mxu0 %v1702
        %v1704 = vand.u32 %v1486, 4294901760
        %v1705 = vsub.f32 %v1486, %v1704
        %1706 = vmatmul.f32.gmra.mxu0 %v1705
        %v1707 = vpop.f32.mrf.mxu0
        %v1708 = vadd.f32 %v1684, %v1707
        %1709 = vdwg.mxu0
        %1710 = vmatpush.msra.mxu0 0.0
        %1711 = vmatpush.msra.mxu0 0.0
        %1712 = vmatpush.msra.mxu0 0.0
        %1713 = vmatpush.msra.mxu0 0.0
        %1714 = vmatpush.msra.mxu0 0.0
        %1715 = vmatpush.msra.mxu0 0.0
        %1716 = vmatpush.msra.mxu0 0.0
        %1717 = vmatpush.msra.mxu0 0.0
        %1718 = vmatpush.msra.mxu0 0.0
        %1719 = vmatpush.msra.mxu0 0.0
        %1720 = vmatpush.msra.mxu0 0.0
        %1721 = vmatpush.msra.mxu0 0.0
        %1722 = vmatpush.msra.mxu0 0.0
        %1723 = vmatpush.msra.mxu0 0.0
        %1724 = vmatpush.msra.mxu0 0.0
        %v1725 = vand.u32 %v225, 4294901760
        %1726 = vmatpush.msra.mxu0 %v1725
        %v1727 = vand.u32 %v1486, 4294901760
        %v1728 = vsub.f32 %v1486, %v1727
        %v1729 = vand.u32 %v1728, 4294901760
        %1730 = vmatmul.f32.gmra.mxu0 %v1729
        %v1731 = vpop.f32.mrf.mxu0
        %v1732 = vadd.f32 %v1708, %v1731
        %1733 = vdwg.mxu0
        %1734 = vmatpush.msra.mxu0 0.0
        %1735 = vmatpush.msra.mxu0 0.0
        %1736 = vmatpush.msra.mxu0 0.0
        %1737 = vmatpush.msra.mxu0 0.0
        %1738 = vmatpush.msra.mxu0 0.0
        %1739 = vmatpush.msra.mxu0 0.0
        %1740 = vmatpush.msra.mxu0 0.0
        %1741 = vmatpush.msra.mxu0 0.0
        %1742 = vmatpush.msra.mxu0 0.0
        %1743 = vmatpush.msra.mxu0 0.0
        %1744 = vmatpush.msra.mxu0 0.0
        %1745 = vmatpush.msra.mxu0 0.0
        %1746 = vmatpush.msra.mxu0 0.0
        %1747 = vmatpush.msra.mxu0 0.0
        %1748 = vmatpush.msra.mxu0 0.0
        %v1749 = vand.u32 %v225, 4294901760
        %v1750 = vsub.f32 %v225, %v1749
        %v1751 = vand.u32 %v1750, 4294901760
        %1752 = vmatpush.msra.mxu0 %v1751
        %v1753 = vand.u32 %v1486, 4294901760
        %1754 = vmatmul.f32.gmra.mxu0 %v1753
        %v1755 = vpop.f32.mrf.mxu0
        %v1756 = vadd.f32 %v1732, %v1755
        %1757 = vdwg.mxu0
        %1758 = vmatpush.msra.mxu0 0.0
        %1759 = vmatpush.msra.mxu0 0.0
        %1760 = vmatpush.msra.mxu0 0.0
        %1761 = vmatpush.msra.mxu0 0.0
        %1762 = vmatpush.msra.mxu0 0.0
        %1763 = vmatpush.msra.mxu0 0.0
        %1764 = vmatpush.msra.mxu0 0.0
        %1765 = vmatpush.msra.mxu0 0.0
        %1766 = vmatpush.msra.mxu0 0.0
        %1767 = vmatpush.msra.mxu0 0.0
        %1768 = vmatpush.msra.mxu0 0.0
        %1769 = vmatpush.msra.mxu0 0.0
        %1770 = vmatpush.msra.mxu0 0.0
        %1771 = vmatpush.msra.mxu0 0.0
        %1772 = vmatpush.msra.mxu0 0.0
        %v1773 = vand.u32 %v225, 4294901760
        %1774 = vmatpush.msra.mxu0 %v1773
        %v1775 = vand.u32 %v1486, 4294901760
        %1776 = vmatmul.f32.gmra.mxu0 %v1775
        %v1777 = vpop.f32.mrf.mxu0
        %v1778 = vadd.f32 %v1756, %v1777
        %1779 = vdwg.mxu0
        %v1780 = vadd.f32 %v1481, %v1632
        %v1781 = vadd.f32 %v1482, %v1778
        %1782 = vrot.lane.b32.xlu0 %v224, 127
        %v1783 = vpop.permute.xlu0 %1782
        %1784 = vrot.lane.b32.xlu0 %v225, 127
        %v1785 = vpop.permute.xlu0 %1784
        %vm1786 = vcmp.lt.s32.totalorder %v231, 127
        %v1787 = vsel %vm1786, %v1783, %v1785
        %v1788 = vsel %vm1786, %v1785, %v1783
        %s1789 = scalar_lea.vmem %s0, 10
        %v1790 = vld [vmem:[%s1789] sm:$0x3]
        %v1792 = vperm.slane %v1790, 0
        %v1793 = vperm.slane %v1790, 1
        %v1796 = vmul.f32 %v1787, %v1792
        %v1797 = vmul.f32 %v1788, %v1793
        %s1798 = scalar_lea.vmem %s1, 40
        %v1799 = vld [vmem:[%s1798] sm:$0xff]
        %v1801 = vsel %vm262, %v1799, 0
        %1803 = vmatpush.msra.mxu0 0.0
        %1804 = vmatpush.msra.mxu0 0.0
        %1805 = vmatpush.msra.mxu0 0.0
        %1806 = vmatpush.msra.mxu0 0.0
        %1807 = vmatpush.msra.mxu0 0.0
        %1808 = vmatpush.msra.mxu0 0.0
        %1809 = vmatpush.msra.mxu0 0.0
        %1810 = vmatpush.msra.mxu0 0.0
        %1811 = vmatpush.msra.mxu0 0.0
        %1812 = vmatpush.msra.mxu0 0.0
        %1813 = vmatpush.msra.mxu0 0.0
        %1814 = vmatpush.msra.mxu0 0.0
        %1815 = vmatpush.msra.mxu0 0.0
        %1816 = vmatpush.msra.mxu0 0.0
        %1817 = vmatpush.msra.mxu0 0.0
        %v1818 = vand.u32 %v1796, 4294901760
        %1819 = vmatpush.msra.mxu0 %v1818
        %v1820 = vand.u32 %v1801, 4294901760
        %v1821 = vsub.f32 %v1801, %v1820
        %v1822 = vand.u32 %v1821, 4294901760
        %v1823 = vsub.f32 %v1821, %v1822
        %v1824 = vand.u32 %v1823, 4294901760
        %1825 = vmatmul.f32.gmra.mxu0 %v1824
        %v1826 = vpop.f32.mrf.mxu0
        %v1827 = vadd.f32 0.0, %v1826
        %1828 = vdwg.mxu0
        %1829 = vmatpush.msra.mxu0 0.0
        %1830 = vmatpush.msra.mxu0 0.0
        %1831 = vmatpush.msra.mxu0 0.0
        %1832 = vmatpush.msra.mxu0 0.0
        %1833 = vmatpush.msra.mxu0 0.0
        %1834 = vmatpush.msra.mxu0 0.0
        %1835 = vmatpush.msra.mxu0 0.0
        %1836 = vmatpush.msra.mxu0 0.0
        %1837 = vmatpush.msra.mxu0 0.0
        %1838 = vmatpush.msra.mxu0 0.0
        %1839 = vmatpush.msra.mxu0 0.0
        %1840 = vmatpush.msra.mxu0 0.0
        %1841 = vmatpush.msra.mxu0 0.0
        %1842 = vmatpush.msra.mxu0 0.0
        %1843 = vmatpush.msra.mxu0 0.0
        %v1844 = vand.u32 %v1796, 4294901760
        %v1845 = vsub.f32 %v1796, %v1844
        %v1846 = vand.u32 %v1845, 4294901760
        %v1847 = vsub.f32 %v1845, %v1846
        %v1848 = vand.u32 %v1847, 4294901760
        %1849 = vmatpush.msra.mxu0 %v1848
        %v1850 = vand.u32 %v1801, 4294901760
        %1851 = vmatmul.f32.gmra.mxu0 %v1850
        %v1852 = vpop.f32.mrf.mxu0
        %v1853 = vadd.f32 %v1827, %v1852
        %1854 = vdwg.mxu0
        %1855 = vmatpush.msra.mxu0 0.0
        %1856 = vmatpush.msra.mxu0 0.0
        %1857 = vmatpush.msra.mxu0 0.0
        %1858 = vmatpush.msra.mxu0 0.0
        %1859 = vmatpush.msra.mxu0 0.0
        %1860 = vmatpush.msra.mxu0 0.0
        %1861 = vmatpush.msra.mxu0 0.0
        %1862 = vmatpush.msra.mxu0 0.0
        %1863 = vmatpush.msra.mxu0 0.0
        %1864 = vmatpush.msra.mxu0 0.0
        %1865 = vmatpush.msra.mxu0 0.0
        %1866 = vmatpush.msra.mxu0 0.0
        %1867 = vmatpush.msra.mxu0 0.0
        %1868 = vmatpush.msra.mxu0 0.0
        %1869 = vmatpush.msra.mxu0 0.0
        %v1870 = vand.u32 %v1796, 4294901760
        %v1871 = vsub.f32 %v1796, %v1870
        %1872 = vmatpush.msra.mxu0 %v1871
        %v1873 = vand.u32 %v1801, 4294901760
        %v1874 = vsub.f32 %v1801, %v1873
        %1875 = vmatmul.f32.gmra.mxu0 %v1874
        %v1876 = vpop.f32.mrf.mxu0
        %v1877 = vadd.f32 %v1853, %v1876
        %1878 = vdwg.mxu0
        %1879 = vmatpush.msra.mxu0 0.0
        %1880 = vmatpush.msra.mxu0 0.0
        %1881 = vmatpush.msra.mxu0 0.0
        %1882 = vmatpush.msra.mxu0 0.0
        %1883 = vmatpush.msra.mxu0 0.0
        %1884 = vmatpush.msra.mxu0 0.0
        %1885 = vmatpush.msra.mxu0 0.0
        %1886 = vmatpush.msra.mxu0 0.0
        %1887 = vmatpush.msra.mxu0 0.0
        %1888 = vmatpush.msra.mxu0 0.0
        %1889 = vmatpush.msra.mxu0 0.0
        %1890 = vmatpush.msra.mxu0 0.0
        %1891 = vmatpush.msra.mxu0 0.0
        %1892 = vmatpush.msra.mxu0 0.0
        %1893 = vmatpush.msra.mxu0 0.0
        %v1894 = vand.u32 %v1796, 4294901760
        %1895 = vmatpush.msra.mxu0 %v1894
        %v1896 = vand.u32 %v1801, 4294901760
        %v1897 = vsub.f32 %v1801, %v1896
        %v1898 = vand.u32 %v1897, 4294901760
        %1899 = vmatmul.f32.gmra.mxu0 %v1898
        %v1900 = vpop.f32.mrf.mxu0
        %v1901 = vadd.f32 %v1877, %v1900
        %1902 = vdwg.mxu0
        %1903 = vmatpush.msra.mxu0 0.0
        %1904 = vmatpush.msra.mxu0 0.0
        %1905 = vmatpush.msra.mxu0 0.0
        %1906 = vmatpush.msra.mxu0 0.0
        %1907 = vmatpush.msra.mxu0 0.0
        %1908 = vmatpush.msra.mxu0 0.0
        %1909 = vmatpush.msra.mxu0 0.0
        %1910 = vmatpush.msra.mxu0 0.0
        %1911 = vmatpush.msra.mxu0 0.0
        %1912 = vmatpush.msra.mxu0 0.0
        %1913 = vmatpush.msra.mxu0 0.0
        %1914 = vmatpush.msra.mxu0 0.0
        %1915 = vmatpush.msra.mxu0 0.0
        %1916 = vmatpush.msra.mxu0 0.0
        %1917 = vmatpush.msra.mxu0 0.0
        %v1918 = vand.u32 %v1796, 4294901760
        %v1919 = vsub.f32 %v1796, %v1918
        %v1920 = vand.u32 %v1919, 4294901760
        %1921 = vmatpush.msra.mxu0 %v1920
        %v1922 = vand.u32 %v1801, 4294901760
        %1923 = vmatmul.f32.gmra.mxu0 %v1922
        %v1924 = vpop.f32.mrf.mxu0
        %v1925 = vadd.f32 %v1901, %v1924
        %1926 = vdwg.mxu0
        %1927 = vmatpush.msra.mxu0 0.0
        %1928 = vmatpush.msra.mxu0 0.0
        %1929 = vmatpush.msra.mxu0 0.0
        %1930 = vmatpush.msra.mxu0 0.0
        %1931 = vmatpush.msra.mxu0 0.0
        %1932 = vmatpush.msra.mxu0 0.0
        %1933 = vmatpush.msra.mxu0 0.0
        %1934 = vmatpush.msra.mxu0 0.0
        %1935 = vmatpush.msra.mxu0 0.0
        %1936 = vmatpush.msra.mxu0 0.0
        %1937 = vmatpush.msra.mxu0 0.0
        %1938 = vmatpush.msra.mxu0 0.0
        %1939 = vmatpush.msra.mxu0 0.0
        %1940 = vmatpush.msra.mxu0 0.0
        %1941 = vmatpush.msra.mxu0 0.0
        %v1942 = vand.u32 %v1796, 4294901760
        %1943 = vmatpush.msra.mxu0 %v1942
        %v1944 = vand.u32 %v1801, 4294901760
        %1945 = vmatmul.f32.gmra.mxu0 %v1944
        %v1946 = vpop.f32.mrf.mxu0
        %v1947 = vadd.f32 %v1925, %v1946
        %1948 = vdwg.mxu0
        %1949 = vmatpush.msra.mxu0 0.0
        %1950 = vmatpush.msra.mxu0 0.0
        %1951 = vmatpush.msra.mxu0 0.0
        %1952 = vmatpush.msra.mxu0 0.0
        %1953 = vmatpush.msra.mxu0 0.0
        %1954 = vmatpush.msra.mxu0 0.0
        %1955 = vmatpush.msra.mxu0 0.0
        %1956 = vmatpush.msra.mxu0 0.0
        %1957 = vmatpush.msra.mxu0 0.0
        %1958 = vmatpush.msra.mxu0 0.0
        %1959 = vmatpush.msra.mxu0 0.0
        %1960 = vmatpush.msra.mxu0 0.0
        %1961 = vmatpush.msra.mxu0 0.0
        %1962 = vmatpush.msra.mxu0 0.0
        %1963 = vmatpush.msra.mxu0 0.0
        %v1964 = vand.u32 %v1797, 4294901760
        %1965 = vmatpush.msra.mxu0 %v1964
        %v1966 = vand.u32 %v1801, 4294901760
        %v1967 = vsub.f32 %v1801, %v1966
        %v1968 = vand.u32 %v1967, 4294901760
        %v1969 = vsub.f32 %v1967, %v1968
        %v1970 = vand.u32 %v1969, 4294901760
        %1971 = vmatmul.f32.gmra.mxu0 %v1970
        %v1972 = vpop.f32.mrf.mxu0
        %v1973 = vadd.f32 0.0, %v1972
        %1974 = vdwg.mxu0
        %1975 = vmatpush.msra.mxu0 0.0
        %1976 = vmatpush.msra.mxu0 0.0
        %1977 = vmatpush.msra.mxu0 0.0
        %1978 = vmatpush.msra.mxu0 0.0
        %1979 = vmatpush.msra.mxu0 0.0
        %1980 = vmatpush.msra.mxu0 0.0
        %1981 = vmatpush.msra.mxu0 0.0
        %1982 = vmatpush.msra.mxu0 0.0
        %1983 = vmatpush.msra.mxu0 0.0
        %1984 = vmatpush.msra.mxu0 0.0
        %1985 = vmatpush.msra.mxu0 0.0
        %1986 = vmatpush.msra.mxu0 0.0
        %1987 = vmatpush.msra.mxu0 0.0
        %1988 = vmatpush.msra.mxu0 0.0
        %1989 = vmatpush.msra.mxu0 0.0
        %v1990 = vand.u32 %v1797, 4294901760
        %v1991 = vsub.f32 %v1797, %v1990
        %v1992 = vand.u32 %v1991, 4294901760
        %v1993 = vsub.f32 %v1991, %v1992
        %v1994 = vand.u32 %v1993, 4294901760
        %1995 = vmatpush.msra.mxu0 %v1994
        %v1996 = vand.u32 %v1801, 4294901760
        %1997 = vmatmul.f32.gmra.mxu0 %v1996
        %v1998 = vpop.f32.mrf.mxu0
        %v1999 = vadd.f32 %v1973, %v1998
        %2000 = vdwg.mxu0
        %2001 = vmatpush.msra.mxu0 0.0
        %2002 = vmatpush.msra.mxu0 0.0
        %2003 = vmatpush.msra.mxu0 0.0
        %2004 = vmatpush.msra.mxu0 0.0
        %2005 = vmatpush.msra.mxu0 0.0
        %2006 = vmatpush.msra.mxu0 0.0
        %2007 = vmatpush.msra.mxu0 0.0
        %2008 = vmatpush.msra.mxu0 0.0
        %2009 = vmatpush.msra.mxu0 0.0
        %2010 = vmatpush.msra.mxu0 0.0
        %2011 = vmatpush.msra.mxu0 0.0
        %2012 = vmatpush.msra.mxu0 0.0
        %2013 = vmatpush.msra.mxu0 0.0
        %2014 = vmatpush.msra.mxu0 0.0
        %2015 = vmatpush.msra.mxu0 0.0
        %v2016 = vand.u32 %v1797, 4294901760
        %v2017 = vsub.f32 %v1797, %v2016
        %2018 = vmatpush.msra.mxu0 %v2017
        %v2019 = vand.u32 %v1801, 4294901760
        %v2020 = vsub.f32 %v1801, %v2019
        %2021 = vmatmul.f32.gmra.mxu0 %v2020
        %v2022 = vpop.f32.mrf.mxu0
        %v2023 = vadd.f32 %v1999, %v2022
        %2024 = vdwg.mxu0
        %2025 = vmatpush.msra.mxu0 0.0
        %2026 = vmatpush.msra.mxu0 0.0
        %2027 = vmatpush.msra.mxu0 0.0
        %2028 = vmatpush.msra.mxu0 0.0
        %2029 = vmatpush.msra.mxu0 0.0
        %2030 = vmatpush.msra.mxu0 0.0
        %2031 = vmatpush.msra.mxu0 0.0
        %2032 = vmatpush.msra.mxu0 0.0
        %2033 = vmatpush.msra.mxu0 0.0
        %2034 = vmatpush.msra.mxu0 0.0
        %2035 = vmatpush.msra.mxu0 0.0
        %2036 = vmatpush.msra.mxu0 0.0
        %2037 = vmatpush.msra.mxu0 0.0
        %2038 = vmatpush.msra.mxu0 0.0
        %2039 = vmatpush.msra.mxu0 0.0
        %v2040 = vand.u32 %v1797, 4294901760
        %2041 = vmatpush.msra.mxu0 %v2040
        %v2042 = vand.u32 %v1801, 4294901760
        %v2043 = vsub.f32 %v1801, %v2042
        %v2044 = vand.u32 %v2043, 4294901760
        %2045 = vmatmul.f32.gmra.mxu0 %v2044
        %v2046 = vpop.f32.mrf.mxu0
        %v2047 = vadd.f32 %v2023, %v2046
        %2048 = vdwg.mxu0
        %2049 = vmatpush.msra.mxu0 0.0
        %2050 = vmatpush.msra.mxu0 0.0
        %2051 = vmatpush.msra.mxu0 0.0
        %2052 = vmatpush.msra.mxu0 0.0
        %2053 = vmatpush.msra.mxu0 0.0
        %2054 = vmatpush.msra.mxu0 0.0
        %2055 = vmatpush.msra.mxu0 0.0
        %2056 = vmatpush.msra.mxu0 0.0
        %2057 = vmatpush.msra.mxu0 0.0
        %2058 = vmatpush.msra.mxu0 0.0
        %2059 = vmatpush.msra.mxu0 0.0
        %2060 = vmatpush.msra.mxu0 0.0
        %2061 = vmatpush.msra.mxu0 0.0
        %2062 = vmatpush.msra.mxu0 0.0
        %2063 = vmatpush.msra.mxu0 0.0
        %v2064 = vand.u32 %v1797, 4294901760
        %v2065 = vsub.f32 %v1797, %v2064
        %v2066 = vand.u32 %v2065, 4294901760
        %2067 = vmatpush.msra.mxu0 %v2066
        %v2068 = vand.u32 %v1801, 4294901760
        %2069 = vmatmul.f32.gmra.mxu0 %v2068
        %v2070 = vpop.f32.mrf.mxu0
        %v2071 = vadd.f32 %v2047, %v2070
        %2072 = vdwg.mxu0
        %2073 = vmatpush.msra.mxu0 0.0
        %2074 = vmatpush.msra.mxu0 0.0
        %2075 = vmatpush.msra.mxu0 0.0
        %2076 = vmatpush.msra.mxu0 0.0
        %2077 = vmatpush.msra.mxu0 0.0
        %2078 = vmatpush.msra.mxu0 0.0
        %2079 = vmatpush.msra.mxu0 0.0
        %2080 = vmatpush.msra.mxu0 0.0
        %2081 = vmatpush.msra.mxu0 0.0
        %2082 = vmatpush.msra.mxu0 0.0
        %2083 = vmatpush.msra.mxu0 0.0
        %2084 = vmatpush.msra.mxu0 0.0
        %2085 = vmatpush.msra.mxu0 0.0
        %2086 = vmatpush.msra.mxu0 0.0
        %2087 = vmatpush.msra.mxu0 0.0
        %v2088 = vand.u32 %v1797, 4294901760
        %2089 = vmatpush.msra.mxu0 %v2088
        %v2090 = vand.u32 %v1801, 4294901760
        %2091 = vmatmul.f32.gmra.mxu0 %v2090
        %v2092 = vpop.f32.mrf.mxu0
        %v2093 = vadd.f32 %v2071, %v2092
        %2094 = vdwg.mxu0
        %v2095 = vadd.f32 %v1780, %v1947
        %v2096 = vadd.f32 %v1781, %v2093
        %2097 = vrot.lane.b32.xlu0 %v224, 113
        %v2098 = vpop.permute.xlu0 %2097
        %2099 = vrot.lane.b32.xlu0 %v225, 113
        %v2100 = vpop.permute.xlu0 %2099
        %vm2101 = vcmp.lt.s32.totalorder %v231, 113
        %v2102 = vsel %vm2101, %v2098, %v2100
        %v2103 = vsel %vm2101, %v2100, %v2098
        %s2104 = scalar_lea.vmem %s0, 12
        %v2105 = vld [vmem:[%s2104] sm:$0x3]
        %v2107 = vperm.slane %v2105, 0
        %v2108 = vperm.slane %v2105, 1
        %v2111 = vmul.f32 %v2102, %v2107
        %v2112 = vmul.f32 %v2103, %v2108
        %s2113 = scalar_lea.vmem %s1, 48
        %v2114 = vld [vmem:[%s2113] sm:$0xff]
        %v2116 = vsel %vm262, %v2114, 0
        %2118 = vmatpush.msra.mxu0 0.0
        %2119 = vmatpush.msra.mxu0 0.0
        %2120 = vmatpush.msra.mxu0 0.0
        %2121 = vmatpush.msra.mxu0 0.0
        %2122 = vmatpush.msra.mxu0 0.0
        %2123 = vmatpush.msra.mxu0 0.0
        %2124 = vmatpush.msra.mxu0 0.0
        %2125 = vmatpush.msra.mxu0 0.0
        %2126 = vmatpush.msra.mxu0 0.0
        %2127 = vmatpush.msra.mxu0 0.0
        %2128 = vmatpush.msra.mxu0 0.0
        %2129 = vmatpush.msra.mxu0 0.0
        %2130 = vmatpush.msra.mxu0 0.0
        %2131 = vmatpush.msra.mxu0 0.0
        %2132 = vmatpush.msra.mxu0 0.0
        %v2133 = vand.u32 %v2111, 4294901760
        %2134 = vmatpush.msra.mxu0 %v2133
        %v2135 = vand.u32 %v2116, 4294901760
        %v2136 = vsub.f32 %v2116, %v2135
        %v2137 = vand.u32 %v2136, 4294901760
        %v2138 = vsub.f32 %v2136, %v2137
        %v2139 = vand.u32 %v2138, 4294901760
        %2140 = vmatmul.f32.gmra.mxu0 %v2139
        %v2141 = vpop.f32.mrf.mxu0
        %v2142 = vadd.f32 0.0, %v2141
        %2143 = vdwg.mxu0
        %2144 = vmatpush.msra.mxu0 0.0
        %2145 = vmatpush.msra.mxu0 0.0
        %2146 = vmatpush.msra.mxu0 0.0
        %2147 = vmatpush.msra.mxu0 0.0
        %2148 = vmatpush.msra.mxu0 0.0
        %2149 = vmatpush.msra.mxu0 0.0
        %2150 = vmatpush.msra.mxu0 0.0
        %2151 = vmatpush.msra.mxu0 0.0
        %2152 = vmatpush.msra.mxu0 0.0
        %2153 = vmatpush.msra.mxu0 0.0
        %2154 = vmatpush.msra.mxu0 0.0
        %2155 = vmatpush.msra.mxu0 0.0
        %2156 = vmatpush.msra.mxu0 0.0
        %2157 = vmatpush.msra.mxu0 0.0
        %2158 = vmatpush.msra.mxu0 0.0
        %v2159 = vand.u32 %v2111, 4294901760
        %v2160 = vsub.f32 %v2111, %v2159
        %v2161 = vand.u32 %v2160, 4294901760
        %v2162 = vsub.f32 %v2160, %v2161
        %v2163 = vand.u32 %v2162, 4294901760
        %2164 = vmatpush.msra.mxu0 %v2163
        %v2165 = vand.u32 %v2116, 4294901760
        %2166 = vmatmul.f32.gmra.mxu0 %v2165
        %v2167 = vpop.f32.mrf.mxu0
        %v2168 = vadd.f32 %v2142, %v2167
        %2169 = vdwg.mxu0
        %2170 = vmatpush.msra.mxu0 0.0
        %2171 = vmatpush.msra.mxu0 0.0
        %2172 = vmatpush.msra.mxu0 0.0
        %2173 = vmatpush.msra.mxu0 0.0
        %2174 = vmatpush.msra.mxu0 0.0
        %2175 = vmatpush.msra.mxu0 0.0
        %2176 = vmatpush.msra.mxu0 0.0
        %2177 = vmatpush.msra.mxu0 0.0
        %2178 = vmatpush.msra.mxu0 0.0
        %2179 = vmatpush.msra.mxu0 0.0
        %2180 = vmatpush.msra.mxu0 0.0
        %2181 = vmatpush.msra.mxu0 0.0
        %2182 = vmatpush.msra.mxu0 0.0
        %2183 = vmatpush.msra.mxu0 0.0
        %2184 = vmatpush.msra.mxu0 0.0
        %v2185 = vand.u32 %v2111, 4294901760
        %v2186 = vsub.f32 %v2111, %v2185
        %2187 = vmatpush.msra.mxu0 %v2186
        %v2188 = vand.u32 %v2116, 4294901760
        %v2189 = vsub.f32 %v2116, %v2188
        %2190 = vmatmul.f32.gmra.mxu0 %v2189
        %v2191 = vpop.f32.mrf.mxu0
        %v2192 = vadd.f32 %v2168, %v2191
        %2193 = vdwg.mxu0
        %2194 = vmatpush.msra.mxu0 0.0
        %2195 = vmatpush.msra.mxu0 0.0
        %2196 = vmatpush.msra.mxu0 0.0
        %2197 = vmatpush.msra.mxu0 0.0
        %2198 = vmatpush.msra.mxu0 0.0
        %2199 = vmatpush.msra.mxu0 0.0
        %2200 = vmatpush.msra.mxu0 0.0
        %2201 = vmatpush.msra.mxu0 0.0
        %2202 = vmatpush.msra.mxu0 0.0
        %2203 = vmatpush.msra.mxu0 0.0
        %2204 = vmatpush.msra.mxu0 0.0
        %2205 = vmatpush.msra.mxu0 0.0
        %2206 = vmatpush.msra.mxu0 0.0
        %2207 = vmatpush.msra.mxu0 0.0
        %2208 = vmatpush.msra.mxu0 0.0
        %v2209 = vand.u32 %v2111, 4294901760
        %2210 = vmatpush.msra.mxu0 %v2209
        %v2211 = vand.u32 %v2116, 4294901760
        %v2212 = vsub.f32 %v2116, %v2211
        %v2213 = vand.u32 %v2212, 4294901760
        %2214 = vmatmul.f32.gmra.mxu0 %v2213
        %v2215 = vpop.f32.mrf.mxu0
        %v2216 = vadd.f32 %v2192, %v2215
        %2217 = vdwg.mxu0
        %2218 = vmatpush.msra.mxu0 0.0
        %2219 = vmatpush.msra.mxu0 0.0
        %2220 = vmatpush.msra.mxu0 0.0
        %2221 = vmatpush.msra.mxu0 0.0
        %2222 = vmatpush.msra.mxu0 0.0
        %2223 = vmatpush.msra.mxu0 0.0
        %2224 = vmatpush.msra.mxu0 0.0
        %2225 = vmatpush.msra.mxu0 0.0
        %2226 = vmatpush.msra.mxu0 0.0
        %2227 = vmatpush.msra.mxu0 0.0
        %2228 = vmatpush.msra.mxu0 0.0
        %2229 = vmatpush.msra.mxu0 0.0
        %2230 = vmatpush.msra.mxu0 0.0
        %2231 = vmatpush.msra.mxu0 0.0
        %2232 = vmatpush.msra.mxu0 0.0
        %v2233 = vand.u32 %v2111, 4294901760
        %v2234 = vsub.f32 %v2111, %v2233
        %v2235 = vand.u32 %v2234, 4294901760
        %2236 = vmatpush.msra.mxu0 %v2235
        %v2237 = vand.u32 %v2116, 4294901760
        %2238 = vmatmul.f32.gmra.mxu0 %v2237
        %v2239 = vpop.f32.mrf.mxu0
        %v2240 = vadd.f32 %v2216, %v2239
        %2241 = vdwg.mxu0
        %2242 = vmatpush.msra.mxu0 0.0
        %2243 = vmatpush.msra.mxu0 0.0
        %2244 = vmatpush.msra.mxu0 0.0
        %2245 = vmatpush.msra.mxu0 0.0
        %2246 = vmatpush.msra.mxu0 0.0
        %2247 = vmatpush.msra.mxu0 0.0
        %2248 = vmatpush.msra.mxu0 0.0
        %2249 = vmatpush.msra.mxu0 0.0
        %2250 = vmatpush.msra.mxu0 0.0
        %2251 = vmatpush.msra.mxu0 0.0
        %2252 = vmatpush.msra.mxu0 0.0
        %2253 = vmatpush.msra.mxu0 0.0
        %2254 = vmatpush.msra.mxu0 0.0
        %2255 = vmatpush.msra.mxu0 0.0
        %2256 = vmatpush.msra.mxu0 0.0
        %v2257 = vand.u32 %v2111, 4294901760
        %2258 = vmatpush.msra.mxu0 %v2257
        %v2259 = vand.u32 %v2116, 4294901760
        %2260 = vmatmul.f32.gmra.mxu0 %v2259
        %v2261 = vpop.f32.mrf.mxu0
        %v2262 = vadd.f32 %v2240, %v2261
        %2263 = vdwg.mxu0
        %2264 = vmatpush.msra.mxu0 0.0
        %2265 = vmatpush.msra.mxu0 0.0
        %2266 = vmatpush.msra.mxu0 0.0
        %2267 = vmatpush.msra.mxu0 0.0
        %2268 = vmatpush.msra.mxu0 0.0
        %2269 = vmatpush.msra.mxu0 0.0
        %2270 = vmatpush.msra.mxu0 0.0
        %2271 = vmatpush.msra.mxu0 0.0
        %2272 = vmatpush.msra.mxu0 0.0
        %2273 = vmatpush.msra.mxu0 0.0
        %2274 = vmatpush.msra.mxu0 0.0
        %2275 = vmatpush.msra.mxu0 0.0
        %2276 = vmatpush.msra.mxu0 0.0
        %2277 = vmatpush.msra.mxu0 0.0
        %2278 = vmatpush.msra.mxu0 0.0
        %v2279 = vand.u32 %v2112, 4294901760
        %2280 = vmatpush.msra.mxu0 %v2279
        %v2281 = vand.u32 %v2116, 4294901760
        %v2282 = vsub.f32 %v2116, %v2281
        %v2283 = vand.u32 %v2282, 4294901760
        %v2284 = vsub.f32 %v2282, %v2283
        %v2285 = vand.u32 %v2284, 4294901760
        %2286 = vmatmul.f32.gmra.mxu0 %v2285
        %v2287 = vpop.f32.mrf.mxu0
        %v2288 = vadd.f32 0.0, %v2287
        %2289 = vdwg.mxu0
        %2290 = vmatpush.msra.mxu0 0.0
        %2291 = vmatpush.msra.mxu0 0.0
        %2292 = vmatpush.msra.mxu0 0.0
        %2293 = vmatpush.msra.mxu0 0.0
        %2294 = vmatpush.msra.mxu0 0.0
        %2295 = vmatpush.msra.mxu0 0.0
        %2296 = vmatpush.msra.mxu0 0.0
        %2297 = vmatpush.msra.mxu0 0.0
        %2298 = vmatpush.msra.mxu0 0.0
        %2299 = vmatpush.msra.mxu0 0.0
        %2300 = vmatpush.msra.mxu0 0.0
        %2301 = vmatpush.msra.mxu0 0.0
        %2302 = vmatpush.msra.mxu0 0.0
        %2303 = vmatpush.msra.mxu0 0.0
        %2304 = vmatpush.msra.mxu0 0.0
        %v2305 = vand.u32 %v2112, 4294901760
        %v2306 = vsub.f32 %v2112, %v2305
        %v2307 = vand.u32 %v2306, 4294901760
        %v2308 = vsub.f32 %v2306, %v2307
        %v2309 = vand.u32 %v2308, 4294901760
        %2310 = vmatpush.msra.mxu0 %v2309
        %v2311 = vand.u32 %v2116, 4294901760
        %2312 = vmatmul.f32.gmra.mxu0 %v2311
        %v2313 = vpop.f32.mrf.mxu0
        %v2314 = vadd.f32 %v2288, %v2313
        %2315 = vdwg.mxu0
        %2316 = vmatpush.msra.mxu0 0.0
        %2317 = vmatpush.msra.mxu0 0.0
        %2318 = vmatpush.msra.mxu0 0.0
        %2319 = vmatpush.msra.mxu0 0.0
        %2320 = vmatpush.msra.mxu0 0.0
        %2321 = vmatpush.msra.mxu0 0.0
        %2322 = vmatpush.msra.mxu0 0.0
        %2323 = vmatpush.msra.mxu0 0.0
        %2324 = vmatpush.msra.mxu0 0.0
        %2325 = vmatpush.msra.mxu0 0.0
        %2326 = vmatpush.msra.mxu0 0.0
        %2327 = vmatpush.msra.mxu0 0.0
        %2328 = vmatpush.msra.mxu0 0.0
        %2329 = vmatpush.msra.mxu0 0.0
        %2330 = vmatpush.msra.mxu0 0.0
        %v2331 = vand.u32 %v2112, 4294901760
        %v2332 = vsub.f32 %v2112, %v2331
        %2333 = vmatpush.msra.mxu0 %v2332
        %v2334 = vand.u32 %v2116, 4294901760
        %v2335 = vsub.f32 %v2116, %v2334
        %2336 = vmatmul.f32.gmra.mxu0 %v2335
        %v2337 = vpop.f32.mrf.mxu0
        %v2338 = vadd.f32 %v2314, %v2337
        %2339 = vdwg.mxu0
        %2340 = vmatpush.msra.mxu0 0.0
        %2341 = vmatpush.msra.mxu0 0.0
        %2342 = vmatpush.msra.mxu0 0.0
        %2343 = vmatpush.msra.mxu0 0.0
        %2344 = vmatpush.msra.mxu0 0.0
        %2345 = vmatpush.msra.mxu0 0.0
        %2346 = vmatpush.msra.mxu0 0.0
        %2347 = vmatpush.msra.mxu0 0.0
        %2348 = vmatpush.msra.mxu0 0.0
        %2349 = vmatpush.msra.mxu0 0.0
        %2350 = vmatpush.msra.mxu0 0.0
        %2351 = vmatpush.msra.mxu0 0.0
        %2352 = vmatpush.msra.mxu0 0.0
        %2353 = vmatpush.msra.mxu0 0.0
        %2354 = vmatpush.msra.mxu0 0.0
        %v2355 = vand.u32 %v2112, 4294901760
        %2356 = vmatpush.msra.mxu0 %v2355
        %v2357 = vand.u32 %v2116, 4294901760
        %v2358 = vsub.f32 %v2116, %v2357
        %v2359 = vand.u32 %v2358, 4294901760
        %2360 = vmatmul.f32.gmra.mxu0 %v2359
        %v2361 = vpop.f32.mrf.mxu0
        %v2362 = vadd.f32 %v2338, %v2361
        %2363 = vdwg.mxu0
        %2364 = vmatpush.msra.mxu0 0.0
        %2365 = vmatpush.msra.mxu0 0.0
        %2366 = vmatpush.msra.mxu0 0.0
        %2367 = vmatpush.msra.mxu0 0.0
        %2368 = vmatpush.msra.mxu0 0.0
        %2369 = vmatpush.msra.mxu0 0.0
        %2370 = vmatpush.msra.mxu0 0.0
        %2371 = vmatpush.msra.mxu0 0.0
        %2372 = vmatpush.msra.mxu0 0.0
        %2373 = vmatpush.msra.mxu0 0.0
        %2374 = vmatpush.msra.mxu0 0.0
        %2375 = vmatpush.msra.mxu0 0.0
        %2376 = vmatpush.msra.mxu0 0.0
        %2377 = vmatpush.msra.mxu0 0.0
        %2378 = vmatpush.msra.mxu0 0.0
        %v2379 = vand.u32 %v2112, 4294901760
        %v2380 = vsub.f32 %v2112, %v2379
        %v2381 = vand.u32 %v2380, 4294901760
        %2382 = vmatpush.msra.mxu0 %v2381
        %v2383 = vand.u32 %v2116, 4294901760
        %2384 = vmatmul.f32.gmra.mxu0 %v2383
        %v2385 = vpop.f32.mrf.mxu0
        %v2386 = vadd.f32 %v2362, %v2385
        %2387 = vdwg.mxu0
        %2388 = vmatpush.msra.mxu0 0.0
        %2389 = vmatpush.msra.mxu0 0.0
        %2390 = vmatpush.msra.mxu0 0.0
        %2391 = vmatpush.msra.mxu0 0.0
        %2392 = vmatpush.msra.mxu0 0.0
        %2393 = vmatpush.msra.mxu0 0.0
        %2394 = vmatpush.msra.mxu0 0.0
        %2395 = vmatpush.msra.mxu0 0.0
        %2396 = vmatpush.msra.mxu0 0.0
        %2397 = vmatpush.msra.mxu0 0.0
        %2398 = vmatpush.msra.mxu0 0.0
        %2399 = vmatpush.msra.mxu0 0.0
        %2400 = vmatpush.msra.mxu0 0.0
        %2401 = vmatpush.msra.mxu0 0.0
        %2402 = vmatpush.msra.mxu0 0.0
        %v2403 = vand.u32 %v2112, 4294901760
        %2404 = vmatpush.msra.mxu0 %v2403
        %v2405 = vand.u32 %v2116, 4294901760
        %2406 = vmatmul.f32.gmra.mxu0 %v2405
        %v2407 = vpop.f32.mrf.mxu0
        %v2408 = vadd.f32 %v2386, %v2407
        %2409 = vdwg.mxu0
        %v2410 = vadd.f32 %v2095, %v2262
        %v2411 = vadd.f32 %v2096, %v2408
        %2412 = vrot.lane.b32.xlu0 %v224, 112
        %v2413 = vpop.permute.xlu0 %2412
        %2414 = vrot.lane.b32.xlu0 %v225, 112
        %v2415 = vpop.permute.xlu0 %2414
        %vm2416 = vcmp.lt.s32.totalorder %v231, 112
        %v2417 = vsel %vm2416, %v2413, %v2415
        %v2418 = vsel %vm2416, %v2415, %v2413
        %s2419 = scalar_lea.vmem %s0, 14
        %v2420 = vld [vmem:[%s2419] sm:$0x3]
        %v2422 = vperm.slane %v2420, 0
        %v2423 = vperm.slane %v2420, 1
        %v2426 = vmul.f32 %v2417, %v2422
        %v2427 = vmul.f32 %v2418, %v2423
        %s2428 = scalar_lea.vmem %s1, 56
        %v2429 = vld [vmem:[%s2428] sm:$0xff]
        %v2431 = vsel %vm262, %v2429, 0
        %2433 = vmatpush.msra.mxu0 0.0
        %2434 = vmatpush.msra.mxu0 0.0
        %2435 = vmatpush.msra.mxu0 0.0
        %2436 = vmatpush.msra.mxu0 0.0
        %2437 = vmatpush.msra.mxu0 0.0
        %2438 = vmatpush.msra.mxu0 0.0
        %2439 = vmatpush.msra.mxu0 0.0
        %2440 = vmatpush.msra.mxu0 0.0
        %2441 = vmatpush.msra.mxu0 0.0
        %2442 = vmatpush.msra.mxu0 0.0
        %2443 = vmatpush.msra.mxu0 0.0
        %2444 = vmatpush.msra.mxu0 0.0
        %2445 = vmatpush.msra.mxu0 0.0
        %2446 = vmatpush.msra.mxu0 0.0
        %2447 = vmatpush.msra.mxu0 0.0
        %v2448 = vand.u32 %v2426, 4294901760
        %2449 = vmatpush.msra.mxu0 %v2448
        %v2450 = vand.u32 %v2431, 4294901760
        %v2451 = vsub.f32 %v2431, %v2450
        %v2452 = vand.u32 %v2451, 4294901760
        %v2453 = vsub.f32 %v2451, %v2452
        %v2454 = vand.u32 %v2453, 4294901760
        %2455 = vmatmul.f32.gmra.mxu0 %v2454
        %v2456 = vpop.f32.mrf.mxu0
        %v2457 = vadd.f32 0.0, %v2456
        %2458 = vdwg.mxu0
        %2459 = vmatpush.msra.mxu0 0.0
        %2460 = vmatpush.msra.mxu0 0.0
        %2461 = vmatpush.msra.mxu0 0.0
        %2462 = vmatpush.msra.mxu0 0.0
        %2463 = vmatpush.msra.mxu0 0.0
        %2464 = vmatpush.msra.mxu0 0.0
        %2465 = vmatpush.msra.mxu0 0.0
        %2466 = vmatpush.msra.mxu0 0.0
        %2467 = vmatpush.msra.mxu0 0.0
        %2468 = vmatpush.msra.mxu0 0.0
        %2469 = vmatpush.msra.mxu0 0.0
        %2470 = vmatpush.msra.mxu0 0.0
        %2471 = vmatpush.msra.mxu0 0.0
        %2472 = vmatpush.msra.mxu0 0.0
        %2473 = vmatpush.msra.mxu0 0.0
        %v2474 = vand.u32 %v2426, 4294901760
        %v2475 = vsub.f32 %v2426, %v2474
        %v2476 = vand.u32 %v2475, 4294901760
        %v2477 = vsub.f32 %v2475, %v2476
        %v2478 = vand.u32 %v2477, 4294901760
        %2479 = vmatpush.msra.mxu0 %v2478
        %v2480 = vand.u32 %v2431, 4294901760
        %2481 = vmatmul.f32.gmra.mxu0 %v2480
        %v2482 = vpop.f32.mrf.mxu0
        %v2483 = vadd.f32 %v2457, %v2482
        %2484 = vdwg.mxu0
        %2485 = vmatpush.msra.mxu0 0.0
        %2486 = vmatpush.msra.mxu0 0.0
        %2487 = vmatpush.msra.mxu0 0.0
        %2488 = vmatpush.msra.mxu0 0.0
        %2489 = vmatpush.msra.mxu0 0.0
        %2490 = vmatpush.msra.mxu0 0.0
        %2491 = vmatpush.msra.mxu0 0.0
        %2492 = vmatpush.msra.mxu0 0.0
        %2493 = vmatpush.msra.mxu0 0.0
        %2494 = vmatpush.msra.mxu0 0.0
        %2495 = vmatpush.msra.mxu0 0.0
        %2496 = vmatpush.msra.mxu0 0.0
        %2497 = vmatpush.msra.mxu0 0.0
        %2498 = vmatpush.msra.mxu0 0.0
        %2499 = vmatpush.msra.mxu0 0.0
        %v2500 = vand.u32 %v2426, 4294901760
        %v2501 = vsub.f32 %v2426, %v2500
        %2502 = vmatpush.msra.mxu0 %v2501
        %v2503 = vand.u32 %v2431, 4294901760
        %v2504 = vsub.f32 %v2431, %v2503
        %2505 = vmatmul.f32.gmra.mxu0 %v2504
        %v2506 = vpop.f32.mrf.mxu0
        %v2507 = vadd.f32 %v2483, %v2506
        %2508 = vdwg.mxu0
        %2509 = vmatpush.msra.mxu0 0.0
        %2510 = vmatpush.msra.mxu0 0.0
        %2511 = vmatpush.msra.mxu0 0.0
        %2512 = vmatpush.msra.mxu0 0.0
        %2513 = vmatpush.msra.mxu0 0.0
        %2514 = vmatpush.msra.mxu0 0.0
        %2515 = vmatpush.msra.mxu0 0.0
        %2516 = vmatpush.msra.mxu0 0.0
        %2517 = vmatpush.msra.mxu0 0.0
        %2518 = vmatpush.msra.mxu0 0.0
        %2519 = vmatpush.msra.mxu0 0.0
        %2520 = vmatpush.msra.mxu0 0.0
        %2521 = vmatpush.msra.mxu0 0.0
        %2522 = vmatpush.msra.mxu0 0.0
        %2523 = vmatpush.msra.mxu0 0.0
        %v2524 = vand.u32 %v2426, 4294901760
        %2525 = vmatpush.msra.mxu0 %v2524
        %v2526 = vand.u32 %v2431, 4294901760
        %v2527 = vsub.f32 %v2431, %v2526
        %v2528 = vand.u32 %v2527, 4294901760
        %2529 = vmatmul.f32.gmra.mxu0 %v2528
        %v2530 = vpop.f32.mrf.mxu0
        %v2531 = vadd.f32 %v2507, %v2530
        %2532 = vdwg.mxu0
        %2533 = vmatpush.msra.mxu0 0.0
        %2534 = vmatpush.msra.mxu0 0.0
        %2535 = vmatpush.msra.mxu0 0.0
        %2536 = vmatpush.msra.mxu0 0.0
        %2537 = vmatpush.msra.mxu0 0.0
        %2538 = vmatpush.msra.mxu0 0.0
        %2539 = vmatpush.msra.mxu0 0.0
        %2540 = vmatpush.msra.mxu0 0.0
        %2541 = vmatpush.msra.mxu0 0.0
        %2542 = vmatpush.msra.mxu0 0.0
        %2543 = vmatpush.msra.mxu0 0.0
        %2544 = vmatpush.msra.mxu0 0.0
        %2545 = vmatpush.msra.mxu0 0.0
        %2546 = vmatpush.msra.mxu0 0.0
        %2547 = vmatpush.msra.mxu0 0.0
        %v2548 = vand.u32 %v2426, 4294901760
        %v2549 = vsub.f32 %v2426, %v2548
        %v2550 = vand.u32 %v2549, 4294901760
        %2551 = vmatpush.msra.mxu0 %v2550
        %v2552 = vand.u32 %v2431, 4294901760
        %2553 = vmatmul.f32.gmra.mxu0 %v2552
        %v2554 = vpop.f32.mrf.mxu0
        %v2555 = vadd.f32 %v2531, %v2554
        %2556 = vdwg.mxu0
        %2557 = vmatpush.msra.mxu0 0.0
        %2558 = vmatpush.msra.mxu0 0.0
        %2559 = vmatpush.msra.mxu0 0.0
        %2560 = vmatpush.msra.mxu0 0.0
        %2561 = vmatpush.msra.mxu0 0.0
        %2562 = vmatpush.msra.mxu0 0.0
        %2563 = vmatpush.msra.mxu0 0.0
        %2564 = vmatpush.msra.mxu0 0.0
        %2565 = vmatpush.msra.mxu0 0.0
        %2566 = vmatpush.msra.mxu0 0.0
        %2567 = vmatpush.msra.mxu0 0.0
        %2568 = vmatpush.msra.mxu0 0.0
        %2569 = vmatpush.msra.mxu0 0.0
        %2570 = vmatpush.msra.mxu0 0.0
        %2571 = vmatpush.msra.mxu0 0.0
        %v2572 = vand.u32 %v2426, 4294901760
        %2573 = vmatpush.msra.mxu0 %v2572
        %v2574 = vand.u32 %v2431, 4294901760
        %2575 = vmatmul.f32.gmra.mxu0 %v2574
        %v2576 = vpop.f32.mrf.mxu0
        %v2577 = vadd.f32 %v2555, %v2576
        %2578 = vdwg.mxu0
        %2579 = vmatpush.msra.mxu0 0.0
        %2580 = vmatpush.msra.mxu0 0.0
        %2581 = vmatpush.msra.mxu0 0.0
        %2582 = vmatpush.msra.mxu0 0.0
        %2583 = vmatpush.msra.mxu0 0.0
        %2584 = vmatpush.msra.mxu0 0.0
        %2585 = vmatpush.msra.mxu0 0.0
        %2586 = vmatpush.msra.mxu0 0.0
        %2587 = vmatpush.msra.mxu0 0.0
        %2588 = vmatpush.msra.mxu0 0.0
        %2589 = vmatpush.msra.mxu0 0.0
        %2590 = vmatpush.msra.mxu0 0.0
        %2591 = vmatpush.msra.mxu0 0.0
        %2592 = vmatpush.msra.mxu0 0.0
        %2593 = vmatpush.msra.mxu0 0.0
        %v2594 = vand.u32 %v2427, 4294901760
        %2595 = vmatpush.msra.mxu0 %v2594
        %v2596 = vand.u32 %v2431, 4294901760
        %v2597 = vsub.f32 %v2431, %v2596
        %v2598 = vand.u32 %v2597, 4294901760
        %v2599 = vsub.f32 %v2597, %v2598
        %v2600 = vand.u32 %v2599, 4294901760
        %2601 = vmatmul.f32.gmra.mxu0 %v2600
        %v2602 = vpop.f32.mrf.mxu0
        %v2603 = vadd.f32 0.0, %v2602
        %2604 = vdwg.mxu0
        %2605 = vmatpush.msra.mxu0 0.0
        %2606 = vmatpush.msra.mxu0 0.0
        %2607 = vmatpush.msra.mxu0 0.0
        %2608 = vmatpush.msra.mxu0 0.0
        %2609 = vmatpush.msra.mxu0 0.0
        %2610 = vmatpush.msra.mxu0 0.0
        %2611 = vmatpush.msra.mxu0 0.0
        %2612 = vmatpush.msra.mxu0 0.0
        %2613 = vmatpush.msra.mxu0 0.0
        %2614 = vmatpush.msra.mxu0 0.0
        %2615 = vmatpush.msra.mxu0 0.0
        %2616 = vmatpush.msra.mxu0 0.0
        %2617 = vmatpush.msra.mxu0 0.0
        %2618 = vmatpush.msra.mxu0 0.0
        %2619 = vmatpush.msra.mxu0 0.0
        %v2620 = vand.u32 %v2427, 4294901760
        %v2621 = vsub.f32 %v2427, %v2620
        %v2622 = vand.u32 %v2621, 4294901760
        %v2623 = vsub.f32 %v2621, %v2622
        %v2624 = vand.u32 %v2623, 4294901760
        %2625 = vmatpush.msra.mxu0 %v2624
        %v2626 = vand.u32 %v2431, 4294901760
        %2627 = vmatmul.f32.gmra.mxu0 %v2626
        %v2628 = vpop.f32.mrf.mxu0
        %v2629 = vadd.f32 %v2603, %v2628
        %2630 = vdwg.mxu0
        %2631 = vmatpush.msra.mxu0 0.0
        %2632 = vmatpush.msra.mxu0 0.0
        %2633 = vmatpush.msra.mxu0 0.0
        %2634 = vmatpush.msra.mxu0 0.0
        %2635 = vmatpush.msra.mxu0 0.0
        %2636 = vmatpush.msra.mxu0 0.0
        %2637 = vmatpush.msra.mxu0 0.0
        %2638 = vmatpush.msra.mxu0 0.0
        %2639 = vmatpush.msra.mxu0 0.0
        %2640 = vmatpush.msra.mxu0 0.0
        %2641 = vmatpush.msra.mxu0 0.0
        %2642 = vmatpush.msra.mxu0 0.0
        %2643 = vmatpush.msra.mxu0 0.0
        %2644 = vmatpush.msra.mxu0 0.0
        %2645 = vmatpush.msra.mxu0 0.0
        %v2646 = vand.u32 %v2427, 4294901760
        %v2647 = vsub.f32 %v2427, %v2646
        %2648 = vmatpush.msra.mxu0 %v2647
        %v2649 = vand.u32 %v2431, 4294901760
        %v2650 = vsub.f32 %v2431, %v2649
        %2651 = vmatmul.f32.gmra.mxu0 %v2650
        %v2652 = vpop.f32.mrf.mxu0
        %v2653 = vadd.f32 %v2629, %v2652
        %2654 = vdwg.mxu0
        %2655 = vmatpush.msra.mxu0 0.0
        %2656 = vmatpush.msra.mxu0 0.0
        %2657 = vmatpush.msra.mxu0 0.0
        %2658 = vmatpush.msra.mxu0 0.0
        %2659 = vmatpush.msra.mxu0 0.0
        %2660 = vmatpush.msra.mxu0 0.0
        %2661 = vmatpush.msra.mxu0 0.0
        %2662 = vmatpush.msra.mxu0 0.0
        %2663 = vmatpush.msra.mxu0 0.0
        %2664 = vmatpush.msra.mxu0 0.0
        %2665 = vmatpush.msra.mxu0 0.0
        %2666 = vmatpush.msra.mxu0 0.0
        %2667 = vmatpush.msra.mxu0 0.0
        %2668 = vmatpush.msra.mxu0 0.0
        %2669 = vmatpush.msra.mxu0 0.0
        %v2670 = vand.u32 %v2427, 4294901760
        %2671 = vmatpush.msra.mxu0 %v2670
        %v2672 = vand.u32 %v2431, 4294901760
        %v2673 = vsub.f32 %v2431, %v2672
        %v2674 = vand.u32 %v2673, 4294901760
        %2675 = vmatmul.f32.gmra.mxu0 %v2674
        %v2676 = vpop.f32.mrf.mxu0
        %v2677 = vadd.f32 %v2653, %v2676
        %2678 = vdwg.mxu0
        %2679 = vmatpush.msra.mxu0 0.0
        %2680 = vmatpush.msra.mxu0 0.0
        %2681 = vmatpush.msra.mxu0 0.0
        %2682 = vmatpush.msra.mxu0 0.0
        %2683 = vmatpush.msra.mxu0 0.0
        %2684 = vmatpush.msra.mxu0 0.0
        %2685 = vmatpush.msra.mxu0 0.0
        %2686 = vmatpush.msra.mxu0 0.0
        %2687 = vmatpush.msra.mxu0 0.0
        %2688 = vmatpush.msra.mxu0 0.0
        %2689 = vmatpush.msra.mxu0 0.0
        %2690 = vmatpush.msra.mxu0 0.0
        %2691 = vmatpush.msra.mxu0 0.0
        %2692 = vmatpush.msra.mxu0 0.0
        %2693 = vmatpush.msra.mxu0 0.0
        %v2694 = vand.u32 %v2427, 4294901760
        %v2695 = vsub.f32 %v2427, %v2694
        %v2696 = vand.u32 %v2695, 4294901760
        %2697 = vmatpush.msra.mxu0 %v2696
        %v2698 = vand.u32 %v2431, 4294901760
        %2699 = vmatmul.f32.gmra.mxu0 %v2698
        %v2700 = vpop.f32.mrf.mxu0
        %v2701 = vadd.f32 %v2677, %v2700
        %2702 = vdwg.mxu0
        %2703 = vmatpush.msra.mxu0 0.0
        %2704 = vmatpush.msra.mxu0 0.0
        %2705 = vmatpush.msra.mxu0 0.0
        %2706 = vmatpush.msra.mxu0 0.0
        %2707 = vmatpush.msra.mxu0 0.0
        %2708 = vmatpush.msra.mxu0 0.0
        %2709 = vmatpush.msra.mxu0 0.0
        %2710 = vmatpush.msra.mxu0 0.0
        %2711 = vmatpush.msra.mxu0 0.0
        %2712 = vmatpush.msra.mxu0 0.0
        %2713 = vmatpush.msra.mxu0 0.0
        %2714 = vmatpush.msra.mxu0 0.0
        %2715 = vmatpush.msra.mxu0 0.0
        %2716 = vmatpush.msra.mxu0 0.0
        %2717 = vmatpush.msra.mxu0 0.0
        %v2718 = vand.u32 %v2427, 4294901760
        %2719 = vmatpush.msra.mxu0 %v2718
        %v2720 = vand.u32 %v2431, 4294901760
        %2721 = vmatmul.f32.gmra.mxu0 %v2720
        %v2722 = vpop.f32.mrf.mxu0
        %v2723 = vadd.f32 %v2701, %v2722
        %2724 = vdwg.mxu0
        %v2725 = vadd.f32 %v2410, %v2577
        %v2726 = vadd.f32 %v2411, %v2723
        %2727 = vrot.lane.b32.xlu0 %v224, 111
        %v2728 = vpop.permute.xlu0 %2727
        %2729 = vrot.lane.b32.xlu0 %v225, 111
        %v2730 = vpop.permute.xlu0 %2729
        %vm2731 = vcmp.lt.s32.totalorder %v231, 111
        %v2732 = vsel %vm2731, %v2728, %v2730
        %v2733 = vsel %vm2731, %v2730, %v2728
        %s2734 = scalar_lea.vmem %s0, 16
        %v2735 = vld [vmem:[%s2734] sm:$0x3]
        %v2737 = vperm.slane %v2735, 0
        %v2738 = vperm.slane %v2735, 1
        %v2741 = vmul.f32 %v2732, %v2737
        %v2742 = vmul.f32 %v2733, %v2738
        %s2743 = scalar_lea.vmem %s1, 64
        %v2744 = vld [vmem:[%s2743] sm:$0xff]
        %v2746 = vsel %vm262, %v2744, 0
        %2748 = vmatpush.msra.mxu0 0.0
        %2749 = vmatpush.msra.mxu0 0.0
        %2750 = vmatpush.msra.mxu0 0.0
        %2751 = vmatpush.msra.mxu0 0.0
        %2752 = vmatpush.msra.mxu0 0.0
        %2753 = vmatpush.msra.mxu0 0.0
        %2754 = vmatpush.msra.mxu0 0.0
        %2755 = vmatpush.msra.mxu0 0.0
        %2756 = vmatpush.msra.mxu0 0.0
        %2757 = vmatpush.msra.mxu0 0.0
        %2758 = vmatpush.msra.mxu0 0.0
        %2759 = vmatpush.msra.mxu0 0.0
        %2760 = vmatpush.msra.mxu0 0.0
        %2761 = vmatpush.msra.mxu0 0.0
        %2762 = vmatpush.msra.mxu0 0.0
        %v2763 = vand.u32 %v2741, 4294901760
        %2764 = vmatpush.msra.mxu0 %v2763
        %v2765 = vand.u32 %v2746, 4294901760
        %v2766 = vsub.f32 %v2746, %v2765
        %v2767 = vand.u32 %v2766, 4294901760
        %v2768 = vsub.f32 %v2766, %v2767
        %v2769 = vand.u32 %v2768, 4294901760
        %2770 = vmatmul.f32.gmra.mxu0 %v2769
        %v2771 = vpop.f32.mrf.mxu0
        %v2772 = vadd.f32 0.0, %v2771
        %2773 = vdwg.mxu0
        %2774 = vmatpush.msra.mxu0 0.0
        %2775 = vmatpush.msra.mxu0 0.0
        %2776 = vmatpush.msra.mxu0 0.0
        %2777 = vmatpush.msra.mxu0 0.0
        %2778 = vmatpush.msra.mxu0 0.0
        %2779 = vmatpush.msra.mxu0 0.0
        %2780 = vmatpush.msra.mxu0 0.0
        %2781 = vmatpush.msra.mxu0 0.0
        %2782 = vmatpush.msra.mxu0 0.0
        %2783 = vmatpush.msra.mxu0 0.0
        %2784 = vmatpush.msra.mxu0 0.0
        %2785 = vmatpush.msra.mxu0 0.0
        %2786 = vmatpush.msra.mxu0 0.0
        %2787 = vmatpush.msra.mxu0 0.0
        %2788 = vmatpush.msra.mxu0 0.0
        %v2789 = vand.u32 %v2741, 4294901760
        %v2790 = vsub.f32 %v2741, %v2789
        %v2791 = vand.u32 %v2790, 4294901760
        %v2792 = vsub.f32 %v2790, %v2791
        %v2793 = vand.u32 %v2792, 4294901760
        %2794 = vmatpush.msra.mxu0 %v2793
        %v2795 = vand.u32 %v2746, 4294901760
        %2796 = vmatmul.f32.gmra.mxu0 %v2795
        %v2797 = vpop.f32.mrf.mxu0
        %v2798 = vadd.f32 %v2772, %v2797
        %2799 = vdwg.mxu0
        %2800 = vmatpush.msra.mxu0 0.0
        %2801 = vmatpush.msra.mxu0 0.0
        %2802 = vmatpush.msra.mxu0 0.0
        %2803 = vmatpush.msra.mxu0 0.0
        %2804 = vmatpush.msra.mxu0 0.0
        %2805 = vmatpush.msra.mxu0 0.0
        %2806 = vmatpush.msra.mxu0 0.0
        %2807 = vmatpush.msra.mxu0 0.0
        %2808 = vmatpush.msra.mxu0 0.0
        %2809 = vmatpush.msra.mxu0 0.0
        %2810 = vmatpush.msra.mxu0 0.0
        %2811 = vmatpush.msra.mxu0 0.0
        %2812 = vmatpush.msra.mxu0 0.0
        %2813 = vmatpush.msra.mxu0 0.0
        %2814 = vmatpush.msra.mxu0 0.0
        %v2815 = vand.u32 %v2741, 4294901760
        %v2816 = vsub.f32 %v2741, %v2815
        %2817 = vmatpush.msra.mxu0 %v2816
        %v2818 = vand.u32 %v2746, 4294901760
        %v2819 = vsub.f32 %v2746, %v2818
        %2820 = vmatmul.f32.gmra.mxu0 %v2819
        %v2821 = vpop.f32.mrf.mxu0
        %v2822 = vadd.f32 %v2798, %v2821
        %2823 = vdwg.mxu0
        %2824 = vmatpush.msra.mxu0 0.0
        %2825 = vmatpush.msra.mxu0 0.0
        %2826 = vmatpush.msra.mxu0 0.0
        %2827 = vmatpush.msra.mxu0 0.0
        %2828 = vmatpush.msra.mxu0 0.0
        %2829 = vmatpush.msra.mxu0 0.0
        %2830 = vmatpush.msra.mxu0 0.0
        %2831 = vmatpush.msra.mxu0 0.0
        %2832 = vmatpush.msra.mxu0 0.0
        %2833 = vmatpush.msra.mxu0 0.0
        %2834 = vmatpush.msra.mxu0 0.0
        %2835 = vmatpush.msra.mxu0 0.0
        %2836 = vmatpush.msra.mxu0 0.0
        %2837 = vmatpush.msra.mxu0 0.0
        %2838 = vmatpush.msra.mxu0 0.0
        %v2839 = vand.u32 %v2741, 4294901760
        %2840 = vmatpush.msra.mxu0 %v2839
        %v2841 = vand.u32 %v2746, 4294901760
        %v2842 = vsub.f32 %v2746, %v2841
        %v2843 = vand.u32 %v2842, 4294901760
        %2844 = vmatmul.f32.gmra.mxu0 %v2843
        %v2845 = vpop.f32.mrf.mxu0
        %v2846 = vadd.f32 %v2822, %v2845
        %2847 = vdwg.mxu0
        %2848 = vmatpush.msra.mxu0 0.0
        %2849 = vmatpush.msra.mxu0 0.0
        %2850 = vmatpush.msra.mxu0 0.0
        %2851 = vmatpush.msra.mxu0 0.0
        %2852 = vmatpush.msra.mxu0 0.0
        %2853 = vmatpush.msra.mxu0 0.0
        %2854 = vmatpush.msra.mxu0 0.0
        %2855 = vmatpush.msra.mxu0 0.0
        %2856 = vmatpush.msra.mxu0 0.0
        %2857 = vmatpush.msra.mxu0 0.0
        %2858 = vmatpush.msra.mxu0 0.0
        %2859 = vmatpush.msra.mxu0 0.0
        %2860 = vmatpush.msra.mxu0 0.0
        %2861 = vmatpush.msra.mxu0 0.0
        %2862 = vmatpush.msra.mxu0 0.0
        %v2863 = vand.u32 %v2741, 4294901760
        %v2864 = vsub.f32 %v2741, %v2863
        %v2865 = vand.u32 %v2864, 4294901760
        %2866 = vmatpush.msra.mxu0 %v2865
        %v2867 = vand.u32 %v2746, 4294901760
        %2868 = vmatmul.f32.gmra.mxu0 %v2867
        %v2869 = vpop.f32.mrf.mxu0
        %v2870 = vadd.f32 %v2846, %v2869
        %2871 = vdwg.mxu0
        %2872 = vmatpush.msra.mxu0 0.0
        %2873 = vmatpush.msra.mxu0 0.0
        %2874 = vmatpush.msra.mxu0 0.0
        %2875 = vmatpush.msra.mxu0 0.0
        %2876 = vmatpush.msra.mxu0 0.0
        %2877 = vmatpush.msra.mxu0 0.0
        %2878 = vmatpush.msra.mxu0 0.0
        %2879 = vmatpush.msra.mxu0 0.0
        %2880 = vmatpush.msra.mxu0 0.0
        %2881 = vmatpush.msra.mxu0 0.0
        %2882 = vmatpush.msra.mxu0 0.0
        %2883 = vmatpush.msra.mxu0 0.0
        %2884 = vmatpush.msra.mxu0 0.0
        %2885 = vmatpush.msra.mxu0 0.0
        %2886 = vmatpush.msra.mxu0 0.0
        %v2887 = vand.u32 %v2741, 4294901760
        %2888 = vmatpush.msra.mxu0 %v2887
        %v2889 = vand.u32 %v2746, 4294901760
        %2890 = vmatmul.f32.gmra.mxu0 %v2889
        %v2891 = vpop.f32.mrf.mxu0
        %v2892 = vadd.f32 %v2870, %v2891
        %2893 = vdwg.mxu0
        %2894 = vmatpush.msra.mxu0 0.0
        %2895 = vmatpush.msra.mxu0 0.0
        %2896 = vmatpush.msra.mxu0 0.0
        %2897 = vmatpush.msra.mxu0 0.0
        %2898 = vmatpush.msra.mxu0 0.0
        %2899 = vmatpush.msra.mxu0 0.0
        %2900 = vmatpush.msra.mxu0 0.0
        %2901 = vmatpush.msra.mxu0 0.0
        %2902 = vmatpush.msra.mxu0 0.0
        %2903 = vmatpush.msra.mxu0 0.0
        %2904 = vmatpush.msra.mxu0 0.0
        %2905 = vmatpush.msra.mxu0 0.0
        %2906 = vmatpush.msra.mxu0 0.0
        %2907 = vmatpush.msra.mxu0 0.0
        %2908 = vmatpush.msra.mxu0 0.0
        %v2909 = vand.u32 %v2742, 4294901760
        %2910 = vmatpush.msra.mxu0 %v2909
        %v2911 = vand.u32 %v2746, 4294901760
        %v2912 = vsub.f32 %v2746, %v2911
        %v2913 = vand.u32 %v2912, 4294901760
        %v2914 = vsub.f32 %v2912, %v2913
        %v2915 = vand.u32 %v2914, 4294901760
        %2916 = vmatmul.f32.gmra.mxu0 %v2915
        %v2917 = vpop.f32.mrf.mxu0
        %v2918 = vadd.f32 0.0, %v2917
        %2919 = vdwg.mxu0
        %2920 = vmatpush.msra.mxu0 0.0
        %2921 = vmatpush.msra.mxu0 0.0
        %2922 = vmatpush.msra.mxu0 0.0
        %2923 = vmatpush.msra.mxu0 0.0
        %2924 = vmatpush.msra.mxu0 0.0
        %2925 = vmatpush.msra.mxu0 0.0
        %2926 = vmatpush.msra.mxu0 0.0
        %2927 = vmatpush.msra.mxu0 0.0
        %2928 = vmatpush.msra.mxu0 0.0
        %2929 = vmatpush.msra.mxu0 0.0
        %2930 = vmatpush.msra.mxu0 0.0
        %2931 = vmatpush.msra.mxu0 0.0
        %2932 = vmatpush.msra.mxu0 0.0
        %2933 = vmatpush.msra.mxu0 0.0
        %2934 = vmatpush.msra.mxu0 0.0
        %v2935 = vand.u32 %v2742, 4294901760
        %v2936 = vsub.f32 %v2742, %v2935
        %v2937 = vand.u32 %v2936, 4294901760
        %v2938 = vsub.f32 %v2936, %v2937
        %v2939 = vand.u32 %v2938, 4294901760
        %2940 = vmatpush.msra.mxu0 %v2939
        %v2941 = vand.u32 %v2746, 4294901760
        %2942 = vmatmul.f32.gmra.mxu0 %v2941
        %v2943 = vpop.f32.mrf.mxu0
        %v2944 = vadd.f32 %v2918, %v2943
        %2945 = vdwg.mxu0
        %2946 = vmatpush.msra.mxu0 0.0
        %2947 = vmatpush.msra.mxu0 0.0
        %2948 = vmatpush.msra.mxu0 0.0
        %2949 = vmatpush.msra.mxu0 0.0
        %2950 = vmatpush.msra.mxu0 0.0
        %2951 = vmatpush.msra.mxu0 0.0
        %2952 = vmatpush.msra.mxu0 0.0
        %2953 = vmatpush.msra.mxu0 0.0
        %2954 = vmatpush.msra.mxu0 0.0
        %2955 = vmatpush.msra.mxu0 0.0
        %2956 = vmatpush.msra.mxu0 0.0
        %2957 = vmatpush.msra.mxu0 0.0
        %2958 = vmatpush.msra.mxu0 0.0
        %2959 = vmatpush.msra.mxu0 0.0
        %2960 = vmatpush.msra.mxu0 0.0
        %v2961 = vand.u32 %v2742, 4294901760
        %v2962 = vsub.f32 %v2742, %v2961
        %2963 = vmatpush.msra.mxu0 %v2962
        %v2964 = vand.u32 %v2746, 4294901760
        %v2965 = vsub.f32 %v2746, %v2964
        %2966 = vmatmul.f32.gmra.mxu0 %v2965
        %v2967 = vpop.f32.mrf.mxu0
        %v2968 = vadd.f32 %v2944, %v2967
        %2969 = vdwg.mxu0
        %2970 = vmatpush.msra.mxu0 0.0
        %2971 = vmatpush.msra.mxu0 0.0
        %2972 = vmatpush.msra.mxu0 0.0
        %2973 = vmatpush.msra.mxu0 0.0
        %2974 = vmatpush.msra.mxu0 0.0
        %2975 = vmatpush.msra.mxu0 0.0
        %2976 = vmatpush.msra.mxu0 0.0
        %2977 = vmatpush.msra.mxu0 0.0
        %2978 = vmatpush.msra.mxu0 0.0
        %2979 = vmatpush.msra.mxu0 0.0
        %2980 = vmatpush.msra.mxu0 0.0
        %2981 = vmatpush.msra.mxu0 0.0
        %2982 = vmatpush.msra.mxu0 0.0
        %2983 = vmatpush.msra.mxu0 0.0
        %2984 = vmatpush.msra.mxu0 0.0
        %v2985 = vand.u32 %v2742, 4294901760
        %2986 = vmatpush.msra.mxu0 %v2985
        %v2987 = vand.u32 %v2746, 4294901760
        %v2988 = vsub.f32 %v2746, %v2987
        %v2989 = vand.u32 %v2988, 4294901760
        %2990 = vmatmul.f32.gmra.mxu0 %v2989
        %v2991 = vpop.f32.mrf.mxu0
        %v2992 = vadd.f32 %v2968, %v2991
        %2993 = vdwg.mxu0
        %2994 = vmatpush.msra.mxu0 0.0
        %2995 = vmatpush.msra.mxu0 0.0
        %2996 = vmatpush.msra.mxu0 0.0
        %2997 = vmatpush.msra.mxu0 0.0
        %2998 = vmatpush.msra.mxu0 0.0
        %2999 = vmatpush.msra.mxu0 0.0
        %3000 = vmatpush.msra.mxu0 0.0
        %3001 = vmatpush.msra.mxu0 0.0
        %3002 = vmatpush.msra.mxu0 0.0
        %3003 = vmatpush.msra.mxu0 0.0
        %3004 = vmatpush.msra.mxu0 0.0
        %3005 = vmatpush.msra.mxu0 0.0
        %3006 = vmatpush.msra.mxu0 0.0
        %3007 = vmatpush.msra.mxu0 0.0
        %3008 = vmatpush.msra.mxu0 0.0
        %v3009 = vand.u32 %v2742, 4294901760
        %v3010 = vsub.f32 %v2742, %v3009
        %v3011 = vand.u32 %v3010, 4294901760
        %3012 = vmatpush.msra.mxu0 %v3011
        %v3013 = vand.u32 %v2746, 4294901760
        %3014 = vmatmul.f32.gmra.mxu0 %v3013
        %v3015 = vpop.f32.mrf.mxu0
        %v3016 = vadd.f32 %v2992, %v3015
        %3017 = vdwg.mxu0
        %3018 = vmatpush.msra.mxu0 0.0
        %3019 = vmatpush.msra.mxu0 0.0
        %3020 = vmatpush.msra.mxu0 0.0
        %3021 = vmatpush.msra.mxu0 0.0
        %3022 = vmatpush.msra.mxu0 0.0
        %3023 = vmatpush.msra.mxu0 0.0
        %3024 = vmatpush.msra.mxu0 0.0
        %3025 = vmatpush.msra.mxu0 0.0
        %3026 = vmatpush.msra.mxu0 0.0
        %3027 = vmatpush.msra.mxu0 0.0
        %3028 = vmatpush.msra.mxu0 0.0
        %3029 = vmatpush.msra.mxu0 0.0
        %3030 = vmatpush.msra.mxu0 0.0
        %3031 = vmatpush.msra.mxu0 0.0
        %3032 = vmatpush.msra.mxu0 0.0
        %v3033 = vand.u32 %v2742, 4294901760
        %3034 = vmatpush.msra.mxu0 %v3033
        %v3035 = vand.u32 %v2746, 4294901760
        %3036 = vmatmul.f32.gmra.mxu0 %v3035
        %v3037 = vpop.f32.mrf.mxu0
        %v3038 = vadd.f32 %v3016, %v3037
        %3039 = vdwg.mxu0
        %v3040 = vadd.f32 %v2725, %v2892
        %v3041 = vadd.f32 %v2726, %v3038
        %v3042 = vld [vmem:[%s2] sm:$0xff]
        %3044 = vset.pattern.permute.xlu0 0
        %3045 = vperm.xlu0 %3044, %v3042
        %v3046 = vpop.permute.xlu0 %3045
        %v3048 = vadd.f32 %v3040, %v3046
        %v3049 = vadd.f32 %v3041, %v3046
        %s3050 = sld [smem:[#allocation2]]
        %vm3051 = vcmp.gt.f32.partialorder %v3048, 0.0
        %vm3052 = vcmp.gt.f32.partialorder %v3049, 0.0
        %v3053 = vstv %s3050
        %v3054 = vmul.f32 %v3053, %v3048
        %v3055 = vmul.f32 %v3053, %v3049
        %v3056 = vsel %vm3051, %v3048, %v3054
        %v3057 = vsel %vm3052, %v3049, %v3055
        %v3058 = vadd.f32 %v224, %v3056
        %v3059 = vadd.f32 %v225, %v3057
        %3060 = vst [vmem:[%s218] sm:$0xff] %v3058
        %3061 = vst [vmem:[%s218 + $0x8] sm:$0xff] %v3059
        %s3062 = sand.u32 %s138, 1
        %s3063 = scalar_lea.sflag [#allocation4], %s3062
        %s3064 = sand.u32 %s138, 1
        %s3065 = smul.addr %s3064, 16
        %s3066 = scalar_lea.vmem [#allocation3], %s3065
        // Predicated region
        $region41: #{tpu_custom_call.1} parent=39 // pred_check
          %p3067 = pneg %p148
        $region42: #{tpu_custom_call.1} parent=39 // pred_check_branch
          %3069 = sbr.rel (%p3067) target = $region44
        $region43: #{tpu_custom_call.1} parent=39 // pred_region
          %3071 = vsyncadd %s3063, 0
          %s3072 = smul.addr %s20, 2
          %s3073 = smul.addr %s3072, 8
          %s3074 = scalar_lea.hbm %s5, %s3073
          %s3076 = sshll.u32 %s3066, 4
          %s3077 = int_to_ptr.vmem [resolvable:$true] %s3076
          %s3078 = sshll.u32 %s3074, 4
          %s3079 = int_to_ptr.hbm [resolvable:$true] %s3078
          %3081 = dma.vmem_to_hbm [thread:$0]  %s3077, 256, %s3079, %s3063
        $region44: #{tpu_custom_call.1} parent=39 // pred_fallthru
          _
      $region40: #{tpu_custom_call.1} parent=5 // pred_fallthru
        _
      %p3082 = scmp.le.s32.totalorder 2, %s15
      // Predicated region
      $region45: #{tpu_custom_call.1} parent=5 // pred_check
        %p3083 = pneg %p3082
      $region46: #{tpu_custom_call.1} parent=5 // pred_check_branch
        %3085 = sbr.rel (%p3083) target = $region48
      $region47: #{tpu_custom_call.1} parent=5 // pred_region
        %s3086 = ssub.s32 %s15, 2
        // Predicated region
        $region49: #{tpu_custom_call.1} parent=47 // pred_check
          %p3087 = pneg %p154
        $region50: #{tpu_custom_call.1} parent=47 // pred_check_branch
          %3089 = sbr.rel (%p3087) target = $region52
        $region51: #{tpu_custom_call.1} parent=47 // pred_region
          %s3090 = sand.u32 %s139, 1
          %s3091 = scalar_lea.sflag [#allocation4], %s3090
          %s3092 = sand.u32 %s139, 1
          %s3093 = smul.addr %s3092, 16
          %s3094 = scalar_lea.vmem [#allocation3], %s3093
          %3096 = dma.done %s3091, 256
        $region52: #{tpu_custom_call.1} parent=47 // pred_fallthru
          _
      $region48: #{tpu_custom_call.1} parent=5 // pred_fallthru
        _
    $region6: #{tpu_custom_call.1} parent=1 // loop_footer
      %s19 = sadd.s32 1, %s15
    $region7: #{tpu_custom_call.1} parent=1 // loop_footer_branch
      %14 = sbr.rel target = $region3
    $region8: #{tpu_custom_call.1} parent=1 // loop_exit
      _
    %3097 = vsyncpa [#allocation4], 1
    %s3098 = scalar_lea.sflag [#allocation4], 1
    %3099 = vsyncpa %s3098, 1

</llo_original>
